<compile_context>
chip_gen: v7x
topology: tpu7x:2x2x1
jax: 0.10.0
libtpu: 0.0.40
codegen_flags: <defaults>
</compile_context>

<pallas_src>
import numpy as np
import jax
import jax.numpy as jnp
from jax import lax
from jax.experimental import pallas as pl
from jax.experimental.pallas import tpu as pltpu


def _round_up(x, m):
    return ((x + m - 1) // m) * m


# -----------------------------------------------------------------------------
# Kernel: one time-chunk per grid step (grid axis = "arbitrary", carries state).
# -----------------------------------------------------------------------------
def _gru_decoder_kernel(
    x_ref,       # [Tc, Bp, Hp]   time-major input chunk
    s_ref,       # [Bp, S]        state vector
    len_ref,     # [Bp, 1]        int32 sequence lengths
    ws2h_ref,    # [S, Hp]        s2h weight (transposed, lane padded)
    bs2h_ref,    # [1, Hp]        s2h bias
    wih0_ref,    # [Hp, 3Hp]      layer-0 input weights (gates at 0 / Hp / 2Hp)
    w01_ref,     # [Hp, 6Hp]      [ whh0 | wih1 ] fused recurrent/input weights
    whh1_ref,    # [Hp, 3Hp]      layer-1 recurrent weights
    bi0_ref,     # [1, 3Hp]       [b_ir+b_hr | b_iz+b_hz | b_in]  (layer 0)
    bhn0_ref,    # [1, Hp]        b_hn layer 0 (must stay inside r*(...))
    bi1_ref,     # [1, 3Hp]       combined input biases, layer 1
    bhn1_ref,    # [1, Hp]        b_hn layer 1
    out_ref,     # [Tc, Bp, Hp]   time-major output chunk
    h1_ref,      # [Bp, Hp] f32 scratch: layer-0 hidden, persists across chunks
    h2_ref,      # [Bp, Hp] f32 scratch: layer-1 hidden, persists across chunks
    gi0_ref,     # [Tc, Bp, 3Hp] f32 scratch: hoisted layer-0 input projection
):
    Hp = bs2h_ref.shape[-1]
    Tc, Bp, _ = x_ref.shape
    c = pl.program_id(0)

    # ---- chunk 0: hidden = s2h(s), replicated to both GRU layers -------------
    @pl.when(c == 0)
    def _():
        h0 = (jnp.dot(s_ref[...].astype(ws2h_ref.dtype), ws2h_ref[...],
                      preferred_element_type=jnp.float32)
              + bs2h_ref[...].astype(jnp.float32))
        h1_ref[...] = h0
        h2_ref[...] = h0

    # ---- hoisted layer-0 input projection for the whole chunk ----------------
    # One [Tc*Bp, Hp] x [Hp, 3Hp] matmul (fills the MXU rows) instead of Tc
    # skinny M=Bp matmuls on the serial per-step chain.
    x_chunk = x_ref[...].astype(wih0_ref.dtype)                      # [Tc, Bp, Hp]
    gi0 = jnp.dot(x_chunk.reshape(Tc * Bp, Hp), wih0_ref[...],
                  preferred_element_type=jnp.float32)
    gi0_ref[...] = gi0.reshape(Tc, Bp, 3 * Hp) + bi0_ref[...].astype(jnp.float32)

    # Loop-invariant loads (weights stay resident; hoisted out of the loop).
    w01 = w01_ref[...]
    whh1 = whh1_ref[...]
    bi1 = bi1_ref[...].astype(jnp.float32)
    bhn0 = bhn0_ref[...].astype(jnp.float32)
    bhn1 = bhn1_ref[...].astype(jnp.float32)
    lens = len_ref[...]                                              # [Bp, 1] i32
    t0 = c * Tc                                                      # global offset

    def gates(gi, gh, bhn, h_prev):
        # PyTorch GRU cell, gate order (r, z, n); gi already carries the input
        # biases (r/z combined with the hidden ones; n keeps only its input side).
        r = jax.nn.sigmoid(gi[:, 0 * Hp:1 * Hp] + gh[:, 0 * Hp:1 * Hp])
        z = jax.nn.sigmoid(gi[:, 1 * Hp:2 * Hp] + gh[:, 1 * Hp:2 * Hp])
        n = jnp.tanh(gi[:, 2 * Hp:3 * Hp] + r * (gh[:, 2 * Hp:3 * Hp] + bhn))
        return (1.0 - z) * n + z * h_prev

    def h1_proj(h1):
        # One fused matmul: gh0 (layer-0 recurrent) and gi1 (layer-1 input)
        # share the same LHS operand under the skewed schedule.
        g = jnp.dot(h1.astype(w01.dtype), w01, preferred_element_type=jnp.float32)
        return g[:, :3 * Hp], g[:, 3 * Hp:] + bi1

    def masked_store(i_local, h2_val):
        # pad_packed_sequence(padding_value=0): zero out t >= v_len[b]
        valid = ((t0 + i_local) < lens).astype(jnp.float32)          # [Bp, 1]
        out_ref[i_local] = (h2_val * valid).astype(out_ref.dtype)

    h1 = h1_ref[...]
    h2 = h2_ref[...]

    # ---- prologue: layer-0 cell of local step 0 (skewed schedule) ------------
    gh0, _ = h1_proj(h1)
    h1 = gates(gi0_ref[0], gh0, bhn0, h1)

    # ---- main loop: layer-0 step i overlapped with layer-1 step i-1 ----------
    def body(i, carry):
        h1_c, h2_c = carry                # h1_c = layer-0 output at step i-1
        gh0_i, gi1 = h1_proj(h1_c)        # independent of the layer-1 update
        gh1 = jnp.dot(h2_c.astype(whh1.dtype), whh1,
                      preferred_element_type=jnp.float32)
        h1_n = gates(gi0_ref[i], gh0_i, bhn0, h1_c)   # layer-0, step i
        h2_n = gates(gi1, gh1, bhn1, h2_c)            # layer-1, step i-1
        masked_store(i - 1, h2_n)
        return h1_n, h2_n

    unroll = True if Tc <= 8 else 4
    h1, h2 = lax.fori_loop(1, Tc, body, (h1, h2), unroll=unroll)

    # ---- epilogue: layer-1 cell of the chunk's last step ---------------------
    _, gi1 = h1_proj(h1)
    gh1 = jnp.dot(h2.astype(whh1.dtype), whh1, preferred_element_type=jnp.float32)
    h2 = gates(gi1, gh1, bhn1, h2)
    masked_store(Tc - 1, h2)

    # Carry the recurrent state to the next chunk.
    h1_ref[...] = h1
    h2_ref[...] = h2


# -----------------------------------------------------------------------------
# One-time parameter repacking (hoisted out of the per-call forward path)
# -----------------------------------------------------------------------------
def _pad_gate_weight(w, H, Hp, dtype):
    """[I, 3H] -> [Hp, 3Hp] with gate blocks at lane offsets 0, Hp, 2Hp."""
    I = w.shape[0]
    out = jnp.zeros((Hp, 3 * Hp), dtype)
    for g in range(3):
        out = out.at[:I, g * Hp:g * Hp + H].set(w[:, g * H:(g + 1) * H].astype(dtype))
    return out


def _combine_biases(bih, bhh, H, Hp):
    """[1,3H]x2 -> ([1,3Hp] combined r/z + input-side n bias, [1,Hp] hidden n bias)."""
    bi = jnp.zeros((1, 3 * Hp), jnp.float32)
    bi = bi.at[:, 0:H].set(bih[:, 0:H] + bhh[:, 0:H])                # r
    bi = bi.at[:, Hp:Hp + H].set(bih[:, H:2 * H] + bhh[:, H:2 * H])  # z
    bi = bi.at[:, 2 * Hp:2 * Hp + H].set(bih[:, 2 * H:3 * H])        # n (input side)
    bhn = jnp.zeros((1, Hp), jnp.float32).at[:, :H].set(bhh[:, 2 * H:3 * H])
    return bi, bhn


def prepare_decoder_params(p, s_dim, h_dim, param_dtype=jnp.float32):
    """Repack raw params into the kernel layout once (cache the result).
    param_dtype=jnp.bfloat16 recommended for large h_dim on v6e/v7x (matmuls
    still accumulate in f32)."""
    H = h_dim
    Hp = _round_up(H, 128)
    wih0 = _pad_gate_weight(p["wih0"], H, Hp, param_dtype)
    whh0 = _pad_gate_weight(p["whh0"], H, Hp, param_dtype)
    wih1 = _pad_gate_weight(p["wih1"], H, Hp, param_dtype)
    whh1 = _pad_gate_weight(p["whh1"], H, Hp, param_dtype)
    bi0, bhn0 = _combine_biases(p["bih0"], p["bhh0"], H, Hp)
    bi1, bhn1 = _combine_biases(p["bih1"], p["bhh1"], H, Hp)
    ws2h = jnp.zeros((s_dim, Hp), param_dtype).at[:, :H].set(p["ws2h"].astype(param_dtype))
    bs2h = jnp.zeros((1, Hp), jnp.float32).at[:, :H].set(p["bs2h"])
    return {
        "H": H, "Hp": Hp, "S": s_dim,
        "ws2h": ws2h, "bs2h": bs2h,
        "wih0": wih0,
        "w01": jnp.concatenate([whh0, wih1], axis=1),   # [Hp, 6Hp] fused weights
        "whh1": whh1,
        "bi0": bi0, "bhn0": bhn0, "bi1": bi1, "bhn1": bhn1,
    }


# -----------------------------------------------------------------------------
# Forward wrapper: mirrors RNNDecoder.forward(h, s, k, v_mask, v_len)
# -----------------------------------------------------------------------------
def rnn_decoder_forward(h_unused, s, k_unused, v_mask, v_len, packed,
                        temperature=1.0, chunk=32):
    """h, k, temperature are unused (as in the PyTorch module).
    `packed` is the result of prepare_decoder_params(...)."""
    del h_unused, k_unused, temperature
    H, Hp, S = packed["H"], packed["Hp"], packed["S"]

    v_mask = jnp.asarray(v_mask, jnp.float32)            # [B, T, H] batch-first
    s = jnp.asarray(s, jnp.float32)                      # [B, S]
    B, T, _ = v_mask.shape
    v_len_np = np.asarray(v_len)
    # total_length of pad_packed; requires concrete v_len (host value), like
    # the original module's v_len.max().item().
    max_len = max(int(v_len_np.max()), 1)

    # Batch padded to full sublanes; time trimmed to max_len and split into
    # near-equal chunks (waste <= n_chunks-1 padded steps).
    Bp = max(_round_up(B, 8), 8)
    n_chunks = pl.cdiv(max_len, chunk)
    Tc = pl.cdiv(max_len, n_chunks)
    T_pad = n_chunks * Tc

    # Time-major, zero-padded input [T_pad, Bp, Hp]; padded feature columns stay
    # exactly 0 through the recurrence (zero weight/bias columns).
    x_tm = jnp.zeros((T_pad, Bp, Hp), jnp.float32)
    x_tm = x_tm.at[:max_len, :B, :H].set(
        jnp.transpose(v_mask[:, :max_len, :], (1, 0, 2)))
    s_p = jnp.zeros((Bp, S), jnp.float32).at[:B, :].set(s)
    len_col = jnp.zeros((Bp, 1), jnp.int32).at[:B, 0].set(
        jnp.asarray(v_len_np, jnp.int32))

    weights = (packed["ws2h"], packed["bs2h"], packed["wih0"], packed["w01"],
               packed["whh1"], packed["bi0"], packed["bhn0"], packed["bi1"],
               packed["bhn1"])

    def full_spec(a):
        return pl.BlockSpec(a.shape, lambda c: (0,) * a.ndim)

    chunk_spec = pl.BlockSpec((Tc, Bp, Hp), lambda c: (c, 0, 0))

    # VMEM budget: chunked x/out (double-buffered) + resident weights + scratch.
    param_bytes = sum(int(np.prod(w.shape)) * w.dtype.itemsize for w in weights)
    fp = (4 * Tc * Bp * Hp * 4            # x + out chunks, double-buffered
          + 2 * param_bytes               # weights (worst case two buffers)
          + Tc * Bp * 3 * Hp * 4          # gi0 scratch
          + 2 * Bp * Hp * 4               # h1 / h2 scratch
          + 2 * Bp * max(S, 128) * 4)     # s + lens
    vmem_limit = int(min(max(fp * 3 // 2 + (1 << 20), 32 * 2 ** 20), 48 * 2 ** 20))

    out_tm = pl.pallas_call(
        _gru_decoder_kernel,
        out_shape=jax.ShapeDtypeStruct((T_pad, Bp, Hp), jnp.float32),
        grid_spec=pltpu.PrefetchScalarGridSpec(
            num_scalar_prefetch=0,
            grid=(n_chunks,),
            in_specs=[chunk_spec, full_spec(s_p), full_spec(len_col)]
                     + [full_spec(w) for w in weights],
            out_specs=chunk_spec,
            scratch_shapes=[
                pltpu.VMEM((Bp, Hp), jnp.float32),          # h1 (layer-0 hidden)
                pltpu.VMEM((Bp, Hp), jnp.float32),          # h2 (layer-1 hidden)
                pltpu.VMEM((Tc, Bp, 3 * Hp), jnp.float32),  # hoisted gi0
            ]),
        compiler_params=pltpu.CompilerParams(
            dimension_semantics=("arbitrary",),             # chunks carry state
            vmem_limit_bytes=vmem_limit),
    )(x_tm, s_p, len_col, *weights)

    # Back to batch-first [B, max_len, H].
    return jnp.transpose(out_tm[:max_len, :B, :H], (1, 0, 2))


# -----------------------------------------------------------------------------
# Deterministic parameter init (PyTorch-style uniform(-1/sqrt(H), 1/sqrt(H)))
# -----------------------------------------------------------------------------
def init_params(key, s_dim, h_dim):
    ks = jax.random.split(key, 10)
    bound = 1.0 / np.sqrt(h_dim)
    u = lambda k, shape: jax.random.uniform(
        k, shape, jnp.float32, minval=-bound, maxval=bound)
    return {
        # s2h Linear: PyTorch weight [H, S] -> stored transposed [S, H]
        "ws2h": u(ks[0], (s_dim, h_dim)),
        "bs2h": u(ks[1], (1, h_dim)),
        # GRU layer 0: PyTorch weight_ih_l0 [3H, H] -> stored transposed [H, 3H]
        "wih0": u(ks[2], (h_dim, 3 * h_dim)),
        "whh0": u(ks[3], (h_dim, 3 * h_dim)),
        "bih0": u(ks[4], (1, 3 * h_dim)),
        "bhh0": u(ks[5], (1, 3 * h_dim)),
        # GRU layer 1
        "wih1": u(ks[6], (h_dim, 3 * h_dim)),
        "whh1": u(ks[7], (h_dim, 3 * h_dim)),
        "bih1": u(ks[8], (1, 3 * h_dim)),
        "bhh1": u(ks[9], (1, 3 * h_dim)),
    }


# -----------------------------------------------------------------------------
# Pure-JAX reference (for correctness check)
# -----------------------------------------------------------------------------
def _ref_forward(s, x_bf, v_len, p, H):
    def cell(x, h, wih, whh, bih, bhh):
        gi = x @ wih + bih
        gh = h @ whh + bhh
        r = jax.nn.sigmoid(gi[:, :H] + gh[:, :H])
        z = jax.nn.sigmoid(gi[:, H:2 * H] + gh[:, H:2 * H])
        n = jnp.tanh(gi[:, 2 * H:] + r * gh[:, 2 * H:])
        return (1.0 - z) * n + z * h

    B, T, _ = x_bf.shape
    h0 = s @ p["ws2h"] + p["bs2h"]
    h1, h2 = h0, h0
    outs = []
    for t in range(T):
        h1 = cell(x_bf[:, t, :], h1, p["wih0"], p["whh0"], p["bih0"], p["bhh0"])
        h2 = cell(h1, h2, p["wih1"], p["whh1"], p["bih1"], p["bhh1"])
        outs.append(h2)
    out = jnp.stack(outs, axis=1)
    mask = (jnp.arange(T)[None, :, None]
            < jnp.asarray(v_len)[:, None, None]).astype(jnp.float32)
    out = out * mask
    max_len = int(np.max(np.asarray(v_len)))
    return out[:, :max_len, :]


if __name__ == "__main__":
    B, T = 4, 8            # batch, max sequence length
    S_DIM, H_DIM = 16, 32  # s_dim, h_dim (n_layers = 2)

    key = jax.random.PRNGKey(0)
    k_params, k_s, k_x = jax.random.split(key, 3)

    raw_params = init_params(k_params, S_DIM, H_DIM)
    packed = prepare_decoder_params(raw_params, S_DIM, H_DIM)   # one-time repack

    s = jax.random.normal(k_s, (B, S_DIM), jnp.float32)           # state
    v_mask = jax.random.normal(k_x, (B, T, H_DIM), jnp.float32)   # padded seqs
    v_len = np.array([8, 5, 8, 3], dtype=np.int32)                # max == T
    h_in = jnp.zeros((B, H_DIM), jnp.float32)   # unused, like the torch module
    k_in = jnp.zeros((B, H_DIM), jnp.float32)   # unused

    out = rnn_decoder_forward(h_in, s, k_in, v_mask, v_len, packed)
    out = jax.block_until_ready(out)

    ref = _ref_forward(s, v_mask, v_len, raw_params, H_DIM)
    np.testing.assert_allclose(np.asarray(out), np.asarray(ref),
                               rtol=1e-4, atol=1e-4)

    print("KERNEL_OK")
</pallas_src>

<mosaic_0001>
module attributes {stable_mosaic.version = 11 : i64} {
  func.func @_gru_decoder_kernel(%arg0: i32, %arg1: memref<8x8x128xf32, #tpu.memory_space<vmem>>, %arg2: memref<8x16xf32, #tpu.memory_space<vmem>>, %arg3: memref<8x1xi32, #tpu.memory_space<vmem>>, %arg4: memref<16x128xf32, #tpu.memory_space<vmem>>, %arg5: memref<1x128xf32, #tpu.memory_space<vmem>>, %arg6: memref<128x384xf32, #tpu.memory_space<vmem>>, %arg7: memref<128x768xf32, #tpu.memory_space<vmem>>, %arg8: memref<128x384xf32, #tpu.memory_space<vmem>>, %arg9: memref<1x384xf32, #tpu.memory_space<vmem>>, %arg10: memref<1x128xf32, #tpu.memory_space<vmem>>, %arg11: memref<1x384xf32, #tpu.memory_space<vmem>>, %arg12: memref<1x128xf32, #tpu.memory_space<vmem>>, %arg13: memref<8x8x128xf32, #tpu.memory_space<vmem>>, %arg14: memref<8x128xf32, #tpu.memory_space<vmem>>, %arg15: memref<8x128xf32, #tpu.memory_space<vmem>>, %arg16: memref<8x8x384xf32, #tpu.memory_space<vmem>>) attributes {dimension_semantics = [#tpu.dimension_semantics<arbitrary>], iteration_bounds = array<i64: 1>, scalar_prefetch = 0 : i64, scratch_operands = 3 : i64, tpu.core_type = #tpu.core_type<tc>, window_params = [{transform_indices = @transform_0, window_bounds = array<i64: 8, 8, 128>}, {pipeline_mode = #tpu.pipeline_mode<synchronous>, transform_indices = @transform_1, window_bounds = array<i64: 8, 16>}, {pipeline_mode = #tpu.pipeline_mode<synchronous>, transform_indices = @transform_2, window_bounds = array<i64: 8, 1>}, {pipeline_mode = #tpu.pipeline_mode<synchronous>, transform_indices = @transform_3, window_bounds = array<i64: 16, 128>}, {pipeline_mode = #tpu.pipeline_mode<synchronous>, transform_indices = @transform_4, window_bounds = array<i64: 1, 128>}, {pipeline_mode = #tpu.pipeline_mode<synchronous>, transform_indices = @transform_5, window_bounds = array<i64: 128, 384>}, {pipeline_mode = #tpu.pipeline_mode<synchronous>, transform_indices = @transform_6, window_bounds = array<i64: 128, 768>}, {pipeline_mode = #tpu.pipeline_mode<synchronous>, transform_indices = @transform_7, window_bounds = array<i64: 128, 384>}, {pipeline_mode = #tpu.pipeline_mode<synchronous>, transform_indices = @transform_8, window_bounds = array<i64: 1, 384>}, {pipeline_mode = #tpu.pipeline_mode<synchronous>, transform_indices = @transform_9, window_bounds = array<i64: 1, 128>}, {pipeline_mode = #tpu.pipeline_mode<synchronous>, transform_indices = @transform_10, window_bounds = array<i64: 1, 384>}, {pipeline_mode = #tpu.pipeline_mode<synchronous>, transform_indices = @transform_11, window_bounds = array<i64: 1, 128>}, {transform_indices = @transform_12, window_bounds = array<i64: 8, 8, 128>}]} {
    %c0_i32 = arith.constant 0 : i32
    %0 = arith.cmpi eq, %arg0, %c0_i32 : i32
    %1 = arith.extui %0 : i1 to i32
    %c0_i32_0 = arith.constant 0 : i32
    %2 = arith.cmpi ne, %1, %c0_i32_0 : i32
    scf.if %2 {
      %c0_137 = arith.constant 0 : index
      %c0_138 = arith.constant 0 : index
      %638 = vector.load %arg2[%c0_137, %c0_138] : memref<8x16xf32, #tpu.memory_space<vmem>>, vector<8x16xf32>
      %c0_139 = arith.constant 0 : index
      %c0_140 = arith.constant 0 : index
      %639 = vector.load %arg4[%c0_139, %c0_140] : memref<16x128xf32, #tpu.memory_space<vmem>>, vector<16x128xf32>
      %cst_141 = arith.constant dense<0.000000e+00> : vector<8x128xf32>
      %640 = tpu.matmul %638, %639, %cst_141 {dimension_numbers = #tpu.dot_dimension_numbers<[1], [0], [0], [1], [0, 0, 1, 1], [], []>} : vector<8x16xf32>, vector<16x128xf32>, vector<8x128xf32> -> vector<8x128xf32>
      %c0_142 = arith.constant 0 : index
      %c0_143 = arith.constant 0 : index
      %641 = vector.load %arg5[%c0_142, %c0_143] : memref<1x128xf32, #tpu.memory_space<vmem>>, vector<1x128xf32>
      %642 = vector.broadcast %641 : vector<1x128xf32> to vector<8x128xf32>
      %643 = arith.addf %640, %642 : vector<8x128xf32>
      %c0_144 = arith.constant 0 : index
      %c0_145 = arith.constant 0 : index
      %644 = vector.load %arg14[%c0_144, %c0_145] : memref<8x128xf32, #tpu.memory_space<vmem>>, vector<8x128xf32>
      tpu.vector_store %arg14[%c0_144, %c0_145], %643 {strides = array<i32>} : memref<8x128xf32, #tpu.memory_space<vmem>>, vector<8x128xf32>,
      %c0_146 = arith.constant 0 : index
      %c0_147 = arith.constant 0 : index
      %645 = vector.load %arg15[%c0_146, %c0_147] : memref<8x128xf32, #tpu.memory_space<vmem>>, vector<8x128xf32>
      tpu.vector_store %arg15[%c0_146, %c0_147], %643 {strides = array<i32>} : memref<8x128xf32, #tpu.memory_space<vmem>>, vector<8x128xf32>,
    } else {
    }
    %c0 = arith.constant 0 : index
    %c0_1 = arith.constant 0 : index
    %c0_2 = arith.constant 0 : index
    %3 = vector.load %arg1[%c0, %c0_1, %c0_2] : memref<8x8x128xf32, #tpu.memory_space<vmem>>, vector<8x8x128xf32>
    %4 = vector.shape_cast %3 : vector<8x8x128xf32> to vector<64x128xf32>
    %c0_3 = arith.constant 0 : index
    %c0_4 = arith.constant 0 : index
    %5 = vector.load %arg6[%c0_3, %c0_4] : memref<128x384xf32, #tpu.memory_space<vmem>>, vector<128x384xf32>
    %cst = arith.constant dense<0.000000e+00> : vector<64x384xf32>
    %6 = tpu.matmul %4, %5, %cst {dimension_numbers = #tpu.dot_dimension_numbers<[1], [0], [0], [1], [0, 0, 1, 1], [], []>} : vector<64x128xf32>, vector<128x384xf32>, vector<64x384xf32> -> vector<64x384xf32>
    %7 = vector.shape_cast %6 : vector<64x384xf32> to vector<8x8x384xf32>
    %c0_5 = arith.constant 0 : index
    %c0_6 = arith.constant 0 : index
    %8 = vector.load %arg9[%c0_5, %c0_6] : memref<1x384xf32, #tpu.memory_space<vmem>>, vector<1x384xf32>
    %9 = vector.shape_cast %8 : vector<1x384xf32> to vector<1x1x384xf32>
    %10 = vector.broadcast %9 : vector<1x1x384xf32> to vector<8x8x384xf32>
    %11 = arith.addf %7, %10 : vector<8x8x384xf32>
    %c0_7 = arith.constant 0 : index
    %c0_8 = arith.constant 0 : index
    %c0_9 = arith.constant 0 : index
    %12 = vector.load %arg16[%c0_7, %c0_8, %c0_9] : memref<8x8x384xf32, #tpu.memory_space<vmem>>, vector<8x8x384xf32>
    tpu.vector_store %arg16[%c0_7, %c0_8, %c0_9], %11 {strides = array<i32>} : memref<8x8x384xf32, #tpu.memory_space<vmem>>, vector<8x8x384xf32>,
    %c0_10 = arith.constant 0 : index
    %c0_11 = arith.constant 0 : index
    %13 = vector.load %arg7[%c0_10, %c0_11] : memref<128x768xf32, #tpu.memory_space<vmem>>, vector<128x768xf32>
    %c0_12 = arith.constant 0 : index
    %c0_13 = arith.constant 0 : index
    %14 = vector.load %arg8[%c0_12, %c0_13] : memref<128x384xf32, #tpu.memory_space<vmem>>, vector<128x384xf32>
    %c0_14 = arith.constant 0 : index
    %c0_15 = arith.constant 0 : index
    %15 = vector.load %arg11[%c0_14, %c0_15] : memref<1x384xf32, #tpu.memory_space<vmem>>, vector<1x384xf32>
    %c0_16 = arith.constant 0 : index
    %c0_17 = arith.constant 0 : index
    %16 = vector.load %arg10[%c0_16, %c0_17] : memref<1x128xf32, #tpu.memory_space<vmem>>, vector<1x128xf32>
    %c0_18 = arith.constant 0 : index
    %c0_19 = arith.constant 0 : index
    %17 = vector.load %arg12[%c0_18, %c0_19] : memref<1x128xf32, #tpu.memory_space<vmem>>, vector<1x128xf32>
    %c0_20 = arith.constant 0 : index
    %c0_21 = arith.constant 0 : index
    %18 = vector.load %arg3[%c0_20, %c0_21] : memref<8x1xi32, #tpu.memory_space<vmem>>, vector<8x1xi32>
    %c8_i32 = arith.constant 8 : i32
    %19 = arith.muli %arg0, %c8_i32 : i32
    %c0_22 = arith.constant 0 : index
    %c0_23 = arith.constant 0 : index
    %20 = vector.load %arg14[%c0_22, %c0_23] : memref<8x128xf32, #tpu.memory_space<vmem>>, vector<8x128xf32>
    %c0_24 = arith.constant 0 : index
    %c0_25 = arith.constant 0 : index
    %21 = vector.load %arg15[%c0_24, %c0_25] : memref<8x128xf32, #tpu.memory_space<vmem>>, vector<8x128xf32>
    %cst_26 = arith.constant dense<0.000000e+00> : vector<8x768xf32>
    %22 = tpu.matmul %20, %13, %cst_26 {dimension_numbers = #tpu.dot_dimension_numbers<[1], [0], [0], [1], [0, 0, 1, 1], [], []>} : vector<8x128xf32>, vector<128x768xf32>, vector<8x768xf32> -> vector<8x768xf32>
    %23 = vector.extract_strided_slice %22 {offsets = [0, 0], sizes = [8, 384], strides = [1, 1]} : vector<8x768xf32> to vector<8x384xf32>
    %c0_27 = arith.constant 0 : index
    %c0_28 = arith.constant 0 : index
    %c0_29 = arith.constant 0 : index
    %24 = vector.load %arg16[%c0_27, %c0_28, %c0_29] : memref<8x8x384xf32, #tpu.memory_space<vmem>>, vector<1x8x384xf32>
    %25 = vector.shape_cast %24 : vector<1x8x384xf32> to vector<8x384xf32>
    %26 = vector.extract_strided_slice %25 {offsets = [0, 0], sizes = [8, 128], strides = [1, 1]} : vector<8x384xf32> to vector<8x128xf32>
    %27 = vector.extract_strided_slice %23 {offsets = [0, 0], sizes = [8, 128], strides = [1, 1]} : vector<8x384xf32> to vector<8x128xf32>
    %28 = arith.addf %26, %27 : vector<8x128xf32>
    %29 = arith.negf %28 : vector<8x128xf32>
    %30 = math.exp %29 : vector<8x128xf32>
    %cst_30 = arith.constant 1.000000e+00 : f32
    %31 = vector.broadcast %cst_30 : f32 to vector<8x128xf32>
    %32 = arith.addf %31, %30 : vector<8x128xf32>
    %33 = arith.divf %31, %32 : vector<8x128xf32>
    %34 = vector.extract_strided_slice %25 {offsets = [0, 128], sizes = [8, 128], strides = [1, 1]} : vector<8x384xf32> to vector<8x128xf32>
    %35 = vector.extract_strided_slice %23 {offsets = [0, 128], sizes = [8, 128], strides = [1, 1]} : vector<8x384xf32> to vector<8x128xf32>
    %36 = arith.addf %34, %35 : vector<8x128xf32>
    %37 = arith.negf %36 : vector<8x128xf32>
    %38 = math.exp %37 : vector<8x128xf32>
    %cst_31 = arith.constant 1.000000e+00 : f32
    %39 = vector.broadcast %cst_31 : f32 to vector<8x128xf32>
    %40 = arith.addf %39, %38 : vector<8x128xf32>
    %41 = arith.divf %39, %40 : vector<8x128xf32>
    %42 = vector.extract_strided_slice %25 {offsets = [0, 256], sizes = [8, 128], strides = [1, 1]} : vector<8x384xf32> to vector<8x128xf32>
    %43 = vector.extract_strided_slice %23 {offsets = [0, 256], sizes = [8, 128], strides = [1, 1]} : vector<8x384xf32> to vector<8x128xf32>
    %44 = vector.broadcast %16 : vector<1x128xf32> to vector<8x128xf32>
    %45 = arith.addf %43, %44 : vector<8x128xf32>
    %46 = arith.mulf %33, %45 : vector<8x128xf32>
    %47 = arith.addf %42, %46 : vector<8x128xf32>
    %48 = math.tanh %47 : vector<8x128xf32>
    %cst_32 = arith.constant 1.000000e+00 : f32
    %49 = vector.broadcast %cst_32 : f32 to vector<8x128xf32>
    %50 = arith.subf %49, %41 : vector<8x128xf32>
    %51 = arith.mulf %50, %48 : vector<8x128xf32>
    %52 = arith.mulf %41, %20 : vector<8x128xf32>
    %53 = arith.addf %51, %52 : vector<8x128xf32>
    %c1_i32 = arith.constant 1 : i32
    %cst_33 = arith.constant dense<0.000000e+00> : vector<8x768xf32>
    %54 = tpu.matmul %53, %13, %cst_33 {dimension_numbers = #tpu.dot_dimension_numbers<[1], [0], [0], [1], [0, 0, 1, 1], [], []>} : vector<8x128xf32>, vector<128x768xf32>, vector<8x768xf32> -> vector<8x768xf32>
    %55 = vector.extract_strided_slice %54 {offsets = [0, 0], sizes = [8, 384], strides = [1, 1]} : vector<8x768xf32> to vector<8x384xf32>
    %56 = vector.extract_strided_slice %54 {offsets = [0, 384], sizes = [8, 384], strides = [1, 1]} : vector<8x768xf32> to vector<8x384xf32>
    %57 = vector.broadcast %15 : vector<1x384xf32> to vector<8x384xf32>
    %58 = arith.addf %56, %57 : vector<8x384xf32>
    %cst_34 = arith.constant dense<0.000000e+00> : vector<8x384xf32>
    %59 = tpu.matmul %21, %14, %cst_34 {dimension_numbers = #tpu.dot_dimension_numbers<[1], [0], [0], [1], [0, 0, 1, 1], [], []>} : vector<8x128xf32>, vector<128x384xf32>, vector<8x384xf32> -> vector<8x384xf32>
    %60 = arith.index_cast %c1_i32 : i32 to index
    %c0_35 = arith.constant 0 : index
    %c0_36 = arith.constant 0 : index
    %61 = vector.load %arg16[%60, %c0_35, %c0_36] : memref<8x8x384xf32, #tpu.memory_space<vmem>>, vector<1x8x384xf32>
    %62 = vector.shape_cast %61 : vector<1x8x384xf32> to vector<8x384xf32>
    %63 = vector.extract_strided_slice %62 {offsets = [0, 0], sizes = [8, 128], strides = [1, 1]} : vector<8x384xf32> to vector<8x128xf32>
    %64 = vector.extract_strided_slice %55 {offsets = [0, 0], sizes = [8, 128], strides = [1, 1]} : vector<8x384xf32> to vector<8x128xf32>
    %65 = arith.addf %63, %64 : vector<8x128xf32>
    %66 = arith.negf %65 : vector<8x128xf32>
    %67 = math.exp %66 : vector<8x128xf32>
    %cst_37 = arith.constant 1.000000e+00 : f32
    %68 = vector.broadcast %cst_37 : f32 to vector<8x128xf32>
    %69 = arith.addf %68, %67 : vector<8x128xf32>
    %70 = arith.divf %68, %69 : vector<8x128xf32>
    %71 = vector.extract_strided_slice %62 {offsets = [0, 128], sizes = [8, 128], strides = [1, 1]} : vector<8x384xf32> to vector<8x128xf32>
    %72 = vector.extract_strided_slice %55 {offsets = [0, 128], sizes = [8, 128], strides = [1, 1]} : vector<8x384xf32> to vector<8x128xf32>
    %73 = arith.addf %71, %72 : vector<8x128xf32>
    %74 = arith.negf %73 : vector<8x128xf32>
    %75 = math.exp %74 : vector<8x128xf32>
    %cst_38 = arith.constant 1.000000e+00 : f32
    %76 = vector.broadcast %cst_38 : f32 to vector<8x128xf32>
    %77 = arith.addf %76, %75 : vector<8x128xf32>
    %78 = arith.divf %76, %77 : vector<8x128xf32>
    %79 = vector.extract_strided_slice %62 {offsets = [0, 256], sizes = [8, 128], strides = [1, 1]} : vector<8x384xf32> to vector<8x128xf32>
    %80 = vector.extract_strided_slice %55 {offsets = [0, 256], sizes = [8, 128], strides = [1, 1]} : vector<8x384xf32> to vector<8x128xf32>
    %81 = vector.broadcast %16 : vector<1x128xf32> to vector<8x128xf32>
    %82 = arith.addf %80, %81 : vector<8x128xf32>
    %83 = arith.mulf %70, %82 : vector<8x128xf32>
    %84 = arith.addf %79, %83 : vector<8x128xf32>
    %85 = math.tanh %84 : vector<8x128xf32>
    %cst_39 = arith.constant 1.000000e+00 : f32
    %86 = vector.broadcast %cst_39 : f32 to vector<8x128xf32>
    %87 = arith.subf %86, %78 : vector<8x128xf32>
    %88 = arith.mulf %87, %85 : vector<8x128xf32>
    %89 = arith.mulf %78, %53 : vector<8x128xf32>
    %90 = arith.addf %88, %89 : vector<8x128xf32>
    %91 = vector.extract_strided_slice %58 {offsets = [0, 0], sizes = [8, 128], strides = [1, 1]} : vector<8x384xf32> to vector<8x128xf32>
    %92 = vector.extract_strided_slice %59 {offsets = [0, 0], sizes = [8, 128], strides = [1, 1]} : vector<8x384xf32> to vector<8x128xf32>
    %93 = arith.addf %91, %92 : vector<8x128xf32>
    %94 = arith.negf %93 : vector<8x128xf32>
    %95 = math.exp %94 : vector<8x128xf32>
    %cst_40 = arith.constant 1.000000e+00 : f32
    %96 = vector.broadcast %cst_40 : f32 to vector<8x128xf32>
    %97 = arith.addf %96, %95 : vector<8x128xf32>
    %98 = arith.divf %96, %97 : vector<8x128xf32>
    %99 = vector.extract_strided_slice %58 {offsets = [0, 128], sizes = [8, 128], strides = [1, 1]} : vector<8x384xf32> to vector<8x128xf32>
    %100 = vector.extract_strided_slice %59 {offsets = [0, 128], sizes = [8, 128], strides = [1, 1]} : vector<8x384xf32> to vector<8x128xf32>
    %101 = arith.addf %99, %100 : vector<8x128xf32>
    %102 = arith.negf %101 : vector<8x128xf32>
    %103 = math.exp %102 : vector<8x128xf32>
    %cst_41 = arith.constant 1.000000e+00 : f32
    %104 = vector.broadcast %cst_41 : f32 to vector<8x128xf32>
    %105 = arith.addf %104, %103 : vector<8x128xf32>
    %106 = arith.divf %104, %105 : vector<8x128xf32>
    %107 = vector.extract_strided_slice %58 {offsets = [0, 256], sizes = [8, 128], strides = [1, 1]} : vector<8x384xf32> to vector<8x128xf32>
    %108 = vector.extract_strided_slice %59 {offsets = [0, 256], sizes = [8, 128], strides = [1, 1]} : vector<8x384xf32> to vector<8x128xf32>
    %109 = vector.broadcast %17 : vector<1x128xf32> to vector<8x128xf32>
    %110 = arith.addf %108, %109 : vector<8x128xf32>
    %111 = arith.mulf %98, %110 : vector<8x128xf32>
    %112 = arith.addf %107, %111 : vector<8x128xf32>
    %113 = math.tanh %112 : vector<8x128xf32>
    %cst_42 = arith.constant 1.000000e+00 : f32
    %114 = vector.broadcast %cst_42 : f32 to vector<8x128xf32>
    %115 = arith.subf %114, %106 : vector<8x128xf32>
    %116 = arith.mulf %115, %113 : vector<8x128xf32>
    %117 = arith.mulf %106, %21 : vector<8x128xf32>
    %118 = arith.addf %116, %117 : vector<8x128xf32>
    %c1_i32_43 = arith.constant 1 : i32
    %119 = arith.subi %c1_i32, %c1_i32_43 : i32
    %120 = arith.addi %19, %119 : i32
    %121 = vector.broadcast %120 : i32 to vector<8x1xi32>
    %122 = arith.cmpi slt, %121, %18 : vector<8x1xi32>
    %123 = arith.extui %122 : vector<8x1xi1> to vector<8x1xi32>
    %124 = arith.sitofp %123 : vector<8x1xi32> to vector<8x1xf32>
    %125 = vector.broadcast %124 : vector<8x1xf32> to vector<8x128xf32>
    %126 = arith.mulf %118, %125 : vector<8x128xf32>
    %127 = arith.index_cast %119 : i32 to index
    %c0_44 = arith.constant 0 : index
    %c0_45 = arith.constant 0 : index
    %128 = vector.load %arg13[%127, %c0_44, %c0_45] : memref<8x8x128xf32, #tpu.memory_space<vmem>>, vector<1x8x128xf32>
    %129 = vector.shape_cast %128 : vector<1x8x128xf32> to vector<8x128xf32>
    %130 = vector.shape_cast %126 : vector<8x128xf32> to vector<1x8x128xf32>
    tpu.vector_store %arg13[%127, %c0_44, %c0_45], %130 {strides = array<i32>} : memref<8x8x128xf32, #tpu.memory_space<vmem>>, vector<1x8x128xf32>,
    %c2_i32 = arith.constant 2 : i32
    %cst_46 = arith.constant dense<0.000000e+00> : vector<8x768xf32>
    %131 = tpu.matmul %90, %13, %cst_46 {dimension_numbers = #tpu.dot_dimension_numbers<[1], [0], [0], [1], [0, 0, 1, 1], [], []>} : vector<8x128xf32>, vector<128x768xf32>, vector<8x768xf32> -> vector<8x768xf32>
    %132 = vector.extract_strided_slice %131 {offsets = [0, 0], sizes = [8, 384], strides = [1, 1]} : vector<8x768xf32> to vector<8x384xf32>
    %133 = vector.extract_strided_slice %131 {offsets = [0, 384], sizes = [8, 384], strides = [1, 1]} : vector<8x768xf32> to vector<8x384xf32>
    %134 = vector.broadcast %15 : vector<1x384xf32> to vector<8x384xf32>
    %135 = arith.addf %133, %134 : vector<8x384xf32>
    %cst_47 = arith.constant dense<0.000000e+00> : vector<8x384xf32>
    %136 = tpu.matmul %118, %14, %cst_47 {dimension_numbers = #tpu.dot_dimension_numbers<[1], [0], [0], [1], [0, 0, 1, 1], [], []>} : vector<8x128xf32>, vector<128x384xf32>, vector<8x384xf32> -> vector<8x384xf32>
    %137 = arith.index_cast %c2_i32 : i32 to index
    %c0_48 = arith.constant 0 : index
    %c0_49 = arith.constant 0 : index
    %138 = vector.load %arg16[%137, %c0_48, %c0_49] : memref<8x8x384xf32, #tpu.memory_space<vmem>>, vector<1x8x384xf32>
    %139 = vector.shape_cast %138 : vector<1x8x384xf32> to vector<8x384xf32>
    %140 = vector.extract_strided_slice %139 {offsets = [0, 0], sizes = [8, 128], strides = [1, 1]} : vector<8x384xf32> to vector<8x128xf32>
    %141 = vector.extract_strided_slice %132 {offsets = [0, 0], sizes = [8, 128], strides = [1, 1]} : vector<8x384xf32> to vector<8x128xf32>
    %142 = arith.addf %140, %141 : vector<8x128xf32>
    %143 = arith.negf %142 : vector<8x128xf32>
    %144 = math.exp %143 : vector<8x128xf32>
    %cst_50 = arith.constant 1.000000e+00 : f32
    %145 = vector.broadcast %cst_50 : f32 to vector<8x128xf32>
    %146 = arith.addf %145, %144 : vector<8x128xf32>
    %147 = arith.divf %145, %146 : vector<8x128xf32>
    %148 = vector.extract_strided_slice %139 {offsets = [0, 128], sizes = [8, 128], strides = [1, 1]} : vector<8x384xf32> to vector<8x128xf32>
    %149 = vector.extract_strided_slice %132 {offsets = [0, 128], sizes = [8, 128], strides = [1, 1]} : vector<8x384xf32> to vector<8x128xf32>
    %150 = arith.addf %148, %149 : vector<8x128xf32>
    %151 = arith.negf %150 : vector<8x128xf32>
    %152 = math.exp %151 : vector<8x128xf32>
    %cst_51 = arith.constant 1.000000e+00 : f32
    %153 = vector.broadcast %cst_51 : f32 to vector<8x128xf32>
    %154 = arith.addf %153, %152 : vector<8x128xf32>
    %155 = arith.divf %153, %154 : vector<8x128xf32>
    %156 = vector.extract_strided_slice %139 {offsets = [0, 256], sizes = [8, 128], strides = [1, 1]} : vector<8x384xf32> to vector<8x128xf32>
    %157 = vector.extract_strided_slice %132 {offsets = [0, 256], sizes = [8, 128], strides = [1, 1]} : vector<8x384xf32> to vector<8x128xf32>
    %158 = vector.broadcast %16 : vector<1x128xf32> to vector<8x128xf32>
    %159 = arith.addf %157, %158 : vector<8x128xf32>
    %160 = arith.mulf %147, %159 : vector<8x128xf32>
    %161 = arith.addf %156, %160 : vector<8x128xf32>
    %162 = math.tanh %161 : vector<8x128xf32>
    %cst_52 = arith.constant 1.000000e+00 : f32
    %163 = vector.broadcast %cst_52 : f32 to vector<8x128xf32>
    %164 = arith.subf %163, %155 : vector<8x128xf32>
    %165 = arith.mulf %164, %162 : vector<8x128xf32>
    %166 = arith.mulf %155, %90 : vector<8x128xf32>
    %167 = arith.addf %165, %166 : vector<8x128xf32>
    %168 = vector.extract_strided_slice %135 {offsets = [0, 0], sizes = [8, 128], strides = [1, 1]} : vector<8x384xf32> to vector<8x128xf32>
    %169 = vector.extract_strided_slice %136 {offsets = [0, 0], sizes = [8, 128], strides = [1, 1]} : vector<8x384xf32> to vector<8x128xf32>
    %170 = arith.addf %168, %169 : vector<8x128xf32>
    %171 = arith.negf %170 : vector<8x128xf32>
    %172 = math.exp %171 : vector<8x128xf32>
    %cst_53 = arith.constant 1.000000e+00 : f32
    %173 = vector.broadcast %cst_53 : f32 to vector<8x128xf32>
    %174 = arith.addf %173, %172 : vector<8x128xf32>
    %175 = arith.divf %173, %174 : vector<8x128xf32>
    %176 = vector.extract_strided_slice %135 {offsets = [0, 128], sizes = [8, 128], strides = [1, 1]} : vector<8x384xf32> to vector<8x128xf32>
    %177 = vector.extract_strided_slice %136 {offsets = [0, 128], sizes = [8, 128], strides = [1, 1]} : vector<8x384xf32> to vector<8x128xf32>
    %178 = arith.addf %176, %177 : vector<8x128xf32>
    %179 = arith.negf %178 : vector<8x128xf32>
    %180 = math.exp %179 : vector<8x128xf32>
    %cst_54 = arith.constant 1.000000e+00 : f32
    %181 = vector.broadcast %cst_54 : f32 to vector<8x128xf32>
    %182 = arith.addf %181, %180 : vector<8x128xf32>
    %183 = arith.divf %181, %182 : vector<8x128xf32>
    %184 = vector.extract_strided_slice %135 {offsets = [0, 256], sizes = [8, 128], strides = [1, 1]} : vector<8x384xf32> to vector<8x128xf32>
    %185 = vector.extract_strided_slice %136 {offsets = [0, 256], sizes = [8, 128], strides = [1, 1]} : vector<8x384xf32> to vector<8x128xf32>
    %186 = vector.broadcast %17 : vector<1x128xf32> to vector<8x128xf32>
    %187 = arith.addf %185, %186 : vector<8x128xf32>
    %188 = arith.mulf %175, %187 : vector<8x128xf32>
    %189 = arith.addf %184, %188 : vector<8x128xf32>
    %190 = math.tanh %189 : vector<8x128xf32>
    %cst_55 = arith.constant 1.000000e+00 : f32
    %191 = vector.broadcast %cst_55 : f32 to vector<8x128xf32>
    %192 = arith.subf %191, %183 : vector<8x128xf32>
    %193 = arith.mulf %192, %190 : vector<8x128xf32>
    %194 = arith.mulf %183, %118 : vector<8x128xf32>
    %195 = arith.addf %193, %194 : vector<8x128xf32>
    %c1_i32_56 = arith.constant 1 : i32
    %196 = arith.subi %c2_i32, %c1_i32_56 : i32
    %197 = arith.addi %19, %196 : i32
    %198 = vector.broadcast %197 : i32 to vector<8x1xi32>
    %199 = arith.cmpi slt, %198, %18 : vector<8x1xi32>
    %200 = arith.extui %199 : vector<8x1xi1> to vector<8x1xi32>
    %201 = arith.sitofp %200 : vector<8x1xi32> to vector<8x1xf32>
    %202 = vector.broadcast %201 : vector<8x1xf32> to vector<8x128xf32>
    %203 = arith.mulf %195, %202 : vector<8x128xf32>
    %204 = arith.index_cast %196 : i32 to index
    %c0_57 = arith.constant 0 : index
    %c0_58 = arith.constant 0 : index
    %205 = vector.load %arg13[%204, %c0_57, %c0_58] : memref<8x8x128xf32, #tpu.memory_space<vmem>>, vector<1x8x128xf32>
    %206 = vector.shape_cast %205 : vector<1x8x128xf32> to vector<8x128xf32>
    %207 = vector.shape_cast %203 : vector<8x128xf32> to vector<1x8x128xf32>
    tpu.vector_store %arg13[%204, %c0_57, %c0_58], %207 {strides = array<i32>} : memref<8x8x128xf32, #tpu.memory_space<vmem>>, vector<1x8x128xf32>,
    %c3_i32 = arith.constant 3 : i32
    %cst_59 = arith.constant dense<0.000000e+00> : vector<8x768xf32>
    %208 = tpu.matmul %167, %13, %cst_59 {dimension_numbers = #tpu.dot_dimension_numbers<[1], [0], [0], [1], [0, 0, 1, 1], [], []>} : vector<8x128xf32>, vector<128x768xf32>, vector<8x768xf32> -> vector<8x768xf32>
    %209 = vector.extract_strided_slice %208 {offsets = [0, 0], sizes = [8, 384], strides = [1, 1]} : vector<8x768xf32> to vector<8x384xf32>
    %210 = vector.extract_strided_slice %208 {offsets = [0, 384], sizes = [8, 384], strides = [1, 1]} : vector<8x768xf32> to vector<8x384xf32>
    %211 = vector.broadcast %15 : vector<1x384xf32> to vector<8x384xf32>
    %212 = arith.addf %210, %211 : vector<8x384xf32>
    %cst_60 = arith.constant dense<0.000000e+00> : vector<8x384xf32>
    %213 = tpu.matmul %195, %14, %cst_60 {dimension_numbers = #tpu.dot_dimension_numbers<[1], [0], [0], [1], [0, 0, 1, 1], [], []>} : vector<8x128xf32>, vector<128x384xf32>, vector<8x384xf32> -> vector<8x384xf32>
    %214 = arith.index_cast %c3_i32 : i32 to index
    %c0_61 = arith.constant 0 : index
    %c0_62 = arith.constant 0 : index
    %215 = vector.load %arg16[%214, %c0_61, %c0_62] : memref<8x8x384xf32, #tpu.memory_space<vmem>>, vector<1x8x384xf32>
    %216 = vector.shape_cast %215 : vector<1x8x384xf32> to vector<8x384xf32>
    %217 = vector.extract_strided_slice %216 {offsets = [0, 0], sizes = [8, 128], strides = [1, 1]} : vector<8x384xf32> to vector<8x128xf32>
    %218 = vector.extract_strided_slice %209 {offsets = [0, 0], sizes = [8, 128], strides = [1, 1]} : vector<8x384xf32> to vector<8x128xf32>
    %219 = arith.addf %217, %218 : vector<8x128xf32>
    %220 = arith.negf %219 : vector<8x128xf32>
    %221 = math.exp %220 : vector<8x128xf32>
    %cst_63 = arith.constant 1.000000e+00 : f32
    %222 = vector.broadcast %cst_63 : f32 to vector<8x128xf32>
    %223 = arith.addf %222, %221 : vector<8x128xf32>
    %224 = arith.divf %222, %223 : vector<8x128xf32>
    %225 = vector.extract_strided_slice %216 {offsets = [0, 128], sizes = [8, 128], strides = [1, 1]} : vector<8x384xf32> to vector<8x128xf32>
    %226 = vector.extract_strided_slice %209 {offsets = [0, 128], sizes = [8, 128], strides = [1, 1]} : vector<8x384xf32> to vector<8x128xf32>
    %227 = arith.addf %225, %226 : vector<8x128xf32>
    %228 = arith.negf %227 : vector<8x128xf32>
    %229 = math.exp %228 : vector<8x128xf32>
    %cst_64 = arith.constant 1.000000e+00 : f32
    %230 = vector.broadcast %cst_64 : f32 to vector<8x128xf32>
    %231 = arith.addf %230, %229 : vector<8x128xf32>
    %232 = arith.divf %230, %231 : vector<8x128xf32>
    %233 = vector.extract_strided_slice %216 {offsets = [0, 256], sizes = [8, 128], strides = [1, 1]} : vector<8x384xf32> to vector<8x128xf32>
    %234 = vector.extract_strided_slice %209 {offsets = [0, 256], sizes = [8, 128], strides = [1, 1]} : vector<8x384xf32> to vector<8x128xf32>
    %235 = vector.broadcast %16 : vector<1x128xf32> to vector<8x128xf32>
    %236 = arith.addf %234, %235 : vector<8x128xf32>
    %237 = arith.mulf %224, %236 : vector<8x128xf32>
    %238 = arith.addf %233, %237 : vector<8x128xf32>
    %239 = math.tanh %238 : vector<8x128xf32>
    %cst_65 = arith.constant 1.000000e+00 : f32
    %240 = vector.broadcast %cst_65 : f32 to vector<8x128xf32>
    %241 = arith.subf %240, %232 : vector<8x128xf32>
    %242 = arith.mulf %241, %239 : vector<8x128xf32>
    %243 = arith.mulf %232, %167 : vector<8x128xf32>
    %244 = arith.addf %242, %243 : vector<8x128xf32>
    %245 = vector.extract_strided_slice %212 {offsets = [0, 0], sizes = [8, 128], strides = [1, 1]} : vector<8x384xf32> to vector<8x128xf32>
    %246 = vector.extract_strided_slice %213 {offsets = [0, 0], sizes = [8, 128], strides = [1, 1]} : vector<8x384xf32> to vector<8x128xf32>
    %247 = arith.addf %245, %246 : vector<8x128xf32>
    %248 = arith.negf %247 : vector<8x128xf32>
    %249 = math.exp %248 : vector<8x128xf32>
    %cst_66 = arith.constant 1.000000e+00 : f32
    %250 = vector.broadcast %cst_66 : f32 to vector<8x128xf32>
    %251 = arith.addf %250, %249 : vector<8x128xf32>
    %252 = arith.divf %250, %251 : vector<8x128xf32>
    %253 = vector.extract_strided_slice %212 {offsets = [0, 128], sizes = [8, 128], strides = [1, 1]} : vector<8x384xf32> to vector<8x128xf32>
    %254 = vector.extract_strided_slice %213 {offsets = [0, 128], sizes = [8, 128], strides = [1, 1]} : vector<8x384xf32> to vector<8x128xf32>
    %255 = arith.addf %253, %254 : vector<8x128xf32>
    %256 = arith.negf %255 : vector<8x128xf32>
    %257 = math.exp %256 : vector<8x128xf32>
    %cst_67 = arith.constant 1.000000e+00 : f32
    %258 = vector.broadcast %cst_67 : f32 to vector<8x128xf32>
    %259 = arith.addf %258, %257 : vector<8x128xf32>
    %260 = arith.divf %258, %259 : vector<8x128xf32>
    %261 = vector.extract_strided_slice %212 {offsets = [0, 256], sizes = [8, 128], strides = [1, 1]} : vector<8x384xf32> to vector<8x128xf32>
    %262 = vector.extract_strided_slice %213 {offsets = [0, 256], sizes = [8, 128], strides = [1, 1]} : vector<8x384xf32> to vector<8x128xf32>
    %263 = vector.broadcast %17 : vector<1x128xf32> to vector<8x128xf32>
    %264 = arith.addf %262, %263 : vector<8x128xf32>
    %265 = arith.mulf %252, %264 : vector<8x128xf32>
    %266 = arith.addf %261, %265 : vector<8x128xf32>
    %267 = math.tanh %266 : vector<8x128xf32>
    %cst_68 = arith.constant 1.000000e+00 : f32
    %268 = vector.broadcast %cst_68 : f32 to vector<8x128xf32>
    %269 = arith.subf %268, %260 : vector<8x128xf32>
    %270 = arith.mulf %269, %267 : vector<8x128xf32>
    %271 = arith.mulf %260, %195 : vector<8x128xf32>
    %272 = arith.addf %270, %271 : vector<8x128xf32>
    %c1_i32_69 = arith.constant 1 : i32
    %273 = arith.subi %c3_i32, %c1_i32_69 : i32
    %274 = arith.addi %19, %273 : i32
    %275 = vector.broadcast %274 : i32 to vector<8x1xi32>
    %276 = arith.cmpi slt, %275, %18 : vector<8x1xi32>
    %277 = arith.extui %276 : vector<8x1xi1> to vector<8x1xi32>
    %278 = arith.sitofp %277 : vector<8x1xi32> to vector<8x1xf32>
    %279 = vector.broadcast %278 : vector<8x1xf32> to vector<8x128xf32>
    %280 = arith.mulf %272, %279 : vector<8x128xf32>
    %281 = arith.index_cast %273 : i32 to index
    %c0_70 = arith.constant 0 : index
    %c0_71 = arith.constant 0 : index
    %282 = vector.load %arg13[%281, %c0_70, %c0_71] : memref<8x8x128xf32, #tpu.memory_space<vmem>>, vector<1x8x128xf32>
    %283 = vector.shape_cast %282 : vector<1x8x128xf32> to vector<8x128xf32>
    %284 = vector.shape_cast %280 : vector<8x128xf32> to vector<1x8x128xf32>
    tpu.vector_store %arg13[%281, %c0_70, %c0_71], %284 {strides = array<i32>} : memref<8x8x128xf32, #tpu.memory_space<vmem>>, vector<1x8x128xf32>,
    %c4_i32 = arith.constant 4 : i32
    %cst_72 = arith.constant dense<0.000000e+00> : vector<8x768xf32>
    %285 = tpu.matmul %244, %13, %cst_72 {dimension_numbers = #tpu.dot_dimension_numbers<[1], [0], [0], [1], [0, 0, 1, 1], [], []>} : vector<8x128xf32>, vector<128x768xf32>, vector<8x768xf32> -> vector<8x768xf32>
    %286 = vector.extract_strided_slice %285 {offsets = [0, 0], sizes = [8, 384], strides = [1, 1]} : vector<8x768xf32> to vector<8x384xf32>
    %287 = vector.extract_strided_slice %285 {offsets = [0, 384], sizes = [8, 384], strides = [1, 1]} : vector<8x768xf32> to vector<8x384xf32>
    %288 = vector.broadcast %15 : vector<1x384xf32> to vector<8x384xf32>
    %289 = arith.addf %287, %288 : vector<8x384xf32>
    %cst_73 = arith.constant dense<0.000000e+00> : vector<8x384xf32>
    %290 = tpu.matmul %272, %14, %cst_73 {dimension_numbers = #tpu.dot_dimension_numbers<[1], [0], [0], [1], [0, 0, 1, 1], [], []>} : vector<8x128xf32>, vector<128x384xf32>, vector<8x384xf32> -> vector<8x384xf32>
    %291 = arith.index_cast %c4_i32 : i32 to index
    %c0_74 = arith.constant 0 : index
    %c0_75 = arith.constant 0 : index
    %292 = vector.load %arg16[%291, %c0_74, %c0_75] : memref<8x8x384xf32, #tpu.memory_space<vmem>>, vector<1x8x384xf32>
    %293 = vector.shape_cast %292 : vector<1x8x384xf32> to vector<8x384xf32>
    %294 = vector.extract_strided_slice %293 {offsets = [0, 0], sizes = [8, 128], strides = [1, 1]} : vector<8x384xf32> to vector<8x128xf32>
    %295 = vector.extract_strided_slice %286 {offsets = [0, 0], sizes = [8, 128], strides = [1, 1]} : vector<8x384xf32> to vector<8x128xf32>
    %296 = arith.addf %294, %295 : vector<8x128xf32>
    %297 = arith.negf %296 : vector<8x128xf32>
    %298 = math.exp %297 : vector<8x128xf32>
    %cst_76 = arith.constant 1.000000e+00 : f32
    %299 = vector.broadcast %cst_76 : f32 to vector<8x128xf32>
    %300 = arith.addf %299, %298 : vector<8x128xf32>
    %301 = arith.divf %299, %300 : vector<8x128xf32>
    %302 = vector.extract_strided_slice %293 {offsets = [0, 128], sizes = [8, 128], strides = [1, 1]} : vector<8x384xf32> to vector<8x128xf32>
    %303 = vector.extract_strided_slice %286 {offsets = [0, 128], sizes = [8, 128], strides = [1, 1]} : vector<8x384xf32> to vector<8x128xf32>
    %304 = arith.addf %302, %303 : vector<8x128xf32>
    %305 = arith.negf %304 : vector<8x128xf32>
    %306 = math.exp %305 : vector<8x128xf32>
    %cst_77 = arith.constant 1.000000e+00 : f32
    %307 = vector.broadcast %cst_77 : f32 to vector<8x128xf32>
    %308 = arith.addf %307, %306 : vector<8x128xf32>
    %309 = arith.divf %307, %308 : vector<8x128xf32>
    %310 = vector.extract_strided_slice %293 {offsets = [0, 256], sizes = [8, 128], strides = [1, 1]} : vector<8x384xf32> to vector<8x128xf32>
    %311 = vector.extract_strided_slice %286 {offsets = [0, 256], sizes = [8, 128], strides = [1, 1]} : vector<8x384xf32> to vector<8x128xf32>
    %312 = vector.broadcast %16 : vector<1x128xf32> to vector<8x128xf32>
    %313 = arith.addf %311, %312 : vector<8x128xf32>
    %314 = arith.mulf %301, %313 : vector<8x128xf32>
    %315 = arith.addf %310, %314 : vector<8x128xf32>
    %316 = math.tanh %315 : vector<8x128xf32>
    %cst_78 = arith.constant 1.000000e+00 : f32
    %317 = vector.broadcast %cst_78 : f32 to vector<8x128xf32>
    %318 = arith.subf %317, %309 : vector<8x128xf32>
    %319 = arith.mulf %318, %316 : vector<8x128xf32>
    %320 = arith.mulf %309, %244 : vector<8x128xf32>
    %321 = arith.addf %319, %320 : vector<8x128xf32>
    %322 = vector.extract_strided_slice %289 {offsets = [0, 0], sizes = [8, 128], strides = [1, 1]} : vector<8x384xf32> to vector<8x128xf32>
    %323 = vector.extract_strided_slice %290 {offsets = [0, 0], sizes = [8, 128], strides = [1, 1]} : vector<8x384xf32> to vector<8x128xf32>
    %324 = arith.addf %322, %323 : vector<8x128xf32>
    %325 = arith.negf %324 : vector<8x128xf32>
    %326 = math.exp %325 : vector<8x128xf32>
    %cst_79 = arith.constant 1.000000e+00 : f32
    %327 = vector.broadcast %cst_79 : f32 to vector<8x128xf32>
    %328 = arith.addf %327, %326 : vector<8x128xf32>
    %329 = arith.divf %327, %328 : vector<8x128xf32>
    %330 = vector.extract_strided_slice %289 {offsets = [0, 128], sizes = [8, 128], strides = [1, 1]} : vector<8x384xf32> to vector<8x128xf32>
    %331 = vector.extract_strided_slice %290 {offsets = [0, 128], sizes = [8, 128], strides = [1, 1]} : vector<8x384xf32> to vector<8x128xf32>
    %332 = arith.addf %330, %331 : vector<8x128xf32>
    %333 = arith.negf %332 : vector<8x128xf32>
    %334 = math.exp %333 : vector<8x128xf32>
    %cst_80 = arith.constant 1.000000e+00 : f32
    %335 = vector.broadcast %cst_80 : f32 to vector<8x128xf32>
    %336 = arith.addf %335, %334 : vector<8x128xf32>
    %337 = arith.divf %335, %336 : vector<8x128xf32>
    %338 = vector.extract_strided_slice %289 {offsets = [0, 256], sizes = [8, 128], strides = [1, 1]} : vector<8x384xf32> to vector<8x128xf32>
    %339 = vector.extract_strided_slice %290 {offsets = [0, 256], sizes = [8, 128], strides = [1, 1]} : vector<8x384xf32> to vector<8x128xf32>
    %340 = vector.broadcast %17 : vector<1x128xf32> to vector<8x128xf32>
    %341 = arith.addf %339, %340 : vector<8x128xf32>
    %342 = arith.mulf %329, %341 : vector<8x128xf32>
    %343 = arith.addf %338, %342 : vector<8x128xf32>
    %344 = math.tanh %343 : vector<8x128xf32>
    %cst_81 = arith.constant 1.000000e+00 : f32
    %345 = vector.broadcast %cst_81 : f32 to vector<8x128xf32>
    %346 = arith.subf %345, %337 : vector<8x128xf32>
    %347 = arith.mulf %346, %344 : vector<8x128xf32>
    %348 = arith.mulf %337, %272 : vector<8x128xf32>
    %349 = arith.addf %347, %348 : vector<8x128xf32>
    %c1_i32_82 = arith.constant 1 : i32
    %350 = arith.subi %c4_i32, %c1_i32_82 : i32
    %351 = arith.addi %19, %350 : i32
    %352 = vector.broadcast %351 : i32 to vector<8x1xi32>
    %353 = arith.cmpi slt, %352, %18 : vector<8x1xi32>
    %354 = arith.extui %353 : vector<8x1xi1> to vector<8x1xi32>
    %355 = arith.sitofp %354 : vector<8x1xi32> to vector<8x1xf32>
    %356 = vector.broadcast %355 : vector<8x1xf32> to vector<8x128xf32>
    %357 = arith.mulf %349, %356 : vector<8x128xf32>
    %358 = arith.index_cast %350 : i32 to index
    %c0_83 = arith.constant 0 : index
    %c0_84 = arith.constant 0 : index
    %359 = vector.load %arg13[%358, %c0_83, %c0_84] : memref<8x8x128xf32, #tpu.memory_space<vmem>>, vector<1x8x128xf32>
    %360 = vector.shape_cast %359 : vector<1x8x128xf32> to vector<8x128xf32>
    %361 = vector.shape_cast %357 : vector<8x128xf32> to vector<1x8x128xf32>
    tpu.vector_store %arg13[%358, %c0_83, %c0_84], %361 {strides = array<i32>} : memref<8x8x128xf32, #tpu.memory_space<vmem>>, vector<1x8x128xf32>,
    %c5_i32 = arith.constant 5 : i32
    %cst_85 = arith.constant dense<0.000000e+00> : vector<8x768xf32>
    %362 = tpu.matmul %321, %13, %cst_85 {dimension_numbers = #tpu.dot_dimension_numbers<[1], [0], [0], [1], [0, 0, 1, 1], [], []>} : vector<8x128xf32>, vector<128x768xf32>, vector<8x768xf32> -> vector<8x768xf32>
    %363 = vector.extract_strided_slice %362 {offsets = [0, 0], sizes = [8, 384], strides = [1, 1]} : vector<8x768xf32> to vector<8x384xf32>
    %364 = vector.extract_strided_slice %362 {offsets = [0, 384], sizes = [8, 384], strides = [1, 1]} : vector<8x768xf32> to vector<8x384xf32>
    %365 = vector.broadcast %15 : vector<1x384xf32> to vector<8x384xf32>
    %366 = arith.addf %364, %365 : vector<8x384xf32>
    %cst_86 = arith.constant dense<0.000000e+00> : vector<8x384xf32>
    %367 = tpu.matmul %349, %14, %cst_86 {dimension_numbers = #tpu.dot_dimension_numbers<[1], [0], [0], [1], [0, 0, 1, 1], [], []>} : vector<8x128xf32>, vector<128x384xf32>, vector<8x384xf32> -> vector<8x384xf32>
    %368 = arith.index_cast %c5_i32 : i32 to index
    %c0_87 = arith.constant 0 : index
    %c0_88 = arith.constant 0 : index
    %369 = vector.load %arg16[%368, %c0_87, %c0_88] : memref<8x8x384xf32, #tpu.memory_space<vmem>>, vector<1x8x384xf32>
    %370 = vector.shape_cast %369 : vector<1x8x384xf32> to vector<8x384xf32>
    %371 = vector.extract_strided_slice %370 {offsets = [0, 0], sizes = [8, 128], strides = [1, 1]} : vector<8x384xf32> to vector<8x128xf32>
    %372 = vector.extract_strided_slice %363 {offsets = [0, 0], sizes = [8, 128], strides = [1, 1]} : vector<8x384xf32> to vector<8x128xf32>
    %373 = arith.addf %371, %372 : vector<8x128xf32>
    %374 = arith.negf %373 : vector<8x128xf32>
    %375 = math.exp %374 : vector<8x128xf32>
    %cst_89 = arith.constant 1.000000e+00 : f32
    %376 = vector.broadcast %cst_89 : f32 to vector<8x128xf32>
    %377 = arith.addf %376, %375 : vector<8x128xf32>
    %378 = arith.divf %376, %377 : vector<8x128xf32>
    %379 = vector.extract_strided_slice %370 {offsets = [0, 128], sizes = [8, 128], strides = [1, 1]} : vector<8x384xf32> to vector<8x128xf32>
    %380 = vector.extract_strided_slice %363 {offsets = [0, 128], sizes = [8, 128], strides = [1, 1]} : vector<8x384xf32> to vector<8x128xf32>
    %381 = arith.addf %379, %380 : vector<8x128xf32>
    %382 = arith.negf %381 : vector<8x128xf32>
    %383 = math.exp %382 : vector<8x128xf32>
    %cst_90 = arith.constant 1.000000e+00 : f32
    %384 = vector.broadcast %cst_90 : f32 to vector<8x128xf32>
    %385 = arith.addf %384, %383 : vector<8x128xf32>
    %386 = arith.divf %384, %385 : vector<8x128xf32>
    %387 = vector.extract_strided_slice %370 {offsets = [0, 256], sizes = [8, 128], strides = [1, 1]} : vector<8x384xf32> to vector<8x128xf32>
    %388 = vector.extract_strided_slice %363 {offsets = [0, 256], sizes = [8, 128], strides = [1, 1]} : vector<8x384xf32> to vector<8x128xf32>
    %389 = vector.broadcast %16 : vector<1x128xf32> to vector<8x128xf32>
    %390 = arith.addf %388, %389 : vector<8x128xf32>
    %391 = arith.mulf %378, %390 : vector<8x128xf32>
    %392 = arith.addf %387, %391 : vector<8x128xf32>
    %393 = math.tanh %392 : vector<8x128xf32>
    %cst_91 = arith.constant 1.000000e+00 : f32
    %394 = vector.broadcast %cst_91 : f32 to vector<8x128xf32>
    %395 = arith.subf %394, %386 : vector<8x128xf32>
    %396 = arith.mulf %395, %393 : vector<8x128xf32>
    %397 = arith.mulf %386, %321 : vector<8x128xf32>
    %398 = arith.addf %396, %397 : vector<8x128xf32>
    %399 = vector.extract_strided_slice %366 {offsets = [0, 0], sizes = [8, 128], strides = [1, 1]} : vector<8x384xf32> to vector<8x128xf32>
    %400 = vector.extract_strided_slice %367 {offsets = [0, 0], sizes = [8, 128], strides = [1, 1]} : vector<8x384xf32> to vector<8x128xf32>
    %401 = arith.addf %399, %400 : vector<8x128xf32>
    %402 = arith.negf %401 : vector<8x128xf32>
    %403 = math.exp %402 : vector<8x128xf32>
    %cst_92 = arith.constant 1.000000e+00 : f32
    %404 = vector.broadcast %cst_92 : f32 to vector<8x128xf32>
    %405 = arith.addf %404, %403 : vector<8x128xf32>
    %406 = arith.divf %404, %405 : vector<8x128xf32>
    %407 = vector.extract_strided_slice %366 {offsets = [0, 128], sizes = [8, 128], strides = [1, 1]} : vector<8x384xf32> to vector<8x128xf32>
    %408 = vector.extract_strided_slice %367 {offsets = [0, 128], sizes = [8, 128], strides = [1, 1]} : vector<8x384xf32> to vector<8x128xf32>
    %409 = arith.addf %407, %408 : vector<8x128xf32>
    %410 = arith.negf %409 : vector<8x128xf32>
    %411 = math.exp %410 : vector<8x128xf32>
    %cst_93 = arith.constant 1.000000e+00 : f32
    %412 = vector.broadcast %cst_93 : f32 to vector<8x128xf32>
    %413 = arith.addf %412, %411 : vector<8x128xf32>
    %414 = arith.divf %412, %413 : vector<8x128xf32>
    %415 = vector.extract_strided_slice %366 {offsets = [0, 256], sizes = [8, 128], strides = [1, 1]} : vector<8x384xf32> to vector<8x128xf32>
    %416 = vector.extract_strided_slice %367 {offsets = [0, 256], sizes = [8, 128], strides = [1, 1]} : vector<8x384xf32> to vector<8x128xf32>
    %417 = vector.broadcast %17 : vector<1x128xf32> to vector<8x128xf32>
    %418 = arith.addf %416, %417 : vector<8x128xf32>
    %419 = arith.mulf %406, %418 : vector<8x128xf32>
    %420 = arith.addf %415, %419 : vector<8x128xf32>
    %421 = math.tanh %420 : vector<8x128xf32>
    %cst_94 = arith.constant 1.000000e+00 : f32
    %422 = vector.broadcast %cst_94 : f32 to vector<8x128xf32>
    %423 = arith.subf %422, %414 : vector<8x128xf32>
    %424 = arith.mulf %423, %421 : vector<8x128xf32>
    %425 = arith.mulf %414, %349 : vector<8x128xf32>
    %426 = arith.addf %424, %425 : vector<8x128xf32>
    %c1_i32_95 = arith.constant 1 : i32
    %427 = arith.subi %c5_i32, %c1_i32_95 : i32
    %428 = arith.addi %19, %427 : i32
    %429 = vector.broadcast %428 : i32 to vector<8x1xi32>
    %430 = arith.cmpi slt, %429, %18 : vector<8x1xi32>
    %431 = arith.extui %430 : vector<8x1xi1> to vector<8x1xi32>
    %432 = arith.sitofp %431 : vector<8x1xi32> to vector<8x1xf32>
    %433 = vector.broadcast %432 : vector<8x1xf32> to vector<8x128xf32>
    %434 = arith.mulf %426, %433 : vector<8x128xf32>
    %435 = arith.index_cast %427 : i32 to index
    %c0_96 = arith.constant 0 : index
    %c0_97 = arith.constant 0 : index
    %436 = vector.load %arg13[%435, %c0_96, %c0_97] : memref<8x8x128xf32, #tpu.memory_space<vmem>>, vector<1x8x128xf32>
    %437 = vector.shape_cast %436 : vector<1x8x128xf32> to vector<8x128xf32>
    %438 = vector.shape_cast %434 : vector<8x128xf32> to vector<1x8x128xf32>
    tpu.vector_store %arg13[%435, %c0_96, %c0_97], %438 {strides = array<i32>} : memref<8x8x128xf32, #tpu.memory_space<vmem>>, vector<1x8x128xf32>,
    %c6_i32 = arith.constant 6 : i32
    %cst_98 = arith.constant dense<0.000000e+00> : vector<8x768xf32>
    %439 = tpu.matmul %398, %13, %cst_98 {dimension_numbers = #tpu.dot_dimension_numbers<[1], [0], [0], [1], [0, 0, 1, 1], [], []>} : vector<8x128xf32>, vector<128x768xf32>, vector<8x768xf32> -> vector<8x768xf32>
    %440 = vector.extract_strided_slice %439 {offsets = [0, 0], sizes = [8, 384], strides = [1, 1]} : vector<8x768xf32> to vector<8x384xf32>
    %441 = vector.extract_strided_slice %439 {offsets = [0, 384], sizes = [8, 384], strides = [1, 1]} : vector<8x768xf32> to vector<8x384xf32>
    %442 = vector.broadcast %15 : vector<1x384xf32> to vector<8x384xf32>
    %443 = arith.addf %441, %442 : vector<8x384xf32>
    %cst_99 = arith.constant dense<0.000000e+00> : vector<8x384xf32>
    %444 = tpu.matmul %426, %14, %cst_99 {dimension_numbers = #tpu.dot_dimension_numbers<[1], [0], [0], [1], [0, 0, 1, 1], [], []>} : vector<8x128xf32>, vector<128x384xf32>, vector<8x384xf32> -> vector<8x384xf32>
    %445 = arith.index_cast %c6_i32 : i32 to index
    %c0_100 = arith.constant 0 : index
    %c0_101 = arith.constant 0 : index
    %446 = vector.load %arg16[%445, %c0_100, %c0_101] : memref<8x8x384xf32, #tpu.memory_space<vmem>>, vector<1x8x384xf32>
    %447 = vector.shape_cast %446 : vector<1x8x384xf32> to vector<8x384xf32>
    %448 = vector.extract_strided_slice %447 {offsets = [0, 0], sizes = [8, 128], strides = [1, 1]} : vector<8x384xf32> to vector<8x128xf32>
    %449 = vector.extract_strided_slice %440 {offsets = [0, 0], sizes = [8, 128], strides = [1, 1]} : vector<8x384xf32> to vector<8x128xf32>
    %450 = arith.addf %448, %449 : vector<8x128xf32>
    %451 = arith.negf %450 : vector<8x128xf32>
    %452 = math.exp %451 : vector<8x128xf32>
    %cst_102 = arith.constant 1.000000e+00 : f32
    %453 = vector.broadcast %cst_102 : f32 to vector<8x128xf32>
    %454 = arith.addf %453, %452 : vector<8x128xf32>
    %455 = arith.divf %453, %454 : vector<8x128xf32>
    %456 = vector.extract_strided_slice %447 {offsets = [0, 128], sizes = [8, 128], strides = [1, 1]} : vector<8x384xf32> to vector<8x128xf32>
    %457 = vector.extract_strided_slice %440 {offsets = [0, 128], sizes = [8, 128], strides = [1, 1]} : vector<8x384xf32> to vector<8x128xf32>
    %458 = arith.addf %456, %457 : vector<8x128xf32>
    %459 = arith.negf %458 : vector<8x128xf32>
    %460 = math.exp %459 : vector<8x128xf32>
    %cst_103 = arith.constant 1.000000e+00 : f32
    %461 = vector.broadcast %cst_103 : f32 to vector<8x128xf32>
    %462 = arith.addf %461, %460 : vector<8x128xf32>
    %463 = arith.divf %461, %462 : vector<8x128xf32>
    %464 = vector.extract_strided_slice %447 {offsets = [0, 256], sizes = [8, 128], strides = [1, 1]} : vector<8x384xf32> to vector<8x128xf32>
    %465 = vector.extract_strided_slice %440 {offsets = [0, 256], sizes = [8, 128], strides = [1, 1]} : vector<8x384xf32> to vector<8x128xf32>
    %466 = vector.broadcast %16 : vector<1x128xf32> to vector<8x128xf32>
    %467 = arith.addf %465, %466 : vector<8x128xf32>
    %468 = arith.mulf %455, %467 : vector<8x128xf32>
    %469 = arith.addf %464, %468 : vector<8x128xf32>
    %470 = math.tanh %469 : vector<8x128xf32>
    %cst_104 = arith.constant 1.000000e+00 : f32
    %471 = vector.broadcast %cst_104 : f32 to vector<8x128xf32>
    %472 = arith.subf %471, %463 : vector<8x128xf32>
    %473 = arith.mulf %472, %470 : vector<8x128xf32>
    %474 = arith.mulf %463, %398 : vector<8x128xf32>
    %475 = arith.addf %473, %474 : vector<8x128xf32>
    %476 = vector.extract_strided_slice %443 {offsets = [0, 0], sizes = [8, 128], strides = [1, 1]} : vector<8x384xf32> to vector<8x128xf32>
    %477 = vector.extract_strided_slice %444 {offsets = [0, 0], sizes = [8, 128], strides = [1, 1]} : vector<8x384xf32> to vector<8x128xf32>
    %478 = arith.addf %476, %477 : vector<8x128xf32>
    %479 = arith.negf %478 : vector<8x128xf32>
    %480 = math.exp %479 : vector<8x128xf32>
    %cst_105 = arith.constant 1.000000e+00 : f32
    %481 = vector.broadcast %cst_105 : f32 to vector<8x128xf32>
    %482 = arith.addf %481, %480 : vector<8x128xf32>
    %483 = arith.divf %481, %482 : vector<8x128xf32>
    %484 = vector.extract_strided_slice %443 {offsets = [0, 128], sizes = [8, 128], strides = [1, 1]} : vector<8x384xf32> to vector<8x128xf32>
    %485 = vector.extract_strided_slice %444 {offsets = [0, 128], sizes = [8, 128], strides = [1, 1]} : vector<8x384xf32> to vector<8x128xf32>
    %486 = arith.addf %484, %485 : vector<8x128xf32>
    %487 = arith.negf %486 : vector<8x128xf32>
    %488 = math.exp %487 : vector<8x128xf32>
    %cst_106 = arith.constant 1.000000e+00 : f32
    %489 = vector.broadcast %cst_106 : f32 to vector<8x128xf32>
    %490 = arith.addf %489, %488 : vector<8x128xf32>
    %491 = arith.divf %489, %490 : vector<8x128xf32>
    %492 = vector.extract_strided_slice %443 {offsets = [0, 256], sizes = [8, 128], strides = [1, 1]} : vector<8x384xf32> to vector<8x128xf32>
    %493 = vector.extract_strided_slice %444 {offsets = [0, 256], sizes = [8, 128], strides = [1, 1]} : vector<8x384xf32> to vector<8x128xf32>
    %494 = vector.broadcast %17 : vector<1x128xf32> to vector<8x128xf32>
    %495 = arith.addf %493, %494 : vector<8x128xf32>
    %496 = arith.mulf %483, %495 : vector<8x128xf32>
    %497 = arith.addf %492, %496 : vector<8x128xf32>
    %498 = math.tanh %497 : vector<8x128xf32>
    %cst_107 = arith.constant 1.000000e+00 : f32
    %499 = vector.broadcast %cst_107 : f32 to vector<8x128xf32>
    %500 = arith.subf %499, %491 : vector<8x128xf32>
    %501 = arith.mulf %500, %498 : vector<8x128xf32>
    %502 = arith.mulf %491, %426 : vector<8x128xf32>
    %503 = arith.addf %501, %502 : vector<8x128xf32>
    %c1_i32_108 = arith.constant 1 : i32
    %504 = arith.subi %c6_i32, %c1_i32_108 : i32
    %505 = arith.addi %19, %504 : i32
    %506 = vector.broadcast %505 : i32 to vector<8x1xi32>
    %507 = arith.cmpi slt, %506, %18 : vector<8x1xi32>
    %508 = arith.extui %507 : vector<8x1xi1> to vector<8x1xi32>
    %509 = arith.sitofp %508 : vector<8x1xi32> to vector<8x1xf32>
    %510 = vector.broadcast %509 : vector<8x1xf32> to vector<8x128xf32>
    %511 = arith.mulf %503, %510 : vector<8x128xf32>
    %512 = arith.index_cast %504 : i32 to index
    %c0_109 = arith.constant 0 : index
    %c0_110 = arith.constant 0 : index
    %513 = vector.load %arg13[%512, %c0_109, %c0_110] : memref<8x8x128xf32, #tpu.memory_space<vmem>>, vector<1x8x128xf32>
    %514 = vector.shape_cast %513 : vector<1x8x128xf32> to vector<8x128xf32>
    %515 = vector.shape_cast %511 : vector<8x128xf32> to vector<1x8x128xf32>
    tpu.vector_store %arg13[%512, %c0_109, %c0_110], %515 {strides = array<i32>} : memref<8x8x128xf32, #tpu.memory_space<vmem>>, vector<1x8x128xf32>,
    %c7_i32 = arith.constant 7 : i32
    %cst_111 = arith.constant dense<0.000000e+00> : vector<8x768xf32>
    %516 = tpu.matmul %475, %13, %cst_111 {dimension_numbers = #tpu.dot_dimension_numbers<[1], [0], [0], [1], [0, 0, 1, 1], [], []>} : vector<8x128xf32>, vector<128x768xf32>, vector<8x768xf32> -> vector<8x768xf32>
    %517 = vector.extract_strided_slice %516 {offsets = [0, 0], sizes = [8, 384], strides = [1, 1]} : vector<8x768xf32> to vector<8x384xf32>
    %518 = vector.extract_strided_slice %516 {offsets = [0, 384], sizes = [8, 384], strides = [1, 1]} : vector<8x768xf32> to vector<8x384xf32>
    %519 = vector.broadcast %15 : vector<1x384xf32> to vector<8x384xf32>
    %520 = arith.addf %518, %519 : vector<8x384xf32>
    %cst_112 = arith.constant dense<0.000000e+00> : vector<8x384xf32>
    %521 = tpu.matmul %503, %14, %cst_112 {dimension_numbers = #tpu.dot_dimension_numbers<[1], [0], [0], [1], [0, 0, 1, 1], [], []>} : vector<8x128xf32>, vector<128x384xf32>, vector<8x384xf32> -> vector<8x384xf32>
    %522 = arith.index_cast %c7_i32 : i32 to index
    %c0_113 = arith.constant 0 : index
    %c0_114 = arith.constant 0 : index
    %523 = vector.load %arg16[%522, %c0_113, %c0_114] : memref<8x8x384xf32, #tpu.memory_space<vmem>>, vector<1x8x384xf32>
    %524 = vector.shape_cast %523 : vector<1x8x384xf32> to vector<8x384xf32>
    %525 = vector.extract_strided_slice %524 {offsets = [0, 0], sizes = [8, 128], strides = [1, 1]} : vector<8x384xf32> to vector<8x128xf32>
    %526 = vector.extract_strided_slice %517 {offsets = [0, 0], sizes = [8, 128], strides = [1, 1]} : vector<8x384xf32> to vector<8x128xf32>
    %527 = arith.addf %525, %526 : vector<8x128xf32>
    %528 = arith.negf %527 : vector<8x128xf32>
    %529 = math.exp %528 : vector<8x128xf32>
    %cst_115 = arith.constant 1.000000e+00 : f32
    %530 = vector.broadcast %cst_115 : f32 to vector<8x128xf32>
    %531 = arith.addf %530, %529 : vector<8x128xf32>
    %532 = arith.divf %530, %531 : vector<8x128xf32>
    %533 = vector.extract_strided_slice %524 {offsets = [0, 128], sizes = [8, 128], strides = [1, 1]} : vector<8x384xf32> to vector<8x128xf32>
    %534 = vector.extract_strided_slice %517 {offsets = [0, 128], sizes = [8, 128], strides = [1, 1]} : vector<8x384xf32> to vector<8x128xf32>
    %535 = arith.addf %533, %534 : vector<8x128xf32>
    %536 = arith.negf %535 : vector<8x128xf32>
    %537 = math.exp %536 : vector<8x128xf32>
    %cst_116 = arith.constant 1.000000e+00 : f32
    %538 = vector.broadcast %cst_116 : f32 to vector<8x128xf32>
    %539 = arith.addf %538, %537 : vector<8x128xf32>
    %540 = arith.divf %538, %539 : vector<8x128xf32>
    %541 = vector.extract_strided_slice %524 {offsets = [0, 256], sizes = [8, 128], strides = [1, 1]} : vector<8x384xf32> to vector<8x128xf32>
    %542 = vector.extract_strided_slice %517 {offsets = [0, 256], sizes = [8, 128], strides = [1, 1]} : vector<8x384xf32> to vector<8x128xf32>
    %543 = vector.broadcast %16 : vector<1x128xf32> to vector<8x128xf32>
    %544 = arith.addf %542, %543 : vector<8x128xf32>
    %545 = arith.mulf %532, %544 : vector<8x128xf32>
    %546 = arith.addf %541, %545 : vector<8x128xf32>
    %547 = math.tanh %546 : vector<8x128xf32>
    %cst_117 = arith.constant 1.000000e+00 : f32
    %548 = vector.broadcast %cst_117 : f32 to vector<8x128xf32>
    %549 = arith.subf %548, %540 : vector<8x128xf32>
    %550 = arith.mulf %549, %547 : vector<8x128xf32>
    %551 = arith.mulf %540, %475 : vector<8x128xf32>
    %552 = arith.addf %550, %551 : vector<8x128xf32>
    %553 = vector.extract_strided_slice %520 {offsets = [0, 0], sizes = [8, 128], strides = [1, 1]} : vector<8x384xf32> to vector<8x128xf32>
    %554 = vector.extract_strided_slice %521 {offsets = [0, 0], sizes = [8, 128], strides = [1, 1]} : vector<8x384xf32> to vector<8x128xf32>
    %555 = arith.addf %553, %554 : vector<8x128xf32>
    %556 = arith.negf %555 : vector<8x128xf32>
    %557 = math.exp %556 : vector<8x128xf32>
    %cst_118 = arith.constant 1.000000e+00 : f32
    %558 = vector.broadcast %cst_118 : f32 to vector<8x128xf32>
    %559 = arith.addf %558, %557 : vector<8x128xf32>
    %560 = arith.divf %558, %559 : vector<8x128xf32>
    %561 = vector.extract_strided_slice %520 {offsets = [0, 128], sizes = [8, 128], strides = [1, 1]} : vector<8x384xf32> to vector<8x128xf32>
    %562 = vector.extract_strided_slice %521 {offsets = [0, 128], sizes = [8, 128], strides = [1, 1]} : vector<8x384xf32> to vector<8x128xf32>
    %563 = arith.addf %561, %562 : vector<8x128xf32>
    %564 = arith.negf %563 : vector<8x128xf32>
    %565 = math.exp %564 : vector<8x128xf32>
    %cst_119 = arith.constant 1.000000e+00 : f32
    %566 = vector.broadcast %cst_119 : f32 to vector<8x128xf32>
    %567 = arith.addf %566, %565 : vector<8x128xf32>
    %568 = arith.divf %566, %567 : vector<8x128xf32>
    %569 = vector.extract_strided_slice %520 {offsets = [0, 256], sizes = [8, 128], strides = [1, 1]} : vector<8x384xf32> to vector<8x128xf32>
    %570 = vector.extract_strided_slice %521 {offsets = [0, 256], sizes = [8, 128], strides = [1, 1]} : vector<8x384xf32> to vector<8x128xf32>
    %571 = vector.broadcast %17 : vector<1x128xf32> to vector<8x128xf32>
    %572 = arith.addf %570, %571 : vector<8x128xf32>
    %573 = arith.mulf %560, %572 : vector<8x128xf32>
    %574 = arith.addf %569, %573 : vector<8x128xf32>
    %575 = math.tanh %574 : vector<8x128xf32>
    %cst_120 = arith.constant 1.000000e+00 : f32
    %576 = vector.broadcast %cst_120 : f32 to vector<8x128xf32>
    %577 = arith.subf %576, %568 : vector<8x128xf32>
    %578 = arith.mulf %577, %575 : vector<8x128xf32>
    %579 = arith.mulf %568, %503 : vector<8x128xf32>
    %580 = arith.addf %578, %579 : vector<8x128xf32>
    %c1_i32_121 = arith.constant 1 : i32
    %581 = arith.subi %c7_i32, %c1_i32_121 : i32
    %582 = arith.addi %19, %581 : i32
    %583 = vector.broadcast %582 : i32 to vector<8x1xi32>
    %584 = arith.cmpi slt, %583, %18 : vector<8x1xi32>
    %585 = arith.extui %584 : vector<8x1xi1> to vector<8x1xi32>
    %586 = arith.sitofp %585 : vector<8x1xi32> to vector<8x1xf32>
    %587 = vector.broadcast %586 : vector<8x1xf32> to vector<8x128xf32>
    %588 = arith.mulf %580, %587 : vector<8x128xf32>
    %589 = arith.index_cast %581 : i32 to index
    %c0_122 = arith.constant 0 : index
    %c0_123 = arith.constant 0 : index
    %590 = vector.load %arg13[%589, %c0_122, %c0_123] : memref<8x8x128xf32, #tpu.memory_space<vmem>>, vector<1x8x128xf32>
    %591 = vector.shape_cast %590 : vector<1x8x128xf32> to vector<8x128xf32>
    %592 = vector.shape_cast %588 : vector<8x128xf32> to vector<1x8x128xf32>
    tpu.vector_store %arg13[%589, %c0_122, %c0_123], %592 {strides = array<i32>} : memref<8x8x128xf32, #tpu.memory_space<vmem>>, vector<1x8x128xf32>,
    %c7_i32_124 = arith.constant 7 : i32
    %cst_125 = arith.constant dense<0.000000e+00> : vector<8x768xf32>
    %593 = tpu.matmul %552, %13, %cst_125 {dimension_numbers = #tpu.dot_dimension_numbers<[1], [0], [0], [1], [0, 0, 1, 1], [], []>} : vector<8x128xf32>, vector<128x768xf32>, vector<8x768xf32> -> vector<8x768xf32>
    %594 = vector.extract_strided_slice %593 {offsets = [0, 384], sizes = [8, 384], strides = [1, 1]} : vector<8x768xf32> to vector<8x384xf32>
    %595 = vector.broadcast %15 : vector<1x384xf32> to vector<8x384xf32>
    %596 = arith.addf %594, %595 : vector<8x384xf32>
    %cst_126 = arith.constant dense<0.000000e+00> : vector<8x384xf32>
    %597 = tpu.matmul %580, %14, %cst_126 {dimension_numbers = #tpu.dot_dimension_numbers<[1], [0], [0], [1], [0, 0, 1, 1], [], []>} : vector<8x128xf32>, vector<128x384xf32>, vector<8x384xf32> -> vector<8x384xf32>
    %598 = vector.extract_strided_slice %596 {offsets = [0, 0], sizes = [8, 128], strides = [1, 1]} : vector<8x384xf32> to vector<8x128xf32>
    %599 = vector.extract_strided_slice %597 {offsets = [0, 0], sizes = [8, 128], strides = [1, 1]} : vector<8x384xf32> to vector<8x128xf32>
    %600 = arith.addf %598, %599 : vector<8x128xf32>
    %601 = arith.negf %600 : vector<8x128xf32>
    %602 = math.exp %601 : vector<8x128xf32>
    %cst_127 = arith.constant 1.000000e+00 : f32
    %603 = vector.broadcast %cst_127 : f32 to vector<8x128xf32>
    %604 = arith.addf %603, %602 : vector<8x128xf32>
    %605 = arith.divf %603, %604 : vector<8x128xf32>
    %606 = vector.extract_strided_slice %596 {offsets = [0, 128], sizes = [8, 128], strides = [1, 1]} : vector<8x384xf32> to vector<8x128xf32>
    %607 = vector.extract_strided_slice %597 {offsets = [0, 128], sizes = [8, 128], strides = [1, 1]} : vector<8x384xf32> to vector<8x128xf32>
    %608 = arith.addf %606, %607 : vector<8x128xf32>
    %609 = arith.negf %608 : vector<8x128xf32>
    %610 = math.exp %609 : vector<8x128xf32>
    %cst_128 = arith.constant 1.000000e+00 : f32
    %611 = vector.broadcast %cst_128 : f32 to vector<8x128xf32>
    %612 = arith.addf %611, %610 : vector<8x128xf32>
    %613 = arith.divf %611, %612 : vector<8x128xf32>
    %614 = vector.extract_strided_slice %596 {offsets = [0, 256], sizes = [8, 128], strides = [1, 1]} : vector<8x384xf32> to vector<8x128xf32>
    %615 = vector.extract_strided_slice %597 {offsets = [0, 256], sizes = [8, 128], strides = [1, 1]} : vector<8x384xf32> to vector<8x128xf32>
    %616 = vector.broadcast %17 : vector<1x128xf32> to vector<8x128xf32>
    %617 = arith.addf %615, %616 : vector<8x128xf32>
    %618 = arith.mulf %605, %617 : vector<8x128xf32>
    %619 = arith.addf %614, %618 : vector<8x128xf32>
    %620 = math.tanh %619 : vector<8x128xf32>
    %cst_129 = arith.constant 1.000000e+00 : f32
    %621 = vector.broadcast %cst_129 : f32 to vector<8x128xf32>
    %622 = arith.subf %621, %613 : vector<8x128xf32>
    %623 = arith.mulf %622, %620 : vector<8x128xf32>
    %624 = arith.mulf %613, %580 : vector<8x128xf32>
    %625 = arith.addf %623, %624 : vector<8x128xf32>
    %c7_i32_130 = arith.constant 7 : i32
    %626 = arith.addi %19, %c7_i32_130 : i32
    %627 = vector.broadcast %626 : i32 to vector<8x1xi32>
    %628 = arith.cmpi slt, %627, %18 : vector<8x1xi32>
    %629 = arith.extui %628 : vector<8x1xi1> to vector<8x1xi32>
    %630 = arith.sitofp %629 : vector<8x1xi32> to vector<8x1xf32>
    %631 = vector.broadcast %630 : vector<8x1xf32> to vector<8x128xf32>
    %632 = arith.mulf %625, %631 : vector<8x128xf32>
    %c7 = arith.constant 7 : index
    %c0_131 = arith.constant 0 : index
    %c0_132 = arith.constant 0 : index
    %633 = vector.load %arg13[%c7, %c0_131, %c0_132] : memref<8x8x128xf32, #tpu.memory_space<vmem>>, vector<1x8x128xf32>
    %634 = vector.shape_cast %633 : vector<1x8x128xf32> to vector<8x128xf32>
    %635 = vector.shape_cast %632 : vector<8x128xf32> to vector<1x8x128xf32>
    tpu.vector_store %arg13[%c7, %c0_131, %c0_132], %635 {strides = array<i32>} : memref<8x8x128xf32, #tpu.memory_space<vmem>>, vector<1x8x128xf32>,
    %c0_133 = arith.constant 0 : index
    %c0_134 = arith.constant 0 : index
    %636 = vector.load %arg14[%c0_133, %c0_134] : memref<8x128xf32, #tpu.memory_space<vmem>>, vector<8x128xf32>
    tpu.vector_store %arg14[%c0_133, %c0_134], %552 {strides = array<i32>} : memref<8x128xf32, #tpu.memory_space<vmem>>, vector<8x128xf32>,
    %c0_135 = arith.constant 0 : index
    %c0_136 = arith.constant 0 : index
    %637 = vector.load %arg15[%c0_135, %c0_136] : memref<8x128xf32, #tpu.memory_space<vmem>>, vector<8x128xf32>
    tpu.vector_store %arg15[%c0_135, %c0_136], %625 {strides = array<i32>} : memref<8x128xf32, #tpu.memory_space<vmem>>, vector<8x128xf32>,
    return
  }
  func.func @transform_0(%arg0: i32) -> (i32, i32, i32) {
    %c0_i32 = arith.constant 0 : i32
    %c0_i32_0 = arith.constant 0 : i32
    %c0_i32_1 = arith.constant 0 : i32
    return %arg0, %c0_i32, %c0_i32_0 : i32, i32, i32
  }
  func.func @transform_1(%arg0: i32) -> (i32, i32) {
    %c0_i32 = arith.constant 0 : i32
    %c0_i32_0 = arith.constant 0 : i32
    %c0_i32_1 = arith.constant 0 : i32
    return %c0_i32, %c0_i32_0 : i32, i32
  }
  func.func @transform_2(%arg0: i32) -> (i32, i32) {
    %c0_i32 = arith.constant 0 : i32
    %c0_i32_0 = arith.constant 0 : i32
    %c0_i32_1 = arith.constant 0 : i32
    return %c0_i32, %c0_i32_0 : i32, i32
  }
  func.func @transform_3(%arg0: i32) -> (i32, i32) {
    %c0_i32 = arith.constant 0 : i32
    %c0_i32_0 = arith.constant 0 : i32
    %c0_i32_1 = arith.constant 0 : i32
    return %c0_i32, %c0_i32_0 : i32, i32
  }
  func.func @transform_4(%arg0: i32) -> (i32, i32) {
    %c0_i32 = arith.constant 0 : i32
    %c0_i32_0 = arith.constant 0 : i32
    %c0_i32_1 = arith.constant 0 : i32
    return %c0_i32, %c0_i32_0 : i32, i32
  }
  func.func @transform_5(%arg0: i32) -> (i32, i32) {
    %c0_i32 = arith.constant 0 : i32
    %c0_i32_0 = arith.constant 0 : i32
    %c0_i32_1 = arith.constant 0 : i32
    return %c0_i32, %c0_i32_0 : i32, i32
  }
  func.func @transform_6(%arg0: i32) -> (i32, i32) {
    %c0_i32 = arith.constant 0 : i32
    %c0_i32_0 = arith.constant 0 : i32
    %c0_i32_1 = arith.constant 0 : i32
    return %c0_i32, %c0_i32_0 : i32, i32
  }
  func.func @transform_7(%arg0: i32) -> (i32, i32) {
    %c0_i32 = arith.constant 0 : i32
    %c0_i32_0 = arith.constant 0 : i32
    %c0_i32_1 = arith.constant 0 : i32
    return %c0_i32, %c0_i32_0 : i32, i32
  }
  func.func @transform_8(%arg0: i32) -> (i32, i32) {
    %c0_i32 = arith.constant 0 : i32
    %c0_i32_0 = arith.constant 0 : i32
    %c0_i32_1 = arith.constant 0 : i32
    return %c0_i32, %c0_i32_0 : i32, i32
  }
  func.func @transform_9(%arg0: i32) -> (i32, i32) {
    %c0_i32 = arith.constant 0 : i32
    %c0_i32_0 = arith.constant 0 : i32
    %c0_i32_1 = arith.constant 0 : i32
    return %c0_i32, %c0_i32_0 : i32, i32
  }
  func.func @transform_10(%arg0: i32) -> (i32, i32) {
    %c0_i32 = arith.constant 0 : i32
    %c0_i32_0 = arith.constant 0 : i32
    %c0_i32_1 = arith.constant 0 : i32
    return %c0_i32, %c0_i32_0 : i32, i32
  }
  func.func @transform_11(%arg0: i32) -> (i32, i32) {
    %c0_i32 = arith.constant 0 : i32
    %c0_i32_0 = arith.constant 0 : i32
    %c0_i32_1 = arith.constant 0 : i32
    return %c0_i32, %c0_i32_0 : i32, i32
  }
  func.func @transform_12(%arg0: i32) -> (i32, i32, i32) {
    %c0_i32 = arith.constant 0 : i32
    %c0_i32_0 = arith.constant 0 : i32
    %c0_i32_1 = arith.constant 0 : i32
    return %arg0, %c0_i32, %c0_i32_0 : i32, i32, i32
  }
}

</mosaic_0001>

<llo_original>
// kernel: tpu_custom_call.1
$region0: #{tpu_custom_call.1}
  #allocation0 [shape = 'u32[]', space=smem, size = 0x4, offset = 0x4, fixed_abs, tag = 'smem constant byte address 0x4 - core index']
  #allocation1 [shape = 'u32[144,128]{1,0:T(1,128)}', space=vmem, size = 0x12000, scoped, tag = 'internal scratch']
  #allocation2 [shape = 'f32[8,128]{1,0:T(8,128)}', space=vmem, size = 0x1000, scoped, tag = 'scratch operand']
  #allocation3 [shape = 'f32[8,128]{1,0:T(8,128)}', space=vmem, size = 0x1000, scoped, tag = 'scratch operand']
  #allocation4 [shape = 'f32[8,8,384]{2,1,0:T(8,128)}', space=vmem, size = 0x18000, scoped, tag = 'scratch operand']
  %s0 = inlined_call_operand.hbm [shape: f32[8,8,128], index: 0, kind: input, shape index: {}]
  %s1 = inlined_call_operand.hbm [shape: f32[8,16], index: 1, kind: input, shape index: {}]
  %s2 = inlined_call_operand.vmem [shape: s32[8,1], index: 2, kind: input, shape index: {}]
  %s3 = inlined_call_operand.vmem [shape: f32[16,128], index: 3, kind: input, shape index: {}]
  %s4 = inlined_call_operand.vmem [shape: f32[1,128], index: 4, kind: input, shape index: {}]
  %s5 = inlined_call_operand.hbm [shape: f32[128,384], index: 5, kind: input, shape index: {}]
  %s6 = inlined_call_operand.hbm [shape: f32[128,768], index: 6, kind: input, shape index: {}]
  %s7 = inlined_call_operand.hbm [shape: f32[128,384], index: 7, kind: input, shape index: {}]
  %s8 = inlined_call_operand.vmem [shape: f32[1,384], index: 8, kind: input, shape index: {}]
  %s9 = inlined_call_operand.vmem [shape: f32[1,128], index: 9, kind: input, shape index: {}]
  %s10 = inlined_call_operand.vmem [shape: f32[1,384], index: 10, kind: input, shape index: {}]
  %s11 = inlined_call_operand.vmem [shape: f32[1,128], index: 11, kind: input, shape index: {}]
  %s12 = inlined_call_operand.hbm [shape: f32[8,8,128], index: 12, kind: output, shape index: {}]
  %s13 = sld [smem:[#allocation0]]
  $region82: #{tpu_custom_call.1} parent=0
    _
  %s15 = ssub.s32 1, %s13
  %s16 = scalar_select 0, %s15, %s13
  $region1: #{tpu_custom_call.1} parent=0
    #allocation5 [shape = 'u8[32768]{0}', space=vmem, size = 0x8000, scoped, tag = 'input window, operand 0, single buffered']
    #allocation6 [shape = 's32[1]{0}', space=sflag, size = 0x4, scoped, tag = 'scoped memory for tpu_custom_call.1']
    #allocation7 [shape = 's32[1]{0}', space=sflag, size = 0x4, scoped, tag = 'scoped memory for tpu_custom_call.1']
    #allocation8 [shape = 'u8[4096]{0}', space=vmem, size = 0x1000, scoped, tag = 'input window, operand 1, single buffered']
    #allocation9 [shape = 's32[1]{0}', space=sflag, size = 0x4, scoped, tag = 'scoped memory for tpu_custom_call.1']
    #allocation10 [shape = 'u8[196608]{0}', space=vmem, size = 0x30000, scoped, tag = 'input window, operand 5, single buffered']
    #allocation11 [shape = 'u8[393216]{0}', space=vmem, size = 0x60000, scoped, tag = 'input window, operand 6, single buffered']
    #allocation12 [shape = 's32[1]{0}', space=sflag, size = 0x4, scoped, tag = 'scoped memory for tpu_custom_call.1']
    #allocation13 [shape = 'u8[196608]{0}', space=vmem, size = 0x30000, scoped, tag = 'input window, operand 7, single buffered']
    #allocation14 [shape = 'u8[32768]{0}', space=vmem, size = 0x8000, scoped, tag = 'output window, operand 0, single buffered']
    %17 = vsyncpa [#allocation6], 0
    %18 = vsyncpa [#allocation9], 0
    %19 = vsyncpa [#allocation12], 0
    %20 = vsyncpa [#allocation7], 0
    // Predicated region
    $region2: #{tpu_custom_call.1} parent=1 // pred_check
      _
    $region3: #{tpu_custom_call.1} parent=1 // pred_check_branch
      %22 = sbr.rel (0) target = $region5
    $region4: #{tpu_custom_call.1} parent=1 // pred_region
      %s24 = ssub.s32 1024, 1024
      %25 = vsyncadd [#allocation6], %s24
      %s26 = sshll.u32 [#allocation5], 4
      %s27 = int_to_ptr.vmem [resolvable:$true] %s26
      %32 = dma.hbm_to_vmem [thread:$0]  %s0, 1024, %s27, [#allocation6], 128, 128, 8
    $region5: #{tpu_custom_call.1} parent=1 // pred_fallthru
      _
    // Predicated region
    $region6: #{tpu_custom_call.1} parent=1 // pred_check
      _
    $region7: #{tpu_custom_call.1} parent=1 // pred_check_branch
      %34 = sbr.rel (0) target = $region9
    $region8: #{tpu_custom_call.1} parent=1 // pred_region
      %s36 = ssub.s32 128, 128
      %37 = vsyncadd [#allocation9], %s36
      %s39 = sshll.u32 [#allocation8], 4
      %s40 = int_to_ptr.vmem [resolvable:$true] %s39
      %42 = dma.hbm_to_vmem [thread:$0]  %s1, 128, %s40, [#allocation9]
    $region9: #{tpu_custom_call.1} parent=1 // pred_fallthru
      _
    // Predicated region
    $region10: #{tpu_custom_call.1} parent=1 // pred_check
      _
    $region11: #{tpu_custom_call.1} parent=1 // pred_check_branch
      %44 = sbr.rel (0) target = $region13
    $region12: #{tpu_custom_call.1} parent=1 // pred_region
      _
    $region13: #{tpu_custom_call.1} parent=1 // pred_fallthru
      _
    // Predicated region
    $region14: #{tpu_custom_call.1} parent=1 // pred_check
      _
    $region15: #{tpu_custom_call.1} parent=1 // pred_check_branch
      %46 = sbr.rel (0) target = $region17
    $region16: #{tpu_custom_call.1} parent=1 // pred_region
      _
    $region17: #{tpu_custom_call.1} parent=1 // pred_fallthru
      _
    // Predicated region
    $region18: #{tpu_custom_call.1} parent=1 // pred_check
      _
    $region19: #{tpu_custom_call.1} parent=1 // pred_check_branch
      %48 = sbr.rel (0) target = $region21
    $region20: #{tpu_custom_call.1} parent=1 // pred_region
      _
    $region21: #{tpu_custom_call.1} parent=1 // pred_fallthru
      _
    // Predicated region
    $region22: #{tpu_custom_call.1} parent=1 // pred_check
      _
    $region23: #{tpu_custom_call.1} parent=1 // pred_check_branch
      %50 = sbr.rel (0) target = $region25
    $region24: #{tpu_custom_call.1} parent=1 // pred_region
      %s52 = ssub.s32 6144, 6144
      %53 = vsyncadd [#allocation9], %s52
      %s54 = sshll.u32 [#allocation10], 4
      %s55 = int_to_ptr.vmem [resolvable:$true] %s54
      %60 = dma.hbm_to_vmem [thread:$0]  %s5, 6144, %s55, [#allocation9], 384, 384, 24
    $region25: #{tpu_custom_call.1} parent=1 // pred_fallthru
      _
    // Predicated region
    $region26: #{tpu_custom_call.1} parent=1 // pred_check
      _
    $region27: #{tpu_custom_call.1} parent=1 // pred_check_branch
      %62 = sbr.rel (0) target = $region29
    $region28: #{tpu_custom_call.1} parent=1 // pred_region
      %s64 = ssub.s32 12288, 12288
      %65 = vsyncadd [#allocation12], %s64
      %s66 = sshll.u32 [#allocation11], 4
      %s67 = int_to_ptr.vmem [resolvable:$true] %s66
      %72 = dma.hbm_to_vmem [thread:$0]  %s6, 12288, %s67, [#allocation12], 768, 768, 48
    $region29: #{tpu_custom_call.1} parent=1 // pred_fallthru
      _
    // Predicated region
    $region30: #{tpu_custom_call.1} parent=1 // pred_check
      _
    $region31: #{tpu_custom_call.1} parent=1 // pred_check_branch
      %74 = sbr.rel (0) target = $region33
    $region32: #{tpu_custom_call.1} parent=1 // pred_region
      %s76 = ssub.s32 6144, 6144
      %77 = vsyncadd [#allocation12], %s76
      %s78 = sshll.u32 [#allocation13], 4
      %s79 = int_to_ptr.vmem [resolvable:$true] %s78
      %84 = dma.hbm_to_vmem [thread:$0]  %s7, 6144, %s79, [#allocation12], 384, 384, 24
    $region33: #{tpu_custom_call.1} parent=1 // pred_fallthru
      _
    // Predicated region
    $region34: #{tpu_custom_call.1} parent=1 // pred_check
      _
    $region35: #{tpu_custom_call.1} parent=1 // pred_check_branch
      %86 = sbr.rel (0) target = $region37
    $region36: #{tpu_custom_call.1} parent=1 // pred_region
      _
    $region37: #{tpu_custom_call.1} parent=1 // pred_fallthru
      _
    // Predicated region
    $region38: #{tpu_custom_call.1} parent=1 // pred_check
      _
    $region39: #{tpu_custom_call.1} parent=1 // pred_check_branch
      %88 = sbr.rel (0) target = $region41
    $region40: #{tpu_custom_call.1} parent=1 // pred_region
      _
    $region41: #{tpu_custom_call.1} parent=1 // pred_fallthru
      _
    // Predicated region
    $region42: #{tpu_custom_call.1} parent=1 // pred_check
      _
    $region43: #{tpu_custom_call.1} parent=1 // pred_check_branch
      %90 = sbr.rel (0) target = $region45
    $region44: #{tpu_custom_call.1} parent=1 // pred_region
      _
    $region45: #{tpu_custom_call.1} parent=1 // pred_fallthru
      _
    // Predicated region
    $region46: #{tpu_custom_call.1} parent=1 // pred_check
      _
    $region47: #{tpu_custom_call.1} parent=1 // pred_check_branch
      %92 = sbr.rel (0) target = $region49
    $region48: #{tpu_custom_call.1} parent=1 // pred_region
      _
    $region49: #{tpu_custom_call.1} parent=1 // pred_fallthru
      _
    // Predicated region
    $region50: #{tpu_custom_call.1} parent=1 // pred_check
      _
    $region51: #{tpu_custom_call.1} parent=1 // pred_check_branch
      %94 = sbr.rel (0) target = $region53
    $region52: #{tpu_custom_call.1} parent=1 // pred_region
      %95 = dma.done [#allocation6], 1024
    $region53: #{tpu_custom_call.1} parent=1 // pred_fallthru
      _
    // Predicated region
    $region54: #{tpu_custom_call.1} parent=1 // pred_check
      _
    $region55: #{tpu_custom_call.1} parent=1 // pred_check_branch
      %97 = sbr.rel (0) target = $region57
    $region56: #{tpu_custom_call.1} parent=1 // pred_region
      %98 = dma.done [#allocation9], 128
    $region57: #{tpu_custom_call.1} parent=1 // pred_fallthru
      _
    // Predicated region
    $region58: #{tpu_custom_call.1} parent=1 // pred_check
      _
    $region59: #{tpu_custom_call.1} parent=1 // pred_check_branch
      %100 = sbr.rel (0) target = $region61
    $region60: #{tpu_custom_call.1} parent=1 // pred_region
      %101 = dma.done [#allocation9], 6144
    $region61: #{tpu_custom_call.1} parent=1 // pred_fallthru
      _
    // Predicated region
    $region62: #{tpu_custom_call.1} parent=1 // pred_check
      _
    $region63: #{tpu_custom_call.1} parent=1 // pred_check_branch
      %103 = sbr.rel (0) target = $region65
    $region64: #{tpu_custom_call.1} parent=1 // pred_region
      %104 = dma.done [#allocation12], 12288
    $region65: #{tpu_custom_call.1} parent=1 // pred_fallthru
      _
    // Predicated region
    $region66: #{tpu_custom_call.1} parent=1 // pred_check
      _
    $region67: #{tpu_custom_call.1} parent=1 // pred_check_branch
      %106 = sbr.rel (0) target = $region69
    $region68: #{tpu_custom_call.1} parent=1 // pred_region
      %107 = dma.done [#allocation12], 6144
    $region69: #{tpu_custom_call.1} parent=1 // pred_fallthru
      _
    %p108 = scmp.eq.s32.totalorder 0, 0
    // Predicated region
    $region70: #{tpu_custom_call.1} parent=1 // pred_check
      %p109 = pneg %p108
    $region71: #{tpu_custom_call.1} parent=1 // pred_check_branch
      %111 = sbr.rel (%p109) target = $region73
    $region72: #{tpu_custom_call.1} parent=1 // pred_region
      %v112 = vld [vmem:[#allocation8] sm:$0xff]
      %v113 = vld [vmem:[%s3] sm:$0xff]
      %v114 = vld [vmem:[%s3 + $0x8] sm:$0xff]
      %v115 = vld [vmem:[%s4] sm:$0x1]
      %v117 = vlaneseq
      %v118 = vshrl.u32 %v117, 7
      %v119 = vsub.s32 0, %v118
      %v120 = vrot.slane %v115, %v119
      %vm122 = vcmask 130048
      %v124 = vsel %vm122, %v112, 0
      %126 = vmatprep.subr.mxu0 0.0
      %127 = vmatpush1.msra.mxu0 %v113
      %128 = vmatprep.subr.mxu0 0.0
      %129 = vmatpush1.msra.mxu0 %v114
      %130 = vmatprep.subr.mxu0 0.0
      %131 = vmatpush1.msra.mxu0 0.0
      %132 = vmatprep.subr.mxu0 0.0
      %133 = vmatpush1.msra.mxu0 0.0
      %134 = vmatprep.subr.mxu0 0.0
      %135 = vmatpush1.msra.mxu0 0.0
      %136 = vmatprep.subr.mxu0 0.0
      %137 = vmatpush1.msra.mxu0 0.0
      %138 = vmatprep.subr.mxu0 0.0
      %139 = vmatpush1.msra.mxu0 0.0
      %140 = vmatprep.subr.mxu0 0.0
      %141 = vmatpush1.msra.mxu0 0.0
      %142 = vmatprep.subr.mxu0 0.0
      %143 = vmatpush1.msra.mxu0 0.0
      %144 = vmatprep.subr.mxu0 0.0
      %145 = vmatpush1.msra.mxu0 0.0
      %146 = vmatprep.subr.mxu0 0.0
      %147 = vmatpush1.msra.mxu0 0.0
      %148 = vmatprep.subr.mxu0 0.0
      %149 = vmatpush1.msra.mxu0 0.0
      %150 = vmatprep.subr.mxu0 0.0
      %151 = vmatpush1.msra.mxu0 0.0
      %152 = vmatprep.subr.mxu0 0.0
      %153 = vmatpush1.msra.mxu0 0.0
      %154 = vmatprep.subr.mxu0 0.0
      %155 = vmatpush1.msra.mxu0 0.0
      %156 = vmatprep.subr.mxu0 0.0
      %157 = vmatpush1.msra.mxu0 0.0
      %158 = vmatprep.subr.mxu0 0.0
      %159 = vmatpush1.msra.mxu0 0.0
      %160 = vmatprep.subr.mxu0 0.0
      %161 = vmatpush1.msra.mxu0 0.0
      %162 = vmatprep.subr.mxu0 0.0
      %163 = vmatpush1.msra.mxu0 0.0
      %164 = vmatprep.subr.mxu0 0.0
      %165 = vmatpush1.msra.mxu0 0.0
      %166 = vmatprep.subr.mxu0 0.0
      %167 = vmatpush1.msra.mxu0 0.0
      %168 = vmatprep.subr.mxu0 0.0
      %169 = vmatpush1.msra.mxu0 0.0
      %170 = vmatprep.subr.mxu0 0.0
      %171 = vmatpush1.msra.mxu0 0.0
      %172 = vmatprep.subr.mxu0 0.0
      %173 = vmatpush1.msra.mxu0 0.0
      %174 = vmatprep.subr.mxu0 0.0
      %175 = vmatpush1.msra.mxu0 0.0
      %176 = vmatprep.subr.mxu0 0.0
      %177 = vmatpush1.msra.mxu0 0.0
      %178 = vmatprep.subr.mxu0 0.0
      %179 = vmatpush1.msra.mxu0 0.0
      %180 = vmatprep.subr.mxu0 0.0
      %181 = vmatpush1.msra.mxu0 0.0
      %182 = vmatprep.subr.mxu0 0.0
      %183 = vmatpush1.msra.mxu0 0.0
      %184 = vmatprep.subr.mxu0 0.0
      %185 = vmatpush1.msra.mxu0 0.0
      %186 = vmatprep.subr.mxu0 0.0
      %187 = vmatpush1.msra.mxu0 0.0
      %188 = vmatprep.subr.mxu0 0.0
      %189 = vmatpush1.msra.mxu0 0.0
      %190 = vmatprep.mubr.f32.mxu0 0.0
      %191 = vmatmul.mubr.f32.gmra.mrb[0].mxu0 %v124
      %v192 = vpop.f32.mrb[0].mxu0
      %v193 = vadd.f32 %v120, %v192
      %v194 = vpop.f32.mrb[0].mxu0
      %195 = vdwg.mxu0
      %196 = vst [vmem:[#allocation2] sm:$0xff] %v193
      %197 = vst [vmem:[#allocation3] sm:$0xff] %v193
    $region73: #{tpu_custom_call.1} parent=1 // pred_fallthru
      _
    %v198 = vld [vmem:[#allocation5] sm:$0xff]
    %v199 = vld [vmem:[#allocation5 + $0x8] sm:$0xff]
    %v200 = vld [vmem:[#allocation5 + $0x10] sm:$0xff]
    %v201 = vld [vmem:[#allocation5 + $0x18] sm:$0xff]
    %v202 = vld [vmem:[#allocation5 + $0x20] sm:$0xff]
    %v203 = vld [vmem:[#allocation5 + $0x28] sm:$0xff]
    %v204 = vld [vmem:[#allocation5 + $0x30] sm:$0xff]
    %v205 = vld [vmem:[#allocation5 + $0x38] sm:$0xff]
    %v206 = vld [vmem:[#allocation10] sm:$0xff]
    %v207 = vld [vmem:[#allocation10 + $0x8] sm:$0xff]
    %v208 = vld [vmem:[#allocation10 + $0x10] sm:$0xff]
    %v209 = vld [vmem:[#allocation10 + $0x18] sm:$0xff]
    %v210 = vld [vmem:[#allocation10 + $0x20] sm:$0xff]
    %v211 = vld [vmem:[#allocation10 + $0x28] sm:$0xff]
    %v212 = vld [vmem:[#allocation10 + $0x30] sm:$0xff]
    %v213 = vld [vmem:[#allocation10 + $0x38] sm:$0xff]
    %v214 = vld [vmem:[#allocation10 + $0x40] sm:$0xff]
    %v215 = vld [vmem:[#allocation10 + $0x48] sm:$0xff]
    %v216 = vld [vmem:[#allocation10 + $0x50] sm:$0xff]
    %v217 = vld [vmem:[#allocation10 + $0x58] sm:$0xff]
    %v218 = vld [vmem:[#allocation10 + $0x60] sm:$0xff]
    %v219 = vld [vmem:[#allocation10 + $0x68] sm:$0xff]
    %v220 = vld [vmem:[#allocation10 + $0x70] sm:$0xff]
    %v221 = vld [vmem:[#allocation10 + $0x78] sm:$0xff]
    %v222 = vld [vmem:[#allocation10 + $0x80] sm:$0xff]
    %v223 = vld [vmem:[#allocation10 + $0x88] sm:$0xff]
    %v224 = vld [vmem:[#allocation10 + $0x90] sm:$0xff]
    %v225 = vld [vmem:[#allocation10 + $0x98] sm:$0xff]
    %v226 = vld [vmem:[#allocation10 + $0xa0] sm:$0xff]
    %v227 = vld [vmem:[#allocation10 + $0xa8] sm:$0xff]
    %v228 = vld [vmem:[#allocation10 + $0xb0] sm:$0xff]
    %v229 = vld [vmem:[#allocation10 + $0xb8] sm:$0xff]
    %v230 = vld [vmem:[#allocation10 + $0xc0] sm:$0xff]
    %v231 = vld [vmem:[#allocation10 + $0xc8] sm:$0xff]
    %v232 = vld [vmem:[#allocation10 + $0xd0] sm:$0xff]
    %v233 = vld [vmem:[#allocation10 + $0xd8] sm:$0xff]
    %v234 = vld [vmem:[#allocation10 + $0xe0] sm:$0xff]
    %v235 = vld [vmem:[#allocation10 + $0xe8] sm:$0xff]
    %v236 = vld [vmem:[#allocation10 + $0xf0] sm:$0xff]
    %v237 = vld [vmem:[#allocation10 + $0xf8] sm:$0xff]
    %v238 = vld [vmem:[#allocation10 + $0x100] sm:$0xff]
    %v239 = vld [vmem:[#allocation10 + $0x108] sm:$0xff]
    %v240 = vld [vmem:[#allocation10 + $0x110] sm:$0xff]
    %v241 = vld [vmem:[#allocation10 + $0x118] sm:$0xff]
    %v242 = vld [vmem:[#allocation10 + $0x120] sm:$0xff]
    %v243 = vld [vmem:[#allocation10 + $0x128] sm:$0xff]
    %v244 = vld [vmem:[#allocation10 + $0x130] sm:$0xff]
    %v245 = vld [vmem:[#allocation10 + $0x138] sm:$0xff]
    %v246 = vld [vmem:[#allocation10 + $0x140] sm:$0xff]
    %v247 = vld [vmem:[#allocation10 + $0x148] sm:$0xff]
    %v248 = vld [vmem:[#allocation10 + $0x150] sm:$0xff]
    %v249 = vld [vmem:[#allocation10 + $0x158] sm:$0xff]
    %v250 = vld [vmem:[#allocation10 + $0x160] sm:$0xff]
    %v251 = vld [vmem:[#allocation10 + $0x168] sm:$0xff]
    %v252 = vld [vmem:[#allocation10 + $0x170] sm:$0xff]
    %v253 = vld [vmem:[#allocation10 + $0x178] sm:$0xff]
    %254 = vmatprep.subr.mxu0 %v207
    %255 = vmatpush1.msra.mxu0 %v206
    %256 = vmatprep.subr.mxu0 %v210
    %257 = vmatpush1.msra.mxu0 %v209
    %258 = vmatprep.subr.mxu0 %v213
    %259 = vmatpush1.msra.mxu0 %v212
    %260 = vmatprep.subr.mxu0 %v216
    %261 = vmatpush1.msra.mxu0 %v215
    %262 = vmatprep.subr.mxu0 %v219
    %263 = vmatpush1.msra.mxu0 %v218
    %264 = vmatprep.subr.mxu0 %v222
    %265 = vmatpush1.msra.mxu0 %v221
    %266 = vmatprep.subr.mxu0 %v225
    %267 = vmatpush1.msra.mxu0 %v224
    %268 = vmatprep.subr.mxu0 %v228
    %269 = vmatpush1.msra.mxu0 %v227
    %270 = vmatprep.subr.mxu0 %v231
    %271 = vmatpush1.msra.mxu0 %v230
    %272 = vmatprep.subr.mxu0 %v234
    %273 = vmatpush1.msra.mxu0 %v233
    %274 = vmatprep.subr.mxu0 %v237
    %275 = vmatpush1.msra.mxu0 %v236
    %276 = vmatprep.subr.mxu0 %v240
    %277 = vmatpush1.msra.mxu0 %v239
    %278 = vmatprep.subr.mxu0 %v243
    %279 = vmatpush1.msra.mxu0 %v242
    %280 = vmatprep.subr.mxu0 %v246
    %281 = vmatpush1.msra.mxu0 %v245
    %282 = vmatprep.subr.mxu0 %v249
    %283 = vmatpush1.msra.mxu0 %v248
    %284 = vmatprep.subr.mxu0 %v252
    %285 = vmatpush1.msra.mxu0 %v251
    %286 = vmatprep.subr.mxu0 0.0
    %287 = vmatpush1.msra.mxu0 0.0
    %288 = vmatprep.subr.mxu0 0.0
    %289 = vmatpush1.msra.mxu0 0.0
    %290 = vmatprep.subr.mxu0 0.0
    %291 = vmatpush1.msra.mxu0 0.0
    %292 = vmatprep.subr.mxu0 0.0
    %293 = vmatpush1.msra.mxu0 0.0
    %294 = vmatprep.subr.mxu0 0.0
    %295 = vmatpush1.msra.mxu0 0.0
    %296 = vmatprep.subr.mxu0 0.0
    %297 = vmatpush1.msra.mxu0 0.0
    %298 = vmatprep.subr.mxu0 0.0
    %299 = vmatpush1.msra.mxu0 0.0
    %300 = vmatprep.subr.mxu0 0.0
    %301 = vmatpush1.msra.mxu0 0.0
    %302 = vmatprep.subr.mxu0 0.0
    %303 = vmatpush1.msra.mxu0 0.0
    %304 = vmatprep.subr.mxu0 0.0
    %305 = vmatpush1.msra.mxu0 0.0
    %306 = vmatprep.subr.mxu0 0.0
    %307 = vmatpush1.msra.mxu0 0.0
    %308 = vmatprep.subr.mxu0 0.0
    %309 = vmatpush1.msra.mxu0 0.0
    %310 = vmatprep.subr.mxu0 0.0
    %311 = vmatpush1.msra.mxu0 0.0
    %312 = vmatprep.subr.mxu0 0.0
    %313 = vmatpush1.msra.mxu0 0.0
    %314 = vmatprep.subr.mxu0 0.0
    %315 = vmatpush1.msra.mxu0 0.0
    %316 = vmatprep.subr.mxu0 0.0
    %317 = vmatpush1.msra.mxu0 0.0
    %318 = vmatprep.mubr.f32.mxu0 0.0
    %319 = vmatmul.mubr.f32.gmra.mrb[0].mxu0 %v198
    %v320 = vpop.f32.mrb[0].mxu0
    %v321 = vadd.f32 0.0, %v320
    %v322 = vpop.f32.mrb[0].mxu0
    %v323 = vadd.f32 0.0, %v322
    %324 = vmatprep.mubr.f32.mxu0 0.0
    %325 = vmatmul.mubr.f32.gmra.mrb[0].mxu0 %v199
    %v326 = vpop.f32.mrb[0].mxu0
    %v327 = vadd.f32 0.0, %v326
    %v328 = vpop.f32.mrb[0].mxu0
    %v329 = vadd.f32 0.0, %v328
    %330 = vmatprep.mubr.f32.mxu0 0.0
    %331 = vmatmul.mubr.f32.gmra.mrb[0].mxu0 %v200
    %v332 = vpop.f32.mrb[0].mxu0
    %v333 = vadd.f32 0.0, %v332
    %v334 = vpop.f32.mrb[0].mxu0
    %v335 = vadd.f32 0.0, %v334
    %336 = vmatprep.mubr.f32.mxu0 0.0
    %337 = vmatmul.mubr.f32.gmra.mrb[0].mxu0 %v201
    %v338 = vpop.f32.mrb[0].mxu0
    %v339 = vadd.f32 0.0, %v338
    %v340 = vpop.f32.mrb[0].mxu0
    %v341 = vadd.f32 0.0, %v340
    %342 = vmatprep.mubr.f32.mxu0 0.0
    %343 = vmatmul.mubr.f32.gmra.mrb[0].mxu0 %v202
    %v344 = vpop.f32.mrb[0].mxu0
    %v345 = vadd.f32 0.0, %v344
    %v346 = vpop.f32.mrb[0].mxu0
    %v347 = vadd.f32 0.0, %v346
    %348 = vmatprep.mubr.f32.mxu0 0.0
    %349 = vmatmul.mubr.f32.gmra.mrb[0].mxu0 %v203
    %v350 = vpop.f32.mrb[0].mxu0
    %v351 = vadd.f32 0.0, %v350
    %v352 = vpop.f32.mrb[0].mxu0
    %v353 = vadd.f32 0.0, %v352
    %354 = vmatprep.mubr.f32.mxu0 0.0
    %355 = vmatmul.mubr.f32.gmra.mrb[0].mxu0 %v204
    %v356 = vpop.f32.mrb[0].mxu0
    %v357 = vadd.f32 0.0, %v356
    %v358 = vpop.f32.mrb[0].mxu0
    %v359 = vadd.f32 0.0, %v358
    %360 = vmatprep.mubr.f32.mxu0 0.0
    %361 = vmatmul.mubr.f32.gmra.mrb[0].mxu0 %v205
    %v362 = vpop.f32.mrb[0].mxu0
    %v363 = vadd.f32 0.0, %v362
    %v364 = vpop.f32.mrb[0].mxu0
    %v365 = vadd.f32 0.0, %v364
    %366 = vdwg.mxu0
    %367 = vmatprep.subr.mxu0 0.0
    %368 = vmatpush1.msra.mxu0 %v208
    %369 = vmatprep.subr.mxu0 0.0
    %370 = vmatpush1.msra.mxu0 %v211
    %371 = vmatprep.subr.mxu0 0.0
    %372 = vmatpush1.msra.mxu0 %v214
    %373 = vmatprep.subr.mxu0 0.0
    %374 = vmatpush1.msra.mxu0 %v217
    %375 = vmatprep.subr.mxu0 0.0
    %376 = vmatpush1.msra.mxu0 %v220
    %377 = vmatprep.subr.mxu0 0.0
    %378 = vmatpush1.msra.mxu0 %v223
    %379 = vmatprep.subr.mxu0 0.0
    %380 = vmatpush1.msra.mxu0 %v226
    %381 = vmatprep.subr.mxu0 0.0
    %382 = vmatpush1.msra.mxu0 %v229
    %383 = vmatprep.subr.mxu0 0.0
    %384 = vmatpush1.msra.mxu0 %v232
    %385 = vmatprep.subr.mxu0 0.0
    %386 = vmatpush1.msra.mxu0 %v235
    %387 = vmatprep.subr.mxu0 0.0
    %388 = vmatpush1.msra.mxu0 %v238
    %389 = vmatprep.subr.mxu0 0.0
    %390 = vmatpush1.msra.mxu0 %v241
    %391 = vmatprep.subr.mxu0 0.0
    %392 = vmatpush1.msra.mxu0 %v244
    %393 = vmatprep.subr.mxu0 0.0
    %394 = vmatpush1.msra.mxu0 %v247
    %395 = vmatprep.subr.mxu0 0.0
    %396 = vmatpush1.msra.mxu0 %v250
    %397 = vmatprep.subr.mxu0 0.0
    %398 = vmatpush1.msra.mxu0 %v253
    %399 = vmatprep.subr.mxu0 0.0
    %400 = vmatpush1.msra.mxu0 0.0
    %401 = vmatprep.subr.mxu0 0.0
    %402 = vmatpush1.msra.mxu0 0.0
    %403 = vmatprep.subr.mxu0 0.0
    %404 = vmatpush1.msra.mxu0 0.0
    %405 = vmatprep.subr.mxu0 0.0
    %406 = vmatpush1.msra.mxu0 0.0
    %407 = vmatprep.subr.mxu0 0.0
    %408 = vmatpush1.msra.mxu0 0.0
    %409 = vmatprep.subr.mxu0 0.0
    %410 = vmatpush1.msra.mxu0 0.0
    %411 = vmatprep.subr.mxu0 0.0
    %412 = vmatpush1.msra.mxu0 0.0
    %413 = vmatprep.subr.mxu0 0.0
    %414 = vmatpush1.msra.mxu0 0.0
    %415 = vmatprep.subr.mxu0 0.0
    %416 = vmatpush1.msra.mxu0 0.0
    %417 = vmatprep.subr.mxu0 0.0
    %418 = vmatpush1.msra.mxu0 0.0
    %419 = vmatprep.subr.mxu0 0.0
    %420 = vmatpush1.msra.mxu0 0.0
    %421 = vmatprep.subr.mxu0 0.0
    %422 = vmatpush1.msra.mxu0 0.0
    %423 = vmatprep.subr.mxu0 0.0
    %424 = vmatpush1.msra.mxu0 0.0
    %425 = vmatprep.subr.mxu0 0.0
    %426 = vmatpush1.msra.mxu0 0.0
    %427 = vmatprep.subr.mxu0 0.0
    %428 = vmatpush1.msra.mxu0 0.0
    %429 = vmatprep.subr.mxu0 0.0
    %430 = vmatpush1.msra.mxu0 0.0
    %431 = vmatprep.mubr.f32.mxu0 0.0
    %432 = vmatmul.mubr.f32.gmra.mrb[0].mxu0 %v198
    %v433 = vpop.f32.mrb[0].mxu0
    %v434 = vadd.f32 0.0, %v433
    %v435 = vpop.f32.mrb[0].mxu0
    %436 = vmatprep.mubr.f32.mxu0 0.0
    %437 = vmatmul.mubr.f32.gmra.mrb[0].mxu0 %v199
    %v438 = vpop.f32.mrb[0].mxu0
    %v439 = vadd.f32 0.0, %v438
    %v440 = vpop.f32.mrb[0].mxu0
    %441 = vmatprep.mubr.f32.mxu0 0.0
    %442 = vmatmul.mubr.f32.gmra.mrb[0].mxu0 %v200
    %v443 = vpop.f32.mrb[0].mxu0
    %v444 = vadd.f32 0.0, %v443
    %v445 = vpop.f32.mrb[0].mxu0
    %446 = vmatprep.mubr.f32.mxu0 0.0
    %447 = vmatmul.mubr.f32.gmra.mrb[0].mxu0 %v201
    %v448 = vpop.f32.mrb[0].mxu0
    %v449 = vadd.f32 0.0, %v448
    %v450 = vpop.f32.mrb[0].mxu0
    %451 = vmatprep.mubr.f32.mxu0 0.0
    %452 = vmatmul.mubr.f32.gmra.mrb[0].mxu0 %v202
    %v453 = vpop.f32.mrb[0].mxu0
    %v454 = vadd.f32 0.0, %v453
    %v455 = vpop.f32.mrb[0].mxu0
    %456 = vmatprep.mubr.f32.mxu0 0.0
    %457 = vmatmul.mubr.f32.gmra.mrb[0].mxu0 %v203
    %v458 = vpop.f32.mrb[0].mxu0
    %v459 = vadd.f32 0.0, %v458
    %v460 = vpop.f32.mrb[0].mxu0
    %461 = vmatprep.mubr.f32.mxu0 0.0
    %462 = vmatmul.mubr.f32.gmra.mrb[0].mxu0 %v204
    %v463 = vpop.f32.mrb[0].mxu0
    %v464 = vadd.f32 0.0, %v463
    %v465 = vpop.f32.mrb[0].mxu0
    %466 = vmatprep.mubr.f32.mxu0 0.0
    %467 = vmatmul.mubr.f32.gmra.mrb[0].mxu0 %v205
    %v468 = vpop.f32.mrb[0].mxu0
    %v469 = vadd.f32 0.0, %v468
    %v470 = vpop.f32.mrb[0].mxu0
    %471 = vdwg.mxu0
    %v472 = vld [vmem:[%s8] sm:$0x7]
    %v474 = vlaneseq
    %v475 = vshrl.u32 %v474, 7
    %v476 = vsub.s32 0, %v475
    %v477 = vrot.slane %v472, %v476
    %v478 = vlaneseq
    %v479 = vshrl.u32 %v478, 7
    %v480 = vsub.s32 1, %v479
    %v481 = vrot.slane %v472, %v480
    %v482 = vlaneseq
    %v483 = vshrl.u32 %v482, 7
    %v484 = vsub.s32 2, %v483
    %v485 = vrot.slane %v472, %v484
    %v489 = vadd.f32 %v321, %v477
    %v490 = vadd.f32 %v323, %v481
    %v491 = vadd.f32 %v434, %v485
    %v492 = vadd.f32 %v327, %v477
    %v493 = vadd.f32 %v329, %v481
    %v494 = vadd.f32 %v439, %v485
    %v495 = vadd.f32 %v333, %v477
    %v496 = vadd.f32 %v335, %v481
    %v497 = vadd.f32 %v444, %v485
    %v498 = vadd.f32 %v339, %v477
    %v499 = vadd.f32 %v341, %v481
    %v500 = vadd.f32 %v449, %v485
    %v501 = vadd.f32 %v345, %v477
    %v502 = vadd.f32 %v347, %v481
    %v503 = vadd.f32 %v454, %v485
    %v504 = vadd.f32 %v351, %v477
    %v505 = vadd.f32 %v353, %v481
    %v506 = vadd.f32 %v459, %v485
    %v507 = vadd.f32 %v357, %v477
    %v508 = vadd.f32 %v359, %v481
    %v509 = vadd.f32 %v464, %v485
    %v510 = vadd.f32 %v363, %v477
    %v511 = vadd.f32 %v365, %v481
    %v512 = vadd.f32 %v469, %v485
    %513 = vst [vmem:[#allocation4] sm:$0xff] %v489
    %514 = vst [vmem:[#allocation4 + $0x8] sm:$0xff] %v490
    %515 = vst [vmem:[#allocation4 + $0x10] sm:$0xff] %v491
    %516 = vst [vmem:[#allocation4 + $0x18] sm:$0xff] %v492
    %517 = vst [vmem:[#allocation4 + $0x20] sm:$0xff] %v493
    %518 = vst [vmem:[#allocation4 + $0x28] sm:$0xff] %v494
    %519 = vst [vmem:[#allocation4 + $0x30] sm:$0xff] %v495
    %520 = vst [vmem:[#allocation4 + $0x38] sm:$0xff] %v496
    %521 = vst [vmem:[#allocation4 + $0x40] sm:$0xff] %v497
    %522 = vst [vmem:[#allocation4 + $0x48] sm:$0xff] %v498
    %523 = vst [vmem:[#allocation4 + $0x50] sm:$0xff] %v499
    %524 = vst [vmem:[#allocation4 + $0x58] sm:$0xff] %v500
    %525 = vst [vmem:[#allocation4 + $0x60] sm:$0xff] %v501
    %526 = vst [vmem:[#allocation4 + $0x68] sm:$0xff] %v502
    %527 = vst [vmem:[#allocation4 + $0x70] sm:$0xff] %v503
    %528 = vst [vmem:[#allocation4 + $0x78] sm:$0xff] %v504
    %529 = vst [vmem:[#allocation4 + $0x80] sm:$0xff] %v505
    %530 = vst [vmem:[#allocation4 + $0x88] sm:$0xff] %v506
    %531 = vst [vmem:[#allocation4 + $0x90] sm:$0xff] %v507
    %532 = vst [vmem:[#allocation4 + $0x98] sm:$0xff] %v508
    %533 = vst [vmem:[#allocation4 + $0xa0] sm:$0xff] %v509
    %534 = vst [vmem:[#allocation4 + $0xa8] sm:$0xff] %v510
    %535 = vst [vmem:[#allocation4 + $0xb0] sm:$0xff] %v511
    %536 = vst [vmem:[#allocation4 + $0xb8] sm:$0xff] %v512
    %v537 = vld [vmem:[#allocation11] sm:$0xff]
    %v538 = vld [vmem:[#allocation11 + $0x8] sm:$0xff]
    %v539 = vld [vmem:[#allocation11 + $0x10] sm:$0xff]
    %v540 = vld [vmem:[#allocation11 + $0x18] sm:$0xff]
    %v541 = vld [vmem:[#allocation11 + $0x20] sm:$0xff]
    %v542 = vld [vmem:[#allocation11 + $0x28] sm:$0xff]
    %v543 = vld [vmem:[#allocation11 + $0x30] sm:$0xff]
    %v544 = vld [vmem:[#allocation11 + $0x38] sm:$0xff]
    %v545 = vld [vmem:[#allocation11 + $0x40] sm:$0xff]
    %v546 = vld [vmem:[#allocation11 + $0x48] sm:$0xff]
    %v547 = vld [vmem:[#allocation11 + $0x50] sm:$0xff]
    %v548 = vld [vmem:[#allocation11 + $0x58] sm:$0xff]
    %v549 = vld [vmem:[#allocation11 + $0x60] sm:$0xff]
    %v550 = vld [vmem:[#allocation11 + $0x68] sm:$0xff]
    %v551 = vld [vmem:[#allocation11 + $0x70] sm:$0xff]
    %v552 = vld [vmem:[#allocation11 + $0x78] sm:$0xff]
    %v553 = vld [vmem:[#allocation11 + $0x80] sm:$0xff]
    %v554 = vld [vmem:[#allocation11 + $0x88] sm:$0xff]
    %v555 = vld [vmem:[#allocation11 + $0x90] sm:$0xff]
    %v556 = vld [vmem:[#allocation11 + $0x98] sm:$0xff]
    %v557 = vld [vmem:[#allocation11 + $0xa0] sm:$0xff]
    %v558 = vld [vmem:[#allocation11 + $0xa8] sm:$0xff]
    %v559 = vld [vmem:[#allocation11 + $0xb0] sm:$0xff]
    %v560 = vld [vmem:[#allocation11 + $0xb8] sm:$0xff]
    %v561 = vld [vmem:[#allocation11 + $0xc0] sm:$0xff]
    %v562 = vld [vmem:[#allocation11 + $0xc8] sm:$0xff]
    %v563 = vld [vmem:[#allocation11 + $0xd0] sm:$0xff]
    %v564 = vld [vmem:[#allocation11 + $0xd8] sm:$0xff]
    %v565 = vld [vmem:[#allocation11 + $0xe0] sm:$0xff]
    %v566 = vld [vmem:[#allocation11 + $0xe8] sm:$0xff]
    %v567 = vld [vmem:[#allocation11 + $0xf0] sm:$0xff]
    %v568 = vld [vmem:[#allocation11 + $0xf8] sm:$0xff]
    %v569 = vld [vmem:[#allocation11 + $0x100] sm:$0xff]
    %v570 = vld [vmem:[#allocation11 + $0x108] sm:$0xff]
    %v571 = vld [vmem:[#allocation11 + $0x110] sm:$0xff]
    %v572 = vld [vmem:[#allocation11 + $0x118] sm:$0xff]
    %v573 = vld [vmem:[#allocation11 + $0x120] sm:$0xff]
    %v574 = vld [vmem:[#allocation11 + $0x128] sm:$0xff]
    %v575 = vld [vmem:[#allocation11 + $0x130] sm:$0xff]
    %v576 = vld [vmem:[#allocation11 + $0x138] sm:$0xff]
    %v577 = vld [vmem:[#allocation11 + $0x140] sm:$0xff]
    %v578 = vld [vmem:[#allocation11 + $0x148] sm:$0xff]
    %v579 = vld [vmem:[#allocation11 + $0x150] sm:$0xff]
    %v580 = vld [vmem:[#allocation11 + $0x158] sm:$0xff]
    %v581 = vld [vmem:[#allocation11 + $0x160] sm:$0xff]
    %v582 = vld [vmem:[#allocation11 + $0x168] sm:$0xff]
    %v583 = vld [vmem:[#allocation11 + $0x170] sm:$0xff]
    %v584 = vld [vmem:[#allocation11 + $0x178] sm:$0xff]
    %v585 = vld [vmem:[#allocation11 + $0x180] sm:$0xff]
    %v586 = vld [vmem:[#allocation11 + $0x188] sm:$0xff]
    %v587 = vld [vmem:[#allocation11 + $0x190] sm:$0xff]
    %v588 = vld [vmem:[#allocation11 + $0x198] sm:$0xff]
    %v589 = vld [vmem:[#allocation11 + $0x1a0] sm:$0xff]
    %v590 = vld [vmem:[#allocation11 + $0x1a8] sm:$0xff]
    %v591 = vld [vmem:[#allocation11 + $0x1b0] sm:$0xff]
    %v592 = vld [vmem:[#allocation11 + $0x1b8] sm:$0xff]
    %v593 = vld [vmem:[#allocation11 + $0x1c0] sm:$0xff]
    %v594 = vld [vmem:[#allocation11 + $0x1c8] sm:$0xff]
    %v595 = vld [vmem:[#allocation11 + $0x1d0] sm:$0xff]
    %v596 = vld [vmem:[#allocation11 + $0x1d8] sm:$0xff]
    %v597 = vld [vmem:[#allocation11 + $0x1e0] sm:$0xff]
    %v598 = vld [vmem:[#allocation11 + $0x1e8] sm:$0xff]
    %v599 = vld [vmem:[#allocation11 + $0x1f0] sm:$0xff]
    %v600 = vld [vmem:[#allocation11 + $0x1f8] sm:$0xff]
    %v601 = vld [vmem:[#allocation11 + $0x200] sm:$0xff]
    %v602 = vld [vmem:[#allocation11 + $0x208] sm:$0xff]
    %v603 = vld [vmem:[#allocation11 + $0x210] sm:$0xff]
    %v604 = vld [vmem:[#allocation11 + $0x218] sm:$0xff]
    %v605 = vld [vmem:[#allocation11 + $0x220] sm:$0xff]
    %v606 = vld [vmem:[#allocation11 + $0x228] sm:$0xff]
    %v607 = vld [vmem:[#allocation11 + $0x230] sm:$0xff]
    %v608 = vld [vmem:[#allocation11 + $0x238] sm:$0xff]
    %v609 = vld [vmem:[#allocation11 + $0x240] sm:$0xff]
    %v610 = vld [vmem:[#allocation11 + $0x248] sm:$0xff]
    %v611 = vld [vmem:[#allocation11 + $0x250] sm:$0xff]
    %v612 = vld [vmem:[#allocation11 + $0x258] sm:$0xff]
    %v613 = vld [vmem:[#allocation11 + $0x260] sm:$0xff]
    %v614 = vld [vmem:[#allocation11 + $0x268] sm:$0xff]
    %v615 = vld [vmem:[#allocation11 + $0x270] sm:$0xff]
    %v616 = vld [vmem:[#allocation11 + $0x278] sm:$0xff]
    %v617 = vld [vmem:[#allocation11 + $0x280] sm:$0xff]
    %v618 = vld [vmem:[#allocation11 + $0x288] sm:$0xff]
    %v619 = vld [vmem:[#allocation11 + $0x290] sm:$0xff]
    %v620 = vld [vmem:[#allocation11 + $0x298] sm:$0xff]
    %v621 = vld [vmem:[#allocation11 + $0x2a0] sm:$0xff]
    %v622 = vld [vmem:[#allocation11 + $0x2a8] sm:$0xff]
    %v623 = vld [vmem:[#allocation11 + $0x2b0] sm:$0xff]
    %v624 = vld [vmem:[#allocation11 + $0x2b8] sm:$0xff]
    %v625 = vld [vmem:[#allocation11 + $0x2c0] sm:$0xff]
    %v626 = vld [vmem:[#allocation11 + $0x2c8] sm:$0xff]
    %v627 = vld [vmem:[#allocation11 + $0x2d0] sm:$0xff]
    %v628 = vld [vmem:[#allocation11 + $0x2d8] sm:$0xff]
    %v629 = vld [vmem:[#allocation11 + $0x2e0] sm:$0xff]
    %v630 = vld [vmem:[#allocation11 + $0x2e8] sm:$0xff]
    %v631 = vld [vmem:[#allocation11 + $0x2f0] sm:$0xff]
    %v632 = vld [vmem:[#allocation11 + $0x2f8] sm:$0xff]
    %v633 = vld [vmem:[#allocation13] sm:$0xff]
    %v634 = vld [vmem:[#allocation13 + $0x8] sm:$0xff]
    %v635 = vld [vmem:[#allocation13 + $0x10] sm:$0xff]
    %v636 = vld [vmem:[#allocation13 + $0x18] sm:$0xff]
    %v637 = vld [vmem:[#allocation13 + $0x20] sm:$0xff]
    %v638 = vld [vmem:[#allocation13 + $0x28] sm:$0xff]
    %v639 = vld [vmem:[#allocation13 + $0x30] sm:$0xff]
    %v640 = vld [vmem:[#allocation13 + $0x38] sm:$0xff]
    %v641 = vld [vmem:[#allocation13 + $0x40] sm:$0xff]
    %v642 = vld [vmem:[#allocation13 + $0x48] sm:$0xff]
    %v643 = vld [vmem:[#allocation13 + $0x50] sm:$0xff]
    %v644 = vld [vmem:[#allocation13 + $0x58] sm:$0xff]
    %v645 = vld [vmem:[#allocation13 + $0x60] sm:$0xff]
    %v646 = vld [vmem:[#allocation13 + $0x68] sm:$0xff]
    %v647 = vld [vmem:[#allocation13 + $0x70] sm:$0xff]
    %v648 = vld [vmem:[#allocation13 + $0x78] sm:$0xff]
    %v649 = vld [vmem:[#allocation13 + $0x80] sm:$0xff]
    %v650 = vld [vmem:[#allocation13 + $0x88] sm:$0xff]
    %v651 = vld [vmem:[#allocation13 + $0x90] sm:$0xff]
    %v652 = vld [vmem:[#allocation13 + $0x98] sm:$0xff]
    %v653 = vld [vmem:[#allocation13 + $0xa0] sm:$0xff]
    %v654 = vld [vmem:[#allocation13 + $0xa8] sm:$0xff]
    %v655 = vld [vmem:[#allocation13 + $0xb0] sm:$0xff]
    %v656 = vld [vmem:[#allocation13 + $0xb8] sm:$0xff]
    %v657 = vld [vmem:[#allocation13 + $0xc0] sm:$0xff]
    %v658 = vld [vmem:[#allocation13 + $0xc8] sm:$0xff]
    %v659 = vld [vmem:[#allocation13 + $0xd0] sm:$0xff]
    %v660 = vld [vmem:[#allocation13 + $0xd8] sm:$0xff]
    %v661 = vld [vmem:[#allocation13 + $0xe0] sm:$0xff]
    %v662 = vld [vmem:[#allocation13 + $0xe8] sm:$0xff]
    %v663 = vld [vmem:[#allocation13 + $0xf0] sm:$0xff]
    %v664 = vld [vmem:[#allocation13 + $0xf8] sm:$0xff]
    %v665 = vld [vmem:[#allocation13 + $0x100] sm:$0xff]
    %v666 = vld [vmem:[#allocation13 + $0x108] sm:$0xff]
    %v667 = vld [vmem:[#allocation13 + $0x110] sm:$0xff]
    %v668 = vld [vmem:[#allocation13 + $0x118] sm:$0xff]
    %v669 = vld [vmem:[#allocation13 + $0x120] sm:$0xff]
    %v670 = vld [vmem:[#allocation13 + $0x128] sm:$0xff]
    %v671 = vld [vmem:[#allocation13 + $0x130] sm:$0xff]
    %v672 = vld [vmem:[#allocation13 + $0x138] sm:$0xff]
    %v673 = vld [vmem:[#allocation13 + $0x140] sm:$0xff]
    %v674 = vld [vmem:[#allocation13 + $0x148] sm:$0xff]
    %v675 = vld [vmem:[#allocation13 + $0x150] sm:$0xff]
    %v676 = vld [vmem:[#allocation13 + $0x158] sm:$0xff]
    %v677 = vld [vmem:[#allocation13 + $0x160] sm:$0xff]
    %v678 = vld [vmem:[#allocation13 + $0x168] sm:$0xff]
    %v679 = vld [vmem:[#allocation13 + $0x170] sm:$0xff]
    %v680 = vld [vmem:[#allocation13 + $0x178] sm:$0xff]
    %v681 = vld [vmem:[%s10] sm:$0x7]
    %v682 = vld [vmem:[%s9] sm:$0x1]
    %v683 = vld [vmem:[%s11] sm:$0x1]
    %v684 = vld [vmem:[%s2] sm:$0xff]
    %s685 = smul.u32 0, 8
    %v686 = vld [vmem:[#allocation2] sm:$0xff]
    %v687 = vld [vmem:[#allocation3] sm:$0xff]
    %688 = vmatprep.subr.mxu0 %v538
    %689 = vmatpush1.msra.mxu0 %v537
    %690 = vmatprep.subr.mxu0 %v544
    %691 = vmatpush1.msra.mxu0 %v543
    %692 = vmatprep.subr.mxu0 %v550
    %693 = vmatpush1.msra.mxu0 %v549
    %694 = vmatprep.subr.mxu0 %v556
    %695 = vmatpush1.msra.mxu0 %v555
    %696 = vmatprep.subr.mxu0 %v562
    %697 = vmatpush1.msra.mxu0 %v561
    %698 = vmatprep.subr.mxu0 %v568
    %699 = vmatpush1.msra.mxu0 %v567
    %700 = vmatprep.subr.mxu0 %v574
    %701 = vmatpush1.msra.mxu0 %v573
    %702 = vmatprep.subr.mxu0 %v580
    %703 = vmatpush1.msra.mxu0 %v579
    %704 = vmatprep.subr.mxu0 %v586
    %705 = vmatpush1.msra.mxu0 %v585
    %706 = vmatprep.subr.mxu0 %v592
    %707 = vmatpush1.msra.mxu0 %v591
    %708 = vmatprep.subr.mxu0 %v598
    %709 = vmatpush1.msra.mxu0 %v597
    %710 = vmatprep.subr.mxu0 %v604
    %711 = vmatpush1.msra.mxu0 %v603
    %712 = vmatprep.subr.mxu0 %v610
    %713 = vmatpush1.msra.mxu0 %v609
    %714 = vmatprep.subr.mxu0 %v616
    %715 = vmatpush1.msra.mxu0 %v615
    %716 = vmatprep.subr.mxu0 %v622
    %717 = vmatpush1.msra.mxu0 %v621
    %718 = vmatprep.subr.mxu0 %v628
    %719 = vmatpush1.msra.mxu0 %v627
    %720 = vmatprep.subr.mxu0 0.0
    %721 = vmatpush1.msra.mxu0 0.0
    %722 = vmatprep.subr.mxu0 0.0
    %723 = vmatpush1.msra.mxu0 0.0
    %724 = vmatprep.subr.mxu0 0.0
    %725 = vmatpush1.msra.mxu0 0.0
    %726 = vmatprep.subr.mxu0 0.0
    %727 = vmatpush1.msra.mxu0 0.0
    %728 = vmatprep.subr.mxu0 0.0
    %729 = vmatpush1.msra.mxu0 0.0
    %730 = vmatprep.subr.mxu0 0.0
    %731 = vmatpush1.msra.mxu0 0.0
    %732 = vmatprep.subr.mxu0 0.0
    %733 = vmatpush1.msra.mxu0 0.0
    %734 = vmatprep.subr.mxu0 0.0
    %735 = vmatpush1.msra.mxu0 0.0
    %736 = vmatprep.subr.mxu0 0.0
    %737 = vmatpush1.msra.mxu0 0.0
    %738 = vmatprep.subr.mxu0 0.0
    %739 = vmatpush1.msra.mxu0 0.0
    %740 = vmatprep.subr.mxu0 0.0
    %741 = vmatpush1.msra.mxu0 0.0
    %742 = vmatprep.subr.mxu0 0.0
    %743 = vmatpush1.msra.mxu0 0.0
    %744 = vmatprep.subr.mxu0 0.0
    %745 = vmatpush1.msra.mxu0 0.0
    %746 = vmatprep.subr.mxu0 0.0
    %747 = vmatpush1.msra.mxu0 0.0
    %748 = vmatprep.subr.mxu0 0.0
    %749 = vmatpush1.msra.mxu0 0.0
    %750 = vmatprep.subr.mxu0 0.0
    %751 = vmatpush1.msra.mxu0 0.0
    %752 = vmatprep.mubr.f32.mxu0 0.0
    %753 = vmatmul.mubr.f32.gmra.mrb[0].mxu0 %v686
    %v754 = vpop.f32.mrb[0].mxu0
    %v755 = vadd.f32 0.0, %v754
    %v756 = vpop.f32.mrb[0].mxu0
    %v757 = vadd.f32 0.0, %v756
    %758 = vdwg.mxu0
    %759 = vmatprep.subr.mxu0 %v540
    %760 = vmatpush1.msra.mxu0 %v539
    %761 = vmatprep.subr.mxu0 %v546
    %762 = vmatpush1.msra.mxu0 %v545
    %763 = vmatprep.subr.mxu0 %v552
    %764 = vmatpush1.msra.mxu0 %v551
    %765 = vmatprep.subr.mxu0 %v558
    %766 = vmatpush1.msra.mxu0 %v557
    %767 = vmatprep.subr.mxu0 %v564
    %768 = vmatpush1.msra.mxu0 %v563
    %769 = vmatprep.subr.mxu0 %v570
    %770 = vmatpush1.msra.mxu0 %v569
    %771 = vmatprep.subr.mxu0 %v576
    %772 = vmatpush1.msra.mxu0 %v575
    %773 = vmatprep.subr.mxu0 %v582
    %774 = vmatpush1.msra.mxu0 %v581
    %775 = vmatprep.subr.mxu0 %v588
    %776 = vmatpush1.msra.mxu0 %v587
    %777 = vmatprep.subr.mxu0 %v594
    %778 = vmatpush1.msra.mxu0 %v593
    %779 = vmatprep.subr.mxu0 %v600
    %780 = vmatpush1.msra.mxu0 %v599
    %781 = vmatprep.subr.mxu0 %v606
    %782 = vmatpush1.msra.mxu0 %v605
    %783 = vmatprep.subr.mxu0 %v612
    %784 = vmatpush1.msra.mxu0 %v611
    %785 = vmatprep.subr.mxu0 %v618
    %786 = vmatpush1.msra.mxu0 %v617
    %787 = vmatprep.subr.mxu0 %v624
    %788 = vmatpush1.msra.mxu0 %v623
    %789 = vmatprep.subr.mxu0 %v630
    %790 = vmatpush1.msra.mxu0 %v629
    %791 = vmatprep.subr.mxu0 0.0
    %792 = vmatpush1.msra.mxu0 0.0
    %793 = vmatprep.subr.mxu0 0.0
    %794 = vmatpush1.msra.mxu0 0.0
    %795 = vmatprep.subr.mxu0 0.0
    %796 = vmatpush1.msra.mxu0 0.0
    %797 = vmatprep.subr.mxu0 0.0
    %798 = vmatpush1.msra.mxu0 0.0
    %799 = vmatprep.subr.mxu0 0.0
    %800 = vmatpush1.msra.mxu0 0.0
    %801 = vmatprep.subr.mxu0 0.0
    %802 = vmatpush1.msra.mxu0 0.0
    %803 = vmatprep.subr.mxu0 0.0
    %804 = vmatpush1.msra.mxu0 0.0
    %805 = vmatprep.subr.mxu0 0.0
    %806 = vmatpush1.msra.mxu0 0.0
    %807 = vmatprep.subr.mxu0 0.0
    %808 = vmatpush1.msra.mxu0 0.0
    %809 = vmatprep.subr.mxu0 0.0
    %810 = vmatpush1.msra.mxu0 0.0
    %811 = vmatprep.subr.mxu0 0.0
    %812 = vmatpush1.msra.mxu0 0.0
    %813 = vmatprep.subr.mxu0 0.0
    %814 = vmatpush1.msra.mxu0 0.0
    %815 = vmatprep.subr.mxu0 0.0
    %816 = vmatpush1.msra.mxu0 0.0
    %817 = vmatprep.subr.mxu0 0.0
    %818 = vmatpush1.msra.mxu0 0.0
    %819 = vmatprep.subr.mxu0 0.0
    %820 = vmatpush1.msra.mxu0 0.0
    %821 = vmatprep.subr.mxu0 0.0
    %822 = vmatpush1.msra.mxu0 0.0
    %823 = vmatprep.mubr.f32.mxu0 0.0
    %824 = vmatmul.mubr.f32.gmra.mrb[0].mxu0 %v686
    %v825 = vpop.f32.mrb[0].mxu0
    %v826 = vadd.f32 0.0, %v825
    %v827 = vpop.f32.mrb[0].mxu0
    %828 = vdwg.mxu0
    %v829 = vld [vmem:[#allocation4] sm:$0xff]
    %v830 = vld [vmem:[#allocation4 + $0x8] sm:$0xff]
    %v831 = vld [vmem:[#allocation4 + $0x10] sm:$0xff]
    %v832 = vadd.f32 %v829, %v755
    %v833 = vxor.u32 %v832, 2147483648
    %v834 = vmul.f32 %v833, 1.442695
    %v835 = vpow.pop %v834
    %v836 = vadd.f32 %v835, 1.0
    %v837 = vrcp.pop %v836
    %v838 = vmul.f32 1.0, %v837
    %v839 = vadd.f32 %v830, %v757
    %v840 = vxor.u32 %v839, 2147483648
    %v841 = vmul.f32 %v840, 1.442695
    %v842 = vpow.pop %v841
    %v843 = vadd.f32 %v842, 1.0
    %v844 = vrcp.pop %v843
    %v845 = vmul.f32 1.0, %v844
    %v847 = vlaneseq
    %v848 = vshrl.u32 %v847, 7
    %v849 = vsub.s32 0, %v848
    %v850 = vrot.slane %v682, %v849
    %v852 = vadd.f32 %v826, %v850
    %v853 = vmul.f32 %v838, %v852
    %v854 = vadd.f32 %v831, %v853
    %v855 = vtanh.pop %v854
    %v856 = vsub.f32 1.0, %v845
    %v857 = vmul.f32 %v856, %v855
    %v858 = vmul.f32 %v845, %v686
    %v859 = vadd.f32 %v857, %v858
    %860 = vmatprep.subr.mxu0 %v538
    %861 = vmatpush1.msra.mxu0 %v537
    %862 = vmatprep.subr.mxu0 %v544
    %863 = vmatpush1.msra.mxu0 %v543
    %864 = vmatprep.subr.mxu0 %v550
    %865 = vmatpush1.msra.mxu0 %v549
    %866 = vmatprep.subr.mxu0 %v556
    %867 = vmatpush1.msra.mxu0 %v555
    %868 = vmatprep.subr.mxu0 %v562
    %869 = vmatpush1.msra.mxu0 %v561
    %870 = vmatprep.subr.mxu0 %v568
    %871 = vmatpush1.msra.mxu0 %v567
    %872 = vmatprep.subr.mxu0 %v574
    %873 = vmatpush1.msra.mxu0 %v573
    %874 = vmatprep.subr.mxu0 %v580
    %875 = vmatpush1.msra.mxu0 %v579
    %876 = vmatprep.subr.mxu0 %v586
    %877 = vmatpush1.msra.mxu0 %v585
    %878 = vmatprep.subr.mxu0 %v592
    %879 = vmatpush1.msra.mxu0 %v591
    %880 = vmatprep.subr.mxu0 %v598
    %881 = vmatpush1.msra.mxu0 %v597
    %882 = vmatprep.subr.mxu0 %v604
    %883 = vmatpush1.msra.mxu0 %v603
    %884 = vmatprep.subr.mxu0 %v610
    %885 = vmatpush1.msra.mxu0 %v609
    %886 = vmatprep.subr.mxu0 %v616
    %887 = vmatpush1.msra.mxu0 %v615
    %888 = vmatprep.subr.mxu0 %v622
    %889 = vmatpush1.msra.mxu0 %v621
    %890 = vmatprep.subr.mxu0 %v628
    %891 = vmatpush1.msra.mxu0 %v627
    %892 = vmatprep.subr.mxu0 0.0
    %893 = vmatpush1.msra.mxu0 0.0
    %894 = vmatprep.subr.mxu0 0.0
    %895 = vmatpush1.msra.mxu0 0.0
    %896 = vmatprep.subr.mxu0 0.0
    %897 = vmatpush1.msra.mxu0 0.0
    %898 = vmatprep.subr.mxu0 0.0
    %899 = vmatpush1.msra.mxu0 0.0
    %900 = vmatprep.subr.mxu0 0.0
    %901 = vmatpush1.msra.mxu0 0.0
    %902 = vmatprep.subr.mxu0 0.0
    %903 = vmatpush1.msra.mxu0 0.0
    %904 = vmatprep.subr.mxu0 0.0
    %905 = vmatpush1.msra.mxu0 0.0
    %906 = vmatprep.subr.mxu0 0.0
    %907 = vmatpush1.msra.mxu0 0.0
    %908 = vmatprep.subr.mxu0 0.0
    %909 = vmatpush1.msra.mxu0 0.0
    %910 = vmatprep.subr.mxu0 0.0
    %911 = vmatpush1.msra.mxu0 0.0
    %912 = vmatprep.subr.mxu0 0.0
    %913 = vmatpush1.msra.mxu0 0.0
    %914 = vmatprep.subr.mxu0 0.0
    %915 = vmatpush1.msra.mxu0 0.0
    %916 = vmatprep.subr.mxu0 0.0
    %917 = vmatpush1.msra.mxu0 0.0
    %918 = vmatprep.subr.mxu0 0.0
    %919 = vmatpush1.msra.mxu0 0.0
    %920 = vmatprep.subr.mxu0 0.0
    %921 = vmatpush1.msra.mxu0 0.0
    %922 = vmatprep.subr.mxu0 0.0
    %923 = vmatpush1.msra.mxu0 0.0
    %924 = vmatprep.mubr.f32.mxu0 0.0
    %925 = vmatmul.mubr.f32.gmra.mrb[0].mxu0 %v859
    %v926 = vpop.f32.mrb[0].mxu0
    %v927 = vadd.f32 0.0, %v926
    %v928 = vpop.f32.mrb[0].mxu0
    %v929 = vadd.f32 0.0, %v928
    %930 = vdwg.mxu0
    %931 = vmatprep.subr.mxu0 %v540
    %932 = vmatpush1.msra.mxu0 %v539
    %933 = vmatprep.subr.mxu0 %v546
    %934 = vmatpush1.msra.mxu0 %v545
    %935 = vmatprep.subr.mxu0 %v552
    %936 = vmatpush1.msra.mxu0 %v551
    %937 = vmatprep.subr.mxu0 %v558
    %938 = vmatpush1.msra.mxu0 %v557
    %939 = vmatprep.subr.mxu0 %v564
    %940 = vmatpush1.msra.mxu0 %v563
    %941 = vmatprep.subr.mxu0 %v570
    %942 = vmatpush1.msra.mxu0 %v569
    %943 = vmatprep.subr.mxu0 %v576
    %944 = vmatpush1.msra.mxu0 %v575
    %945 = vmatprep.subr.mxu0 %v582
    %946 = vmatpush1.msra.mxu0 %v581
    %947 = vmatprep.subr.mxu0 %v588
    %948 = vmatpush1.msra.mxu0 %v587
    %949 = vmatprep.subr.mxu0 %v594
    %950 = vmatpush1.msra.mxu0 %v593
    %951 = vmatprep.subr.mxu0 %v600
    %952 = vmatpush1.msra.mxu0 %v599
    %953 = vmatprep.subr.mxu0 %v606
    %954 = vmatpush1.msra.mxu0 %v605
    %955 = vmatprep.subr.mxu0 %v612
    %956 = vmatpush1.msra.mxu0 %v611
    %957 = vmatprep.subr.mxu0 %v618
    %958 = vmatpush1.msra.mxu0 %v617
    %959 = vmatprep.subr.mxu0 %v624
    %960 = vmatpush1.msra.mxu0 %v623
    %961 = vmatprep.subr.mxu0 %v630
    %962 = vmatpush1.msra.mxu0 %v629
    %963 = vmatprep.subr.mxu0 0.0
    %964 = vmatpush1.msra.mxu0 0.0
    %965 = vmatprep.subr.mxu0 0.0
    %966 = vmatpush1.msra.mxu0 0.0
    %967 = vmatprep.subr.mxu0 0.0
    %968 = vmatpush1.msra.mxu0 0.0
    %969 = vmatprep.subr.mxu0 0.0
    %970 = vmatpush1.msra.mxu0 0.0
    %971 = vmatprep.subr.mxu0 0.0
    %972 = vmatpush1.msra.mxu0 0.0
    %973 = vmatprep.subr.mxu0 0.0
    %974 = vmatpush1.msra.mxu0 0.0
    %975 = vmatprep.subr.mxu0 0.0
    %976 = vmatpush1.msra.mxu0 0.0
    %977 = vmatprep.subr.mxu0 0.0
    %978 = vmatpush1.msra.mxu0 0.0
    %979 = vmatprep.subr.mxu0 0.0
    %980 = vmatpush1.msra.mxu0 0.0
    %981 = vmatprep.subr.mxu0 0.0
    %982 = vmatpush1.msra.mxu0 0.0
    %983 = vmatprep.subr.mxu0 0.0
    %984 = vmatpush1.msra.mxu0 0.0
    %985 = vmatprep.subr.mxu0 0.0
    %986 = vmatpush1.msra.mxu0 0.0
    %987 = vmatprep.subr.mxu0 0.0
    %988 = vmatpush1.msra.mxu0 0.0
    %989 = vmatprep.subr.mxu0 0.0
    %990 = vmatpush1.msra.mxu0 0.0
    %991 = vmatprep.subr.mxu0 0.0
    %992 = vmatpush1.msra.mxu0 0.0
    %993 = vmatprep.subr.mxu0 0.0
    %994 = vmatpush1.msra.mxu0 0.0
    %995 = vmatprep.mubr.f32.mxu0 0.0
    %996 = vmatmul.mubr.f32.gmra.mrb[0].mxu0 %v859
    %v997 = vpop.f32.mrb[0].mxu0
    %v998 = vadd.f32 0.0, %v997
    %v999 = vpop.f32.mrb[0].mxu0
    %v1000 = vadd.f32 0.0, %v999
    %1001 = vdwg.mxu0
    %1002 = vmatprep.subr.mxu0 %v542
    %1003 = vmatpush1.msra.mxu0 %v541
    %1004 = vmatprep.subr.mxu0 %v548
    %1005 = vmatpush1.msra.mxu0 %v547
    %1006 = vmatprep.subr.mxu0 %v554
    %1007 = vmatpush1.msra.mxu0 %v553
    %1008 = vmatprep.subr.mxu0 %v560
    %1009 = vmatpush1.msra.mxu0 %v559
    %1010 = vmatprep.subr.mxu0 %v566
    %1011 = vmatpush1.msra.mxu0 %v565
    %1012 = vmatprep.subr.mxu0 %v572
    %1013 = vmatpush1.msra.mxu0 %v571
    %1014 = vmatprep.subr.mxu0 %v578
    %1015 = vmatpush1.msra.mxu0 %v577
    %1016 = vmatprep.subr.mxu0 %v584
    %1017 = vmatpush1.msra.mxu0 %v583
    %1018 = vmatprep.subr.mxu0 %v590
    %1019 = vmatpush1.msra.mxu0 %v589
    %1020 = vmatprep.subr.mxu0 %v596
    %1021 = vmatpush1.msra.mxu0 %v595
    %1022 = vmatprep.subr.mxu0 %v602
    %1023 = vmatpush1.msra.mxu0 %v601
    %1024 = vmatprep.subr.mxu0 %v608
    %1025 = vmatpush1.msra.mxu0 %v607
    %1026 = vmatprep.subr.mxu0 %v614
    %1027 = vmatpush1.msra.mxu0 %v613
    %1028 = vmatprep.subr.mxu0 %v620
    %1029 = vmatpush1.msra.mxu0 %v619
    %1030 = vmatprep.subr.mxu0 %v626
    %1031 = vmatpush1.msra.mxu0 %v625
    %1032 = vmatprep.subr.mxu0 %v632
    %1033 = vmatpush1.msra.mxu0 %v631
    %1034 = vmatprep.subr.mxu0 0.0
    %1035 = vmatpush1.msra.mxu0 0.0
    %1036 = vmatprep.subr.mxu0 0.0
    %1037 = vmatpush1.msra.mxu0 0.0
    %1038 = vmatprep.subr.mxu0 0.0
    %1039 = vmatpush1.msra.mxu0 0.0
    %1040 = vmatprep.subr.mxu0 0.0
    %1041 = vmatpush1.msra.mxu0 0.0
    %1042 = vmatprep.subr.mxu0 0.0
    %1043 = vmatpush1.msra.mxu0 0.0
    %1044 = vmatprep.subr.mxu0 0.0
    %1045 = vmatpush1.msra.mxu0 0.0
    %1046 = vmatprep.subr.mxu0 0.0
    %1047 = vmatpush1.msra.mxu0 0.0
    %1048 = vmatprep.subr.mxu0 0.0
    %1049 = vmatpush1.msra.mxu0 0.0
    %1050 = vmatprep.subr.mxu0 0.0
    %1051 = vmatpush1.msra.mxu0 0.0
    %1052 = vmatprep.subr.mxu0 0.0
    %1053 = vmatpush1.msra.mxu0 0.0
    %1054 = vmatprep.subr.mxu0 0.0
    %1055 = vmatpush1.msra.mxu0 0.0
    %1056 = vmatprep.subr.mxu0 0.0
    %1057 = vmatpush1.msra.mxu0 0.0
    %1058 = vmatprep.subr.mxu0 0.0
    %1059 = vmatpush1.msra.mxu0 0.0
    %1060 = vmatprep.subr.mxu0 0.0
    %1061 = vmatpush1.msra.mxu0 0.0
    %1062 = vmatprep.subr.mxu0 0.0
    %1063 = vmatpush1.msra.mxu0 0.0
    %1064 = vmatprep.subr.mxu0 0.0
    %1065 = vmatpush1.msra.mxu0 0.0
    %1066 = vmatprep.mubr.f32.mxu0 0.0
    %1067 = vmatmul.mubr.f32.gmra.mrb[0].mxu0 %v859
    %v1068 = vpop.f32.mrb[0].mxu0
    %v1069 = vadd.f32 0.0, %v1068
    %v1070 = vpop.f32.mrb[0].mxu0
    %v1071 = vadd.f32 0.0, %v1070
    %1072 = vdwg.mxu0
    %v1074 = vlaneseq
    %v1075 = vshrl.u32 %v1074, 7
    %v1076 = vsub.s32 0, %v1075
    %v1077 = vrot.slane %v681, %v1076
    %v1078 = vlaneseq
    %v1079 = vshrl.u32 %v1078, 7
    %v1080 = vsub.s32 1, %v1079
    %v1081 = vrot.slane %v681, %v1080
    %v1082 = vlaneseq
    %v1083 = vshrl.u32 %v1082, 7
    %v1084 = vsub.s32 2, %v1083
    %v1085 = vrot.slane %v681, %v1084
    %v1089 = vadd.f32 %v1000, %v1077
    %v1090 = vadd.f32 %v1069, %v1081
    %v1091 = vadd.f32 %v1071, %v1085
    %1092 = vmatprep.subr.mxu0 %v634
    %1093 = vmatpush1.msra.mxu0 %v633
    %1094 = vmatprep.subr.mxu0 %v637
    %1095 = vmatpush1.msra.mxu0 %v636
    %1096 = vmatprep.subr.mxu0 %v640
    %1097 = vmatpush1.msra.mxu0 %v639
    %1098 = vmatprep.subr.mxu0 %v643
    %1099 = vmatpush1.msra.mxu0 %v642
    %1100 = vmatprep.subr.mxu0 %v646
    %1101 = vmatpush1.msra.mxu0 %v645
    %1102 = vmatprep.subr.mxu0 %v649
    %1103 = vmatpush1.msra.mxu0 %v648
    %1104 = vmatprep.subr.mxu0 %v652
    %1105 = vmatpush1.msra.mxu0 %v651
    %1106 = vmatprep.subr.mxu0 %v655
    %1107 = vmatpush1.msra.mxu0 %v654
    %1108 = vmatprep.subr.mxu0 %v658
    %1109 = vmatpush1.msra.mxu0 %v657
    %1110 = vmatprep.subr.mxu0 %v661
    %1111 = vmatpush1.msra.mxu0 %v660
    %1112 = vmatprep.subr.mxu0 %v664
    %1113 = vmatpush1.msra.mxu0 %v663
    %1114 = vmatprep.subr.mxu0 %v667
    %1115 = vmatpush1.msra.mxu0 %v666
    %1116 = vmatprep.subr.mxu0 %v670
    %1117 = vmatpush1.msra.mxu0 %v669
    %1118 = vmatprep.subr.mxu0 %v673
    %1119 = vmatpush1.msra.mxu0 %v672
    %1120 = vmatprep.subr.mxu0 %v676
    %1121 = vmatpush1.msra.mxu0 %v675
    %1122 = vmatprep.subr.mxu0 %v679
    %1123 = vmatpush1.msra.mxu0 %v678
    %1124 = vmatprep.subr.mxu0 0.0
    %1125 = vmatpush1.msra.mxu0 0.0
    %1126 = vmatprep.subr.mxu0 0.0
    %1127 = vmatpush1.msra.mxu0 0.0
    %1128 = vmatprep.subr.mxu0 0.0
    %1129 = vmatpush1.msra.mxu0 0.0
    %1130 = vmatprep.subr.mxu0 0.0
    %1131 = vmatpush1.msra.mxu0 0.0
    %1132 = vmatprep.subr.mxu0 0.0
    %1133 = vmatpush1.msra.mxu0 0.0
    %1134 = vmatprep.subr.mxu0 0.0
    %1135 = vmatpush1.msra.mxu0 0.0
    %1136 = vmatprep.subr.mxu0 0.0
    %1137 = vmatpush1.msra.mxu0 0.0
    %1138 = vmatprep.subr.mxu0 0.0
    %1139 = vmatpush1.msra.mxu0 0.0
    %1140 = vmatprep.subr.mxu0 0.0
    %1141 = vmatpush1.msra.mxu0 0.0
    %1142 = vmatprep.subr.mxu0 0.0
    %1143 = vmatpush1.msra.mxu0 0.0
    %1144 = vmatprep.subr.mxu0 0.0
    %1145 = vmatpush1.msra.mxu0 0.0
    %1146 = vmatprep.subr.mxu0 0.0
    %1147 = vmatpush1.msra.mxu0 0.0
    %1148 = vmatprep.subr.mxu0 0.0
    %1149 = vmatpush1.msra.mxu0 0.0
    %1150 = vmatprep.subr.mxu0 0.0
    %1151 = vmatpush1.msra.mxu0 0.0
    %1152 = vmatprep.subr.mxu0 0.0
    %1153 = vmatpush1.msra.mxu0 0.0
    %1154 = vmatprep.subr.mxu0 0.0
    %1155 = vmatpush1.msra.mxu0 0.0
    %1156 = vmatprep.mubr.f32.mxu0 0.0
    %1157 = vmatmul.mubr.f32.gmra.mrb[0].mxu0 %v687
    %v1158 = vpop.f32.mrb[0].mxu0
    %v1159 = vadd.f32 0.0, %v1158
    %v1160 = vpop.f32.mrb[0].mxu0
    %v1161 = vadd.f32 0.0, %v1160
    %1162 = vdwg.mxu0
    %1163 = vmatprep.subr.mxu0 0.0
    %1164 = vmatpush1.msra.mxu0 %v635
    %1165 = vmatprep.subr.mxu0 0.0
    %1166 = vmatpush1.msra.mxu0 %v638
    %1167 = vmatprep.subr.mxu0 0.0
    %1168 = vmatpush1.msra.mxu0 %v641
    %1169 = vmatprep.subr.mxu0 0.0
    %1170 = vmatpush1.msra.mxu0 %v644
    %1171 = vmatprep.subr.mxu0 0.0
    %1172 = vmatpush1.msra.mxu0 %v647
    %1173 = vmatprep.subr.mxu0 0.0
    %1174 = vmatpush1.msra.mxu0 %v650
    %1175 = vmatprep.subr.mxu0 0.0
    %1176 = vmatpush1.msra.mxu0 %v653
    %1177 = vmatprep.subr.mxu0 0.0
    %1178 = vmatpush1.msra.mxu0 %v656
    %1179 = vmatprep.subr.mxu0 0.0
    %1180 = vmatpush1.msra.mxu0 %v659
    %1181 = vmatprep.subr.mxu0 0.0
    %1182 = vmatpush1.msra.mxu0 %v662
    %1183 = vmatprep.subr.mxu0 0.0
    %1184 = vmatpush1.msra.mxu0 %v665
    %1185 = vmatprep.subr.mxu0 0.0
    %1186 = vmatpush1.msra.mxu0 %v668
    %1187 = vmatprep.subr.mxu0 0.0
    %1188 = vmatpush1.msra.mxu0 %v671
    %1189 = vmatprep.subr.mxu0 0.0
    %1190 = vmatpush1.msra.mxu0 %v674
    %1191 = vmatprep.subr.mxu0 0.0
    %1192 = vmatpush1.msra.mxu0 %v677
    %1193 = vmatprep.subr.mxu0 0.0
    %1194 = vmatpush1.msra.mxu0 %v680
    %1195 = vmatprep.subr.mxu0 0.0
    %1196 = vmatpush1.msra.mxu0 0.0
    %1197 = vmatprep.subr.mxu0 0.0
    %1198 = vmatpush1.msra.mxu0 0.0
    %1199 = vmatprep.subr.mxu0 0.0
    %1200 = vmatpush1.msra.mxu0 0.0
    %1201 = vmatprep.subr.mxu0 0.0
    %1202 = vmatpush1.msra.mxu0 0.0
    %1203 = vmatprep.subr.mxu0 0.0
    %1204 = vmatpush1.msra.mxu0 0.0
    %1205 = vmatprep.subr.mxu0 0.0
    %1206 = vmatpush1.msra.mxu0 0.0
    %1207 = vmatprep.subr.mxu0 0.0
    %1208 = vmatpush1.msra.mxu0 0.0
    %1209 = vmatprep.subr.mxu0 0.0
    %1210 = vmatpush1.msra.mxu0 0.0
    %1211 = vmatprep.subr.mxu0 0.0
    %1212 = vmatpush1.msra.mxu0 0.0
    %1213 = vmatprep.subr.mxu0 0.0
    %1214 = vmatpush1.msra.mxu0 0.0
    %1215 = vmatprep.subr.mxu0 0.0
    %1216 = vmatpush1.msra.mxu0 0.0
    %1217 = vmatprep.subr.mxu0 0.0
    %1218 = vmatpush1.msra.mxu0 0.0
    %1219 = vmatprep.subr.mxu0 0.0
    %1220 = vmatpush1.msra.mxu0 0.0
    %1221 = vmatprep.subr.mxu0 0.0
    %1222 = vmatpush1.msra.mxu0 0.0
    %1223 = vmatprep.subr.mxu0 0.0
    %1224 = vmatpush1.msra.mxu0 0.0
    %1225 = vmatprep.subr.mxu0 0.0
    %1226 = vmatpush1.msra.mxu0 0.0
    %1227 = vmatprep.mubr.f32.mxu0 0.0
    %1228 = vmatmul.mubr.f32.gmra.mrb[0].mxu0 %v687
    %v1229 = vpop.f32.mrb[0].mxu0
    %v1230 = vadd.f32 0.0, %v1229
    %v1231 = vpop.f32.mrb[0].mxu0
    %1232 = vdwg.mxu0
    %s1233 = scalar_lea.vmem [#allocation4], 24
    %v1234 = vld [vmem:[%s1233] sm:$0xff]
    %v1235 = vld [vmem:[%s1233 + $0x8] sm:$0xff]
    %v1236 = vld [vmem:[%s1233 + $0x10] sm:$0xff]
    %v1237 = vadd.f32 %v1234, %v927
    %v1238 = vxor.u32 %v1237, 2147483648
    %v1239 = vmul.f32 %v1238, 1.442695
    %v1240 = vpow.pop %v1239
    %v1241 = vadd.f32 %v1240, 1.0
    %v1242 = vrcp.pop %v1241
    %v1243 = vmul.f32 1.0, %v1242
    %v1244 = vadd.f32 %v1235, %v929
    %v1245 = vxor.u32 %v1244, 2147483648
    %v1246 = vmul.f32 %v1245, 1.442695
    %v1247 = vpow.pop %v1246
    %v1248 = vadd.f32 %v1247, 1.0
    %v1249 = vrcp.pop %v1248
    %v1250 = vmul.f32 1.0, %v1249
    %v1251 = vadd.f32 %v998, %v850
    %v1252 = vmul.f32 %v1243, %v1251
    %v1253 = vadd.f32 %v1236, %v1252
    %v1254 = vtanh.pop %v1253
    %v1255 = vsub.f32 1.0, %v1250
    %v1256 = vmul.f32 %v1255, %v1254
    %v1257 = vmul.f32 %v1250, %v859
    %v1258 = vadd.f32 %v1256, %v1257
    %v1259 = vadd.f32 %v1089, %v1159
    %v1260 = vxor.u32 %v1259, 2147483648
    %v1261 = vmul.f32 %v1260, 1.442695
    %v1262 = vpow.pop %v1261
    %v1263 = vadd.f32 %v1262, 1.0
    %v1264 = vrcp.pop %v1263
    %v1265 = vmul.f32 1.0, %v1264
    %v1266 = vadd.f32 %v1090, %v1161
    %v1267 = vxor.u32 %v1266, 2147483648
    %v1268 = vmul.f32 %v1267, 1.442695
    %v1269 = vpow.pop %v1268
    %v1270 = vadd.f32 %v1269, 1.0
    %v1271 = vrcp.pop %v1270
    %v1272 = vmul.f32 1.0, %v1271
    %v1274 = vlaneseq
    %v1275 = vshrl.u32 %v1274, 7
    %v1276 = vsub.s32 0, %v1275
    %v1277 = vrot.slane %v683, %v1276
    %v1279 = vadd.f32 %v1230, %v1277
    %v1280 = vmul.f32 %v1265, %v1279
    %v1281 = vadd.f32 %v1091, %v1280
    %v1282 = vtanh.pop %v1281
    %v1283 = vsub.f32 1.0, %v1272
    %v1284 = vmul.f32 %v1283, %v1282
    %v1285 = vmul.f32 %v1272, %v687
    %v1286 = vadd.f32 %v1284, %v1285
    %v1287 = vstv %s685
    %vm1288 = vcmp.lt.s32.totalorder %v1287, %v684
    %v1289 = vsel %vm1288, 1, 0
    %v1290 = vcvt.s32.f32 %v1289
    %1292 = vset.pattern.permute.xlu0 0
    %1293 = vperm.xlu0 %1292, %v1290
    %v1294 = vpop.permute.xlu0 %1293
    %v1296 = vmul.f32 %v1286, %v1294
    %1297 = vst [vmem:[#allocation14] sm:$0xff] %v1296
    %1298 = vmatprep.subr.mxu0 %v538
    %1299 = vmatpush1.msra.mxu0 %v537
    %1300 = vmatprep.subr.mxu0 %v544
    %1301 = vmatpush1.msra.mxu0 %v543
    %1302 = vmatprep.subr.mxu0 %v550
    %1303 = vmatpush1.msra.mxu0 %v549
    %1304 = vmatprep.subr.mxu0 %v556
    %1305 = vmatpush1.msra.mxu0 %v555
    %1306 = vmatprep.subr.mxu0 %v562
    %1307 = vmatpush1.msra.mxu0 %v561
    %1308 = vmatprep.subr.mxu0 %v568
    %1309 = vmatpush1.msra.mxu0 %v567
    %1310 = vmatprep.subr.mxu0 %v574
    %1311 = vmatpush1.msra.mxu0 %v573
    %1312 = vmatprep.subr.mxu0 %v580
    %1313 = vmatpush1.msra.mxu0 %v579
    %1314 = vmatprep.subr.mxu0 %v586
    %1315 = vmatpush1.msra.mxu0 %v585
    %1316 = vmatprep.subr.mxu0 %v592
    %1317 = vmatpush1.msra.mxu0 %v591
    %1318 = vmatprep.subr.mxu0 %v598
    %1319 = vmatpush1.msra.mxu0 %v597
    %1320 = vmatprep.subr.mxu0 %v604
    %1321 = vmatpush1.msra.mxu0 %v603
    %1322 = vmatprep.subr.mxu0 %v610
    %1323 = vmatpush1.msra.mxu0 %v609
    %1324 = vmatprep.subr.mxu0 %v616
    %1325 = vmatpush1.msra.mxu0 %v615
    %1326 = vmatprep.subr.mxu0 %v622
    %1327 = vmatpush1.msra.mxu0 %v621
    %1328 = vmatprep.subr.mxu0 %v628
    %1329 = vmatpush1.msra.mxu0 %v627
    %1330 = vmatprep.subr.mxu0 0.0
    %1331 = vmatpush1.msra.mxu0 0.0
    %1332 = vmatprep.subr.mxu0 0.0
    %1333 = vmatpush1.msra.mxu0 0.0
    %1334 = vmatprep.subr.mxu0 0.0
    %1335 = vmatpush1.msra.mxu0 0.0
    %1336 = vmatprep.subr.mxu0 0.0
    %1337 = vmatpush1.msra.mxu0 0.0
    %1338 = vmatprep.subr.mxu0 0.0
    %1339 = vmatpush1.msra.mxu0 0.0
    %1340 = vmatprep.subr.mxu0 0.0
    %1341 = vmatpush1.msra.mxu0 0.0
    %1342 = vmatprep.subr.mxu0 0.0
    %1343 = vmatpush1.msra.mxu0 0.0
    %1344 = vmatprep.subr.mxu0 0.0
    %1345 = vmatpush1.msra.mxu0 0.0
    %1346 = vmatprep.subr.mxu0 0.0
    %1347 = vmatpush1.msra.mxu0 0.0
    %1348 = vmatprep.subr.mxu0 0.0
    %1349 = vmatpush1.msra.mxu0 0.0
    %1350 = vmatprep.subr.mxu0 0.0
    %1351 = vmatpush1.msra.mxu0 0.0
    %1352 = vmatprep.subr.mxu0 0.0
    %1353 = vmatpush1.msra.mxu0 0.0
    %1354 = vmatprep.subr.mxu0 0.0
    %1355 = vmatpush1.msra.mxu0 0.0
    %1356 = vmatprep.subr.mxu0 0.0
    %1357 = vmatpush1.msra.mxu0 0.0
    %1358 = vmatprep.subr.mxu0 0.0
    %1359 = vmatpush1.msra.mxu0 0.0
    %1360 = vmatprep.subr.mxu0 0.0
    %1361 = vmatpush1.msra.mxu0 0.0
    %1362 = vmatprep.mubr.f32.mxu0 0.0
    %1363 = vmatmul.mubr.f32.gmra.mrb[0].mxu0 %v1258
    %v1364 = vpop.f32.mrb[0].mxu0
    %v1365 = vadd.f32 0.0, %v1364
    %v1366 = vpop.f32.mrb[0].mxu0
    %v1367 = vadd.f32 0.0, %v1366
    %1368 = vdwg.mxu0
    %1369 = vmatprep.subr.mxu0 %v540
    %1370 = vmatpush1.msra.mxu0 %v539
    %1371 = vmatprep.subr.mxu0 %v546
    %1372 = vmatpush1.msra.mxu0 %v545
    %1373 = vmatprep.subr.mxu0 %v552
    %1374 = vmatpush1.msra.mxu0 %v551
    %1375 = vmatprep.subr.mxu0 %v558
    %1376 = vmatpush1.msra.mxu0 %v557
    %1377 = vmatprep.subr.mxu0 %v564
    %1378 = vmatpush1.msra.mxu0 %v563
    %1379 = vmatprep.subr.mxu0 %v570
    %1380 = vmatpush1.msra.mxu0 %v569
    %1381 = vmatprep.subr.mxu0 %v576
    %1382 = vmatpush1.msra.mxu0 %v575
    %1383 = vmatprep.subr.mxu0 %v582
    %1384 = vmatpush1.msra.mxu0 %v581
    %1385 = vmatprep.subr.mxu0 %v588
    %1386 = vmatpush1.msra.mxu0 %v587
    %1387 = vmatprep.subr.mxu0 %v594
    %1388 = vmatpush1.msra.mxu0 %v593
    %1389 = vmatprep.subr.mxu0 %v600
    %1390 = vmatpush1.msra.mxu0 %v599
    %1391 = vmatprep.subr.mxu0 %v606
    %1392 = vmatpush1.msra.mxu0 %v605
    %1393 = vmatprep.subr.mxu0 %v612
    %1394 = vmatpush1.msra.mxu0 %v611
    %1395 = vmatprep.subr.mxu0 %v618
    %1396 = vmatpush1.msra.mxu0 %v617
    %1397 = vmatprep.subr.mxu0 %v624
    %1398 = vmatpush1.msra.mxu0 %v623
    %1399 = vmatprep.subr.mxu0 %v630
    %1400 = vmatpush1.msra.mxu0 %v629
    %1401 = vmatprep.subr.mxu0 0.0
    %1402 = vmatpush1.msra.mxu0 0.0
    %1403 = vmatprep.subr.mxu0 0.0
    %1404 = vmatpush1.msra.mxu0 0.0
    %1405 = vmatprep.subr.mxu0 0.0
    %1406 = vmatpush1.msra.mxu0 0.0
    %1407 = vmatprep.subr.mxu0 0.0
    %1408 = vmatpush1.msra.mxu0 0.0
    %1409 = vmatprep.subr.mxu0 0.0
    %1410 = vmatpush1.msra.mxu0 0.0
    %1411 = vmatprep.subr.mxu0 0.0
    %1412 = vmatpush1.msra.mxu0 0.0
    %1413 = vmatprep.subr.mxu0 0.0
    %1414 = vmatpush1.msra.mxu0 0.0
    %1415 = vmatprep.subr.mxu0 0.0
    %1416 = vmatpush1.msra.mxu0 0.0
    %1417 = vmatprep.subr.mxu0 0.0
    %1418 = vmatpush1.msra.mxu0 0.0
    %1419 = vmatprep.subr.mxu0 0.0
    %1420 = vmatpush1.msra.mxu0 0.0
    %1421 = vmatprep.subr.mxu0 0.0
    %1422 = vmatpush1.msra.mxu0 0.0
    %1423 = vmatprep.subr.mxu0 0.0
    %1424 = vmatpush1.msra.mxu0 0.0
    %1425 = vmatprep.subr.mxu0 0.0
    %1426 = vmatpush1.msra.mxu0 0.0
    %1427 = vmatprep.subr.mxu0 0.0
    %1428 = vmatpush1.msra.mxu0 0.0
    %1429 = vmatprep.subr.mxu0 0.0
    %1430 = vmatpush1.msra.mxu0 0.0
    %1431 = vmatprep.subr.mxu0 0.0
    %1432 = vmatpush1.msra.mxu0 0.0
    %1433 = vmatprep.mubr.f32.mxu0 0.0
    %1434 = vmatmul.mubr.f32.gmra.mrb[0].mxu0 %v1258
    %v1435 = vpop.f32.mrb[0].mxu0
    %v1436 = vadd.f32 0.0, %v1435
    %v1437 = vpop.f32.mrb[0].mxu0
    %v1438 = vadd.f32 0.0, %v1437
    %1439 = vdwg.mxu0
    %1440 = vmatprep.subr.mxu0 %v542
    %1441 = vmatpush1.msra.mxu0 %v541
    %1442 = vmatprep.subr.mxu0 %v548
    %1443 = vmatpush1.msra.mxu0 %v547
    %1444 = vmatprep.subr.mxu0 %v554
    %1445 = vmatpush1.msra.mxu0 %v553
    %1446 = vmatprep.subr.mxu0 %v560
    %1447 = vmatpush1.msra.mxu0 %v559
    %1448 = vmatprep.subr.mxu0 %v566
    %1449 = vmatpush1.msra.mxu0 %v565
    %1450 = vmatprep.subr.mxu0 %v572
    %1451 = vmatpush1.msra.mxu0 %v571
    %1452 = vmatprep.subr.mxu0 %v578
    %1453 = vmatpush1.msra.mxu0 %v577
    %1454 = vmatprep.subr.mxu0 %v584
    %1455 = vmatpush1.msra.mxu0 %v583
    %1456 = vmatprep.subr.mxu0 %v590
    %1457 = vmatpush1.msra.mxu0 %v589
    %1458 = vmatprep.subr.mxu0 %v596
    %1459 = vmatpush1.msra.mxu0 %v595
    %1460 = vmatprep.subr.mxu0 %v602
    %1461 = vmatpush1.msra.mxu0 %v601
    %1462 = vmatprep.subr.mxu0 %v608
    %1463 = vmatpush1.msra.mxu0 %v607
    %1464 = vmatprep.subr.mxu0 %v614
    %1465 = vmatpush1.msra.mxu0 %v613
    %1466 = vmatprep.subr.mxu0 %v620
    %1467 = vmatpush1.msra.mxu0 %v619
    %1468 = vmatprep.subr.mxu0 %v626
    %1469 = vmatpush1.msra.mxu0 %v625
    %1470 = vmatprep.subr.mxu0 %v632
    %1471 = vmatpush1.msra.mxu0 %v631
    %1472 = vmatprep.subr.mxu0 0.0
    %1473 = vmatpush1.msra.mxu0 0.0
    %1474 = vmatprep.subr.mxu0 0.0
    %1475 = vmatpush1.msra.mxu0 0.0
    %1476 = vmatprep.subr.mxu0 0.0
    %1477 = vmatpush1.msra.mxu0 0.0
    %1478 = vmatprep.subr.mxu0 0.0
    %1479 = vmatpush1.msra.mxu0 0.0
    %1480 = vmatprep.subr.mxu0 0.0
    %1481 = vmatpush1.msra.mxu0 0.0
    %1482 = vmatprep.subr.mxu0 0.0
    %1483 = vmatpush1.msra.mxu0 0.0
    %1484 = vmatprep.subr.mxu0 0.0
    %1485 = vmatpush1.msra.mxu0 0.0
    %1486 = vmatprep.subr.mxu0 0.0
    %1487 = vmatpush1.msra.mxu0 0.0
    %1488 = vmatprep.subr.mxu0 0.0
    %1489 = vmatpush1.msra.mxu0 0.0
    %1490 = vmatprep.subr.mxu0 0.0
    %1491 = vmatpush1.msra.mxu0 0.0
    %1492 = vmatprep.subr.mxu0 0.0
    %1493 = vmatpush1.msra.mxu0 0.0
    %1494 = vmatprep.subr.mxu0 0.0
    %1495 = vmatpush1.msra.mxu0 0.0
    %1496 = vmatprep.subr.mxu0 0.0
    %1497 = vmatpush1.msra.mxu0 0.0
    %1498 = vmatprep.subr.mxu0 0.0
    %1499 = vmatpush1.msra.mxu0 0.0
    %1500 = vmatprep.subr.mxu0 0.0
    %1501 = vmatpush1.msra.mxu0 0.0
    %1502 = vmatprep.subr.mxu0 0.0
    %1503 = vmatpush1.msra.mxu0 0.0
    %1504 = vmatprep.mubr.f32.mxu0 0.0
    %1505 = vmatmul.mubr.f32.gmra.mrb[0].mxu0 %v1258
    %v1506 = vpop.f32.mrb[0].mxu0
    %v1507 = vadd.f32 0.0, %v1506
    %v1508 = vpop.f32.mrb[0].mxu0
    %v1509 = vadd.f32 0.0, %v1508
    %1510 = vdwg.mxu0
    %v1511 = vadd.f32 %v1438, %v1077
    %v1512 = vadd.f32 %v1507, %v1081
    %v1513 = vadd.f32 %v1509, %v1085
    %1514 = vmatprep.subr.mxu0 %v634
    %1515 = vmatpush1.msra.mxu0 %v633
    %1516 = vmatprep.subr.mxu0 %v637
    %1517 = vmatpush1.msra.mxu0 %v636
    %1518 = vmatprep.subr.mxu0 %v640
    %1519 = vmatpush1.msra.mxu0 %v639
    %1520 = vmatprep.subr.mxu0 %v643
    %1521 = vmatpush1.msra.mxu0 %v642
    %1522 = vmatprep.subr.mxu0 %v646
    %1523 = vmatpush1.msra.mxu0 %v645
    %1524 = vmatprep.subr.mxu0 %v649
    %1525 = vmatpush1.msra.mxu0 %v648
    %1526 = vmatprep.subr.mxu0 %v652
    %1527 = vmatpush1.msra.mxu0 %v651
    %1528 = vmatprep.subr.mxu0 %v655
    %1529 = vmatpush1.msra.mxu0 %v654
    %1530 = vmatprep.subr.mxu0 %v658
    %1531 = vmatpush1.msra.mxu0 %v657
    %1532 = vmatprep.subr.mxu0 %v661
    %1533 = vmatpush1.msra.mxu0 %v660
    %1534 = vmatprep.subr.mxu0 %v664
    %1535 = vmatpush1.msra.mxu0 %v663
    %1536 = vmatprep.subr.mxu0 %v667
    %1537 = vmatpush1.msra.mxu0 %v666
    %1538 = vmatprep.subr.mxu0 %v670
    %1539 = vmatpush1.msra.mxu0 %v669
    %1540 = vmatprep.subr.mxu0 %v673
    %1541 = vmatpush1.msra.mxu0 %v672
    %1542 = vmatprep.subr.mxu0 %v676
    %1543 = vmatpush1.msra.mxu0 %v675
    %1544 = vmatprep.subr.mxu0 %v679
    %1545 = vmatpush1.msra.mxu0 %v678
    %1546 = vmatprep.subr.mxu0 0.0
    %1547 = vmatpush1.msra.mxu0 0.0
    %1548 = vmatprep.subr.mxu0 0.0
    %1549 = vmatpush1.msra.mxu0 0.0
    %1550 = vmatprep.subr.mxu0 0.0
    %1551 = vmatpush1.msra.mxu0 0.0
    %1552 = vmatprep.subr.mxu0 0.0
    %1553 = vmatpush1.msra.mxu0 0.0
    %1554 = vmatprep.subr.mxu0 0.0
    %1555 = vmatpush1.msra.mxu0 0.0
    %1556 = vmatprep.subr.mxu0 0.0
    %1557 = vmatpush1.msra.mxu0 0.0
    %1558 = vmatprep.subr.mxu0 0.0
    %1559 = vmatpush1.msra.mxu0 0.0
    %1560 = vmatprep.subr.mxu0 0.0
    %1561 = vmatpush1.msra.mxu0 0.0
    %1562 = vmatprep.subr.mxu0 0.0
    %1563 = vmatpush1.msra.mxu0 0.0
    %1564 = vmatprep.subr.mxu0 0.0
    %1565 = vmatpush1.msra.mxu0 0.0
    %1566 = vmatprep.subr.mxu0 0.0
    %1567 = vmatpush1.msra.mxu0 0.0
    %1568 = vmatprep.subr.mxu0 0.0
    %1569 = vmatpush1.msra.mxu0 0.0
    %1570 = vmatprep.subr.mxu0 0.0
    %1571 = vmatpush1.msra.mxu0 0.0
    %1572 = vmatprep.subr.mxu0 0.0
    %1573 = vmatpush1.msra.mxu0 0.0
    %1574 = vmatprep.subr.mxu0 0.0
    %1575 = vmatpush1.msra.mxu0 0.0
    %1576 = vmatprep.subr.mxu0 0.0
    %1577 = vmatpush1.msra.mxu0 0.0
    %1578 = vmatprep.mubr.f32.mxu0 0.0
    %1579 = vmatmul.mubr.f32.gmra.mrb[0].mxu0 %v1286
    %v1580 = vpop.f32.mrb[0].mxu0
    %v1581 = vadd.f32 0.0, %v1580
    %v1582 = vpop.f32.mrb[0].mxu0
    %v1583 = vadd.f32 0.0, %v1582
    %1584 = vdwg.mxu0
    %1585 = vmatprep.subr.mxu0 0.0
    %1586 = vmatpush1.msra.mxu0 %v635
    %1587 = vmatprep.subr.mxu0 0.0
    %1588 = vmatpush1.msra.mxu0 %v638
    %1589 = vmatprep.subr.mxu0 0.0
    %1590 = vmatpush1.msra.mxu0 %v641
    %1591 = vmatprep.subr.mxu0 0.0
    %1592 = vmatpush1.msra.mxu0 %v644
    %1593 = vmatprep.subr.mxu0 0.0
    %1594 = vmatpush1.msra.mxu0 %v647
    %1595 = vmatprep.subr.mxu0 0.0
    %1596 = vmatpush1.msra.mxu0 %v650
    %1597 = vmatprep.subr.mxu0 0.0
    %1598 = vmatpush1.msra.mxu0 %v653
    %1599 = vmatprep.subr.mxu0 0.0
    %1600 = vmatpush1.msra.mxu0 %v656
    %1601 = vmatprep.subr.mxu0 0.0
    %1602 = vmatpush1.msra.mxu0 %v659
    %1603 = vmatprep.subr.mxu0 0.0
    %1604 = vmatpush1.msra.mxu0 %v662
    %1605 = vmatprep.subr.mxu0 0.0
    %1606 = vmatpush1.msra.mxu0 %v665
    %1607 = vmatprep.subr.mxu0 0.0
    %1608 = vmatpush1.msra.mxu0 %v668
    %1609 = vmatprep.subr.mxu0 0.0
    %1610 = vmatpush1.msra.mxu0 %v671
    %1611 = vmatprep.subr.mxu0 0.0
    %1612 = vmatpush1.msra.mxu0 %v674
    %1613 = vmatprep.subr.mxu0 0.0
    %1614 = vmatpush1.msra.mxu0 %v677
    %1615 = vmatprep.subr.mxu0 0.0
    %1616 = vmatpush1.msra.mxu0 %v680
    %1617 = vmatprep.subr.mxu0 0.0
    %1618 = vmatpush1.msra.mxu0 0.0
    %1619 = vmatprep.subr.mxu0 0.0
    %1620 = vmatpush1.msra.mxu0 0.0
    %1621 = vmatprep.subr.mxu0 0.0
    %1622 = vmatpush1.msra.mxu0 0.0
    %1623 = vmatprep.subr.mxu0 0.0
    %1624 = vmatpush1.msra.mxu0 0.0
    %1625 = vmatprep.subr.mxu0 0.0
    %1626 = vmatpush1.msra.mxu0 0.0
    %1627 = vmatprep.subr.mxu0 0.0
    %1628 = vmatpush1.msra.mxu0 0.0
    %1629 = vmatprep.subr.mxu0 0.0
    %1630 = vmatpush1.msra.mxu0 0.0
    %1631 = vmatprep.subr.mxu0 0.0
    %1632 = vmatpush1.msra.mxu0 0.0
    %1633 = vmatprep.subr.mxu0 0.0
    %1634 = vmatpush1.msra.mxu0 0.0
    %1635 = vmatprep.subr.mxu0 0.0
    %1636 = vmatpush1.msra.mxu0 0.0
    %1637 = vmatprep.subr.mxu0 0.0
    %1638 = vmatpush1.msra.mxu0 0.0
    %1639 = vmatprep.subr.mxu0 0.0
    %1640 = vmatpush1.msra.mxu0 0.0
    %1641 = vmatprep.subr.mxu0 0.0
    %1642 = vmatpush1.msra.mxu0 0.0
    %1643 = vmatprep.subr.mxu0 0.0
    %1644 = vmatpush1.msra.mxu0 0.0
    %1645 = vmatprep.subr.mxu0 0.0
    %1646 = vmatpush1.msra.mxu0 0.0
    %1647 = vmatprep.subr.mxu0 0.0
    %1648 = vmatpush1.msra.mxu0 0.0
    %1649 = vmatprep.mubr.f32.mxu0 0.0
    %1650 = vmatmul.mubr.f32.gmra.mrb[0].mxu0 %v1286
    %v1651 = vpop.f32.mrb[0].mxu0
    %v1652 = vadd.f32 0.0, %v1651
    %v1653 = vpop.f32.mrb[0].mxu0
    %1654 = vdwg.mxu0
    %s1655 = scalar_lea.vmem [#allocation4], 48
    %v1656 = vld [vmem:[%s1655] sm:$0xff]
    %v1657 = vld [vmem:[%s1655 + $0x8] sm:$0xff]
    %v1658 = vld [vmem:[%s1655 + $0x10] sm:$0xff]
    %v1659 = vadd.f32 %v1656, %v1365
    %v1660 = vxor.u32 %v1659, 2147483648
    %v1661 = vmul.f32 %v1660, 1.442695
    %v1662 = vpow.pop %v1661
    %v1663 = vadd.f32 %v1662, 1.0
    %v1664 = vrcp.pop %v1663
    %v1665 = vmul.f32 1.0, %v1664
    %v1666 = vadd.f32 %v1657, %v1367
    %v1667 = vxor.u32 %v1666, 2147483648
    %v1668 = vmul.f32 %v1667, 1.442695
    %v1669 = vpow.pop %v1668
    %v1670 = vadd.f32 %v1669, 1.0
    %v1671 = vrcp.pop %v1670
    %v1672 = vmul.f32 1.0, %v1671
    %v1673 = vadd.f32 %v1436, %v850
    %v1674 = vmul.f32 %v1665, %v1673
    %v1675 = vadd.f32 %v1658, %v1674
    %v1676 = vtanh.pop %v1675
    %v1677 = vsub.f32 1.0, %v1672
    %v1678 = vmul.f32 %v1677, %v1676
    %v1679 = vmul.f32 %v1672, %v1258
    %v1680 = vadd.f32 %v1678, %v1679
    %v1681 = vadd.f32 %v1511, %v1581
    %v1682 = vxor.u32 %v1681, 2147483648
    %v1683 = vmul.f32 %v1682, 1.442695
    %v1684 = vpow.pop %v1683
    %v1685 = vadd.f32 %v1684, 1.0
    %v1686 = vrcp.pop %v1685
    %v1687 = vmul.f32 1.0, %v1686
    %v1688 = vadd.f32 %v1512, %v1583
    %v1689 = vxor.u32 %v1688, 2147483648
    %v1690 = vmul.f32 %v1689, 1.442695
    %v1691 = vpow.pop %v1690
    %v1692 = vadd.f32 %v1691, 1.0
    %v1693 = vrcp.pop %v1692
    %v1694 = vmul.f32 1.0, %v1693
    %v1695 = vadd.f32 %v1652, %v1277
    %v1696 = vmul.f32 %v1687, %v1695
    %v1697 = vadd.f32 %v1513, %v1696
    %v1698 = vtanh.pop %v1697
    %v1699 = vsub.f32 1.0, %v1694
    %v1700 = vmul.f32 %v1699, %v1698
    %v1701 = vmul.f32 %v1694, %v1286
    %v1702 = vadd.f32 %v1700, %v1701
    %s1703 = sadd.s32 %s685, 1
    %v1704 = vstv %s1703
    %vm1705 = vcmp.lt.s32.totalorder %v1704, %v684
    %v1706 = vsel %vm1705, 1, 0
    %v1707 = vcvt.s32.f32 %v1706
    %1709 = vset.pattern.permute.xlu0 0
    %1710 = vperm.xlu0 %1709, %v1707
    %v1711 = vpop.permute.xlu0 %1710
    %v1713 = vmul.f32 %v1702, %v1711
    %s1714 = scalar_lea.vmem [#allocation14], 8
    %1715 = vst [vmem:[%s1714] sm:$0xff] %v1713
    %1716 = vmatprep.subr.mxu0 %v538
    %1717 = vmatpush1.msra.mxu0 %v537
    %1718 = vmatprep.subr.mxu0 %v544
    %1719 = vmatpush1.msra.mxu0 %v543
    %1720 = vmatprep.subr.mxu0 %v550
    %1721 = vmatpush1.msra.mxu0 %v549
    %1722 = vmatprep.subr.mxu0 %v556
    %1723 = vmatpush1.msra.mxu0 %v555
    %1724 = vmatprep.subr.mxu0 %v562
    %1725 = vmatpush1.msra.mxu0 %v561
    %1726 = vmatprep.subr.mxu0 %v568
    %1727 = vmatpush1.msra.mxu0 %v567
    %1728 = vmatprep.subr.mxu0 %v574
    %1729 = vmatpush1.msra.mxu0 %v573
    %1730 = vmatprep.subr.mxu0 %v580
    %1731 = vmatpush1.msra.mxu0 %v579
    %1732 = vmatprep.subr.mxu0 %v586
    %1733 = vmatpush1.msra.mxu0 %v585
    %1734 = vmatprep.subr.mxu0 %v592
    %1735 = vmatpush1.msra.mxu0 %v591
    %1736 = vmatprep.subr.mxu0 %v598
    %1737 = vmatpush1.msra.mxu0 %v597
    %1738 = vmatprep.subr.mxu0 %v604
    %1739 = vmatpush1.msra.mxu0 %v603
    %1740 = vmatprep.subr.mxu0 %v610
    %1741 = vmatpush1.msra.mxu0 %v609
    %1742 = vmatprep.subr.mxu0 %v616
    %1743 = vmatpush1.msra.mxu0 %v615
    %1744 = vmatprep.subr.mxu0 %v622
    %1745 = vmatpush1.msra.mxu0 %v621
    %1746 = vmatprep.subr.mxu0 %v628
    %1747 = vmatpush1.msra.mxu0 %v627
    %1748 = vmatprep.subr.mxu0 0.0
    %1749 = vmatpush1.msra.mxu0 0.0
    %1750 = vmatprep.subr.mxu0 0.0
    %1751 = vmatpush1.msra.mxu0 0.0
    %1752 = vmatprep.subr.mxu0 0.0
    %1753 = vmatpush1.msra.mxu0 0.0
    %1754 = vmatprep.subr.mxu0 0.0
    %1755 = vmatpush1.msra.mxu0 0.0
    %1756 = vmatprep.subr.mxu0 0.0
    %1757 = vmatpush1.msra.mxu0 0.0
    %1758 = vmatprep.subr.mxu0 0.0
    %1759 = vmatpush1.msra.mxu0 0.0
    %1760 = vmatprep.subr.mxu0 0.0
    %1761 = vmatpush1.msra.mxu0 0.0
    %1762 = vmatprep.subr.mxu0 0.0
    %1763 = vmatpush1.msra.mxu0 0.0
    %1764 = vmatprep.subr.mxu0 0.0
    %1765 = vmatpush1.msra.mxu0 0.0
    %1766 = vmatprep.subr.mxu0 0.0
    %1767 = vmatpush1.msra.mxu0 0.0
    %1768 = vmatprep.subr.mxu0 0.0
    %1769 = vmatpush1.msra.mxu0 0.0
    %1770 = vmatprep.subr.mxu0 0.0
    %1771 = vmatpush1.msra.mxu0 0.0
    %1772 = vmatprep.subr.mxu0 0.0
    %1773 = vmatpush1.msra.mxu0 0.0
    %1774 = vmatprep.subr.mxu0 0.0
    %1775 = vmatpush1.msra.mxu0 0.0
    %1776 = vmatprep.subr.mxu0 0.0
    %1777 = vmatpush1.msra.mxu0 0.0
    %1778 = vmatprep.subr.mxu0 0.0
    %1779 = vmatpush1.msra.mxu0 0.0
    %1780 = vmatprep.mubr.f32.mxu0 0.0
    %1781 = vmatmul.mubr.f32.gmra.mrb[0].mxu0 %v1680
    %v1782 = vpop.f32.mrb[0].mxu0
    %v1783 = vadd.f32 0.0, %v1782
    %v1784 = vpop.f32.mrb[0].mxu0
    %v1785 = vadd.f32 0.0, %v1784
    %1786 = vdwg.mxu0
    %1787 = vmatprep.subr.mxu0 %v540
    %1788 = vmatpush1.msra.mxu0 %v539
    %1789 = vmatprep.subr.mxu0 %v546
    %1790 = vmatpush1.msra.mxu0 %v545
    %1791 = vmatprep.subr.mxu0 %v552
    %1792 = vmatpush1.msra.mxu0 %v551
    %1793 = vmatprep.subr.mxu0 %v558
    %1794 = vmatpush1.msra.mxu0 %v557
    %1795 = vmatprep.subr.mxu0 %v564
    %1796 = vmatpush1.msra.mxu0 %v563
    %1797 = vmatprep.subr.mxu0 %v570
    %1798 = vmatpush1.msra.mxu0 %v569
    %1799 = vmatprep.subr.mxu0 %v576
    %1800 = vmatpush1.msra.mxu0 %v575
    %1801 = vmatprep.subr.mxu0 %v582
    %1802 = vmatpush1.msra.mxu0 %v581
    %1803 = vmatprep.subr.mxu0 %v588
    %1804 = vmatpush1.msra.mxu0 %v587
    %1805 = vmatprep.subr.mxu0 %v594
    %1806 = vmatpush1.msra.mxu0 %v593
    %1807 = vmatprep.subr.mxu0 %v600
    %1808 = vmatpush1.msra.mxu0 %v599
    %1809 = vmatprep.subr.mxu0 %v606
    %1810 = vmatpush1.msra.mxu0 %v605
    %1811 = vmatprep.subr.mxu0 %v612
    %1812 = vmatpush1.msra.mxu0 %v611
    %1813 = vmatprep.subr.mxu0 %v618
    %1814 = vmatpush1.msra.mxu0 %v617
    %1815 = vmatprep.subr.mxu0 %v624
    %1816 = vmatpush1.msra.mxu0 %v623
    %1817 = vmatprep.subr.mxu0 %v630
    %1818 = vmatpush1.msra.mxu0 %v629
    %1819 = vmatprep.subr.mxu0 0.0
    %1820 = vmatpush1.msra.mxu0 0.0
    %1821 = vmatprep.subr.mxu0 0.0
    %1822 = vmatpush1.msra.mxu0 0.0
    %1823 = vmatprep.subr.mxu0 0.0
    %1824 = vmatpush1.msra.mxu0 0.0
    %1825 = vmatprep.subr.mxu0 0.0
    %1826 = vmatpush1.msra.mxu0 0.0
    %1827 = vmatprep.subr.mxu0 0.0
    %1828 = vmatpush1.msra.mxu0 0.0
    %1829 = vmatprep.subr.mxu0 0.0
    %1830 = vmatpush1.msra.mxu0 0.0
    %1831 = vmatprep.subr.mxu0 0.0
    %1832 = vmatpush1.msra.mxu0 0.0
    %1833 = vmatprep.subr.mxu0 0.0
    %1834 = vmatpush1.msra.mxu0 0.0
    %1835 = vmatprep.subr.mxu0 0.0
    %1836 = vmatpush1.msra.mxu0 0.0
    %1837 = vmatprep.subr.mxu0 0.0
    %1838 = vmatpush1.msra.mxu0 0.0
    %1839 = vmatprep.subr.mxu0 0.0
    %1840 = vmatpush1.msra.mxu0 0.0
    %1841 = vmatprep.subr.mxu0 0.0
    %1842 = vmatpush1.msra.mxu0 0.0
    %1843 = vmatprep.subr.mxu0 0.0
    %1844 = vmatpush1.msra.mxu0 0.0
    %1845 = vmatprep.subr.mxu0 0.0
    %1846 = vmatpush1.msra.mxu0 0.0
    %1847 = vmatprep.subr.mxu0 0.0
    %1848 = vmatpush1.msra.mxu0 0.0
    %1849 = vmatprep.subr.mxu0 0.0
    %1850 = vmatpush1.msra.mxu0 0.0
    %1851 = vmatprep.mubr.f32.mxu0 0.0
    %1852 = vmatmul.mubr.f32.gmra.mrb[0].mxu0 %v1680
    %v1853 = vpop.f32.mrb[0].mxu0
    %v1854 = vadd.f32 0.0, %v1853
    %v1855 = vpop.f32.mrb[0].mxu0
    %v1856 = vadd.f32 0.0, %v1855
    %1857 = vdwg.mxu0
    %1858 = vmatprep.subr.mxu0 %v542
    %1859 = vmatpush1.msra.mxu0 %v541
    %1860 = vmatprep.subr.mxu0 %v548
    %1861 = vmatpush1.msra.mxu0 %v547
    %1862 = vmatprep.subr.mxu0 %v554
    %1863 = vmatpush1.msra.mxu0 %v553
    %1864 = vmatprep.subr.mxu0 %v560
    %1865 = vmatpush1.msra.mxu0 %v559
    %1866 = vmatprep.subr.mxu0 %v566
    %1867 = vmatpush1.msra.mxu0 %v565
    %1868 = vmatprep.subr.mxu0 %v572
    %1869 = vmatpush1.msra.mxu0 %v571
    %1870 = vmatprep.subr.mxu0 %v578
    %1871 = vmatpush1.msra.mxu0 %v577
    %1872 = vmatprep.subr.mxu0 %v584
    %1873 = vmatpush1.msra.mxu0 %v583
    %1874 = vmatprep.subr.mxu0 %v590
    %1875 = vmatpush1.msra.mxu0 %v589
    %1876 = vmatprep.subr.mxu0 %v596
    %1877 = vmatpush1.msra.mxu0 %v595
    %1878 = vmatprep.subr.mxu0 %v602
    %1879 = vmatpush1.msra.mxu0 %v601
    %1880 = vmatprep.subr.mxu0 %v608
    %1881 = vmatpush1.msra.mxu0 %v607
    %1882 = vmatprep.subr.mxu0 %v614
    %1883 = vmatpush1.msra.mxu0 %v613
    %1884 = vmatprep.subr.mxu0 %v620
    %1885 = vmatpush1.msra.mxu0 %v619
    %1886 = vmatprep.subr.mxu0 %v626
    %1887 = vmatpush1.msra.mxu0 %v625
    %1888 = vmatprep.subr.mxu0 %v632
    %1889 = vmatpush1.msra.mxu0 %v631
    %1890 = vmatprep.subr.mxu0 0.0
    %1891 = vmatpush1.msra.mxu0 0.0
    %1892 = vmatprep.subr.mxu0 0.0
    %1893 = vmatpush1.msra.mxu0 0.0
    %1894 = vmatprep.subr.mxu0 0.0
    %1895 = vmatpush1.msra.mxu0 0.0
    %1896 = vmatprep.subr.mxu0 0.0
    %1897 = vmatpush1.msra.mxu0 0.0
    %1898 = vmatprep.subr.mxu0 0.0
    %1899 = vmatpush1.msra.mxu0 0.0
    %1900 = vmatprep.subr.mxu0 0.0
    %1901 = vmatpush1.msra.mxu0 0.0
    %1902 = vmatprep.subr.mxu0 0.0
    %1903 = vmatpush1.msra.mxu0 0.0
    %1904 = vmatprep.subr.mxu0 0.0
    %1905 = vmatpush1.msra.mxu0 0.0
    %1906 = vmatprep.subr.mxu0 0.0
    %1907 = vmatpush1.msra.mxu0 0.0
    %1908 = vmatprep.subr.mxu0 0.0
    %1909 = vmatpush1.msra.mxu0 0.0
    %1910 = vmatprep.subr.mxu0 0.0
    %1911 = vmatpush1.msra.mxu0 0.0
    %1912 = vmatprep.subr.mxu0 0.0
    %1913 = vmatpush1.msra.mxu0 0.0
    %1914 = vmatprep.subr.mxu0 0.0
    %1915 = vmatpush1.msra.mxu0 0.0
    %1916 = vmatprep.subr.mxu0 0.0
    %1917 = vmatpush1.msra.mxu0 0.0
    %1918 = vmatprep.subr.mxu0 0.0
    %1919 = vmatpush1.msra.mxu0 0.0
    %1920 = vmatprep.subr.mxu0 0.0
    %1921 = vmatpush1.msra.mxu0 0.0
    %1922 = vmatprep.mubr.f32.mxu0 0.0
    %1923 = vmatmul.mubr.f32.gmra.mrb[0].mxu0 %v1680
    %v1924 = vpop.f32.mrb[0].mxu0
    %v1925 = vadd.f32 0.0, %v1924
    %v1926 = vpop.f32.mrb[0].mxu0
    %v1927 = vadd.f32 0.0, %v1926
    %1928 = vdwg.mxu0
    %v1929 = vadd.f32 %v1856, %v1077
    %v1930 = vadd.f32 %v1925, %v1081
    %v1931 = vadd.f32 %v1927, %v1085
    %1932 = vmatprep.subr.mxu0 %v634
    %1933 = vmatpush1.msra.mxu0 %v633
    %1934 = vmatprep.subr.mxu0 %v637
    %1935 = vmatpush1.msra.mxu0 %v636
    %1936 = vmatprep.subr.mxu0 %v640
    %1937 = vmatpush1.msra.mxu0 %v639
    %1938 = vmatprep.subr.mxu0 %v643
    %1939 = vmatpush1.msra.mxu0 %v642
    %1940 = vmatprep.subr.mxu0 %v646
    %1941 = vmatpush1.msra.mxu0 %v645
    %1942 = vmatprep.subr.mxu0 %v649
    %1943 = vmatpush1.msra.mxu0 %v648
    %1944 = vmatprep.subr.mxu0 %v652
    %1945 = vmatpush1.msra.mxu0 %v651
    %1946 = vmatprep.subr.mxu0 %v655
    %1947 = vmatpush1.msra.mxu0 %v654
    %1948 = vmatprep.subr.mxu0 %v658
    %1949 = vmatpush1.msra.mxu0 %v657
    %1950 = vmatprep.subr.mxu0 %v661
    %1951 = vmatpush1.msra.mxu0 %v660
    %1952 = vmatprep.subr.mxu0 %v664
    %1953 = vmatpush1.msra.mxu0 %v663
    %1954 = vmatprep.subr.mxu0 %v667
    %1955 = vmatpush1.msra.mxu0 %v666
    %1956 = vmatprep.subr.mxu0 %v670
    %1957 = vmatpush1.msra.mxu0 %v669
    %1958 = vmatprep.subr.mxu0 %v673
    %1959 = vmatpush1.msra.mxu0 %v672
    %1960 = vmatprep.subr.mxu0 %v676
    %1961 = vmatpush1.msra.mxu0 %v675
    %1962 = vmatprep.subr.mxu0 %v679
    %1963 = vmatpush1.msra.mxu0 %v678
    %1964 = vmatprep.subr.mxu0 0.0
    %1965 = vmatpush1.msra.mxu0 0.0
    %1966 = vmatprep.subr.mxu0 0.0
    %1967 = vmatpush1.msra.mxu0 0.0
    %1968 = vmatprep.subr.mxu0 0.0
    %1969 = vmatpush1.msra.mxu0 0.0
    %1970 = vmatprep.subr.mxu0 0.0
    %1971 = vmatpush1.msra.mxu0 0.0
    %1972 = vmatprep.subr.mxu0 0.0
    %1973 = vmatpush1.msra.mxu0 0.0
    %1974 = vmatprep.subr.mxu0 0.0
    %1975 = vmatpush1.msra.mxu0 0.0
    %1976 = vmatprep.subr.mxu0 0.0
    %1977 = vmatpush1.msra.mxu0 0.0
    %1978 = vmatprep.subr.mxu0 0.0
    %1979 = vmatpush1.msra.mxu0 0.0
    %1980 = vmatprep.subr.mxu0 0.0
    %1981 = vmatpush1.msra.mxu0 0.0
    %1982 = vmatprep.subr.mxu0 0.0
    %1983 = vmatpush1.msra.mxu0 0.0
    %1984 = vmatprep.subr.mxu0 0.0
    %1985 = vmatpush1.msra.mxu0 0.0
    %1986 = vmatprep.subr.mxu0 0.0
    %1987 = vmatpush1.msra.mxu0 0.0
    %1988 = vmatprep.subr.mxu0 0.0
    %1989 = vmatpush1.msra.mxu0 0.0
    %1990 = vmatprep.subr.mxu0 0.0
    %1991 = vmatpush1.msra.mxu0 0.0
    %1992 = vmatprep.subr.mxu0 0.0
    %1993 = vmatpush1.msra.mxu0 0.0
    %1994 = vmatprep.subr.mxu0 0.0
    %1995 = vmatpush1.msra.mxu0 0.0
    %1996 = vmatprep.mubr.f32.mxu0 0.0
    %1997 = vmatmul.mubr.f32.gmra.mrb[0].mxu0 %v1702
    %v1998 = vpop.f32.mrb[0].mxu0
    %v1999 = vadd.f32 0.0, %v1998
    %v2000 = vpop.f32.mrb[0].mxu0
    %v2001 = vadd.f32 0.0, %v2000
    %2002 = vdwg.mxu0
    %2003 = vmatprep.subr.mxu0 0.0
    %2004 = vmatpush1.msra.mxu0 %v635
    %2005 = vmatprep.subr.mxu0 0.0
    %2006 = vmatpush1.msra.mxu0 %v638
    %2007 = vmatprep.subr.mxu0 0.0
    %2008 = vmatpush1.msra.mxu0 %v641
    %2009 = vmatprep.subr.mxu0 0.0
    %2010 = vmatpush1.msra.mxu0 %v644
    %2011 = vmatprep.subr.mxu0 0.0
    %2012 = vmatpush1.msra.mxu0 %v647
    %2013 = vmatprep.subr.mxu0 0.0
    %2014 = vmatpush1.msra.mxu0 %v650
    %2015 = vmatprep.subr.mxu0 0.0
    %2016 = vmatpush1.msra.mxu0 %v653
    %2017 = vmatprep.subr.mxu0 0.0
    %2018 = vmatpush1.msra.mxu0 %v656
    %2019 = vmatprep.subr.mxu0 0.0
    %2020 = vmatpush1.msra.mxu0 %v659
    %2021 = vmatprep.subr.mxu0 0.0
    %2022 = vmatpush1.msra.mxu0 %v662
    %2023 = vmatprep.subr.mxu0 0.0
    %2024 = vmatpush1.msra.mxu0 %v665
    %2025 = vmatprep.subr.mxu0 0.0
    %2026 = vmatpush1.msra.mxu0 %v668
    %2027 = vmatprep.subr.mxu0 0.0
    %2028 = vmatpush1.msra.mxu0 %v671
    %2029 = vmatprep.subr.mxu0 0.0
    %2030 = vmatpush1.msra.mxu0 %v674
    %2031 = vmatprep.subr.mxu0 0.0
    %2032 = vmatpush1.msra.mxu0 %v677
    %2033 = vmatprep.subr.mxu0 0.0
    %2034 = vmatpush1.msra.mxu0 %v680
    %2035 = vmatprep.subr.mxu0 0.0
    %2036 = vmatpush1.msra.mxu0 0.0
    %2037 = vmatprep.subr.mxu0 0.0
    %2038 = vmatpush1.msra.mxu0 0.0
    %2039 = vmatprep.subr.mxu0 0.0
    %2040 = vmatpush1.msra.mxu0 0.0
    %2041 = vmatprep.subr.mxu0 0.0
    %2042 = vmatpush1.msra.mxu0 0.0
    %2043 = vmatprep.subr.mxu0 0.0
    %2044 = vmatpush1.msra.mxu0 0.0
    %2045 = vmatprep.subr.mxu0 0.0
    %2046 = vmatpush1.msra.mxu0 0.0
    %2047 = vmatprep.subr.mxu0 0.0
    %2048 = vmatpush1.msra.mxu0 0.0
    %2049 = vmatprep.subr.mxu0 0.0
    %2050 = vmatpush1.msra.mxu0 0.0
    %2051 = vmatprep.subr.mxu0 0.0
    %2052 = vmatpush1.msra.mxu0 0.0
    %2053 = vmatprep.subr.mxu0 0.0
    %2054 = vmatpush1.msra.mxu0 0.0
    %2055 = vmatprep.subr.mxu0 0.0
    %2056 = vmatpush1.msra.mxu0 0.0
    %2057 = vmatprep.subr.mxu0 0.0
    %2058 = vmatpush1.msra.mxu0 0.0
    %2059 = vmatprep.subr.mxu0 0.0
    %2060 = vmatpush1.msra.mxu0 0.0
    %2061 = vmatprep.subr.mxu0 0.0
    %2062 = vmatpush1.msra.mxu0 0.0
    %2063 = vmatprep.subr.mxu0 0.0
    %2064 = vmatpush1.msra.mxu0 0.0
    %2065 = vmatprep.subr.mxu0 0.0
    %2066 = vmatpush1.msra.mxu0 0.0
    %2067 = vmatprep.mubr.f32.mxu0 0.0
    %2068 = vmatmul.mubr.f32.gmra.mrb[0].mxu0 %v1702
    %v2069 = vpop.f32.mrb[0].mxu0
    %v2070 = vadd.f32 0.0, %v2069
    %v2071 = vpop.f32.mrb[0].mxu0
    %2072 = vdwg.mxu0
    %s2073 = scalar_lea.vmem [#allocation4], 72
    %v2074 = vld [vmem:[%s2073] sm:$0xff]
    %v2075 = vld [vmem:[%s2073 + $0x8] sm:$0xff]
    %v2076 = vld [vmem:[%s2073 + $0x10] sm:$0xff]
    %v2077 = vadd.f32 %v2074, %v1783
    %v2078 = vxor.u32 %v2077, 2147483648
    %v2079 = vmul.f32 %v2078, 1.442695
    %v2080 = vpow.pop %v2079
    %v2081 = vadd.f32 %v2080, 1.0
    %v2082 = vrcp.pop %v2081
    %v2083 = vmul.f32 1.0, %v2082
    %v2084 = vadd.f32 %v2075, %v1785
    %v2085 = vxor.u32 %v2084, 2147483648
    %v2086 = vmul.f32 %v2085, 1.442695
    %v2087 = vpow.pop %v2086
    %v2088 = vadd.f32 %v2087, 1.0
    %v2089 = vrcp.pop %v2088
    %v2090 = vmul.f32 1.0, %v2089
    %v2091 = vadd.f32 %v1854, %v850
    %v2092 = vmul.f32 %v2083, %v2091
    %v2093 = vadd.f32 %v2076, %v2092
    %v2094 = vtanh.pop %v2093
    %v2095 = vsub.f32 1.0, %v2090
    %v2096 = vmul.f32 %v2095, %v2094
    %v2097 = vmul.f32 %v2090, %v1680
    %v2098 = vadd.f32 %v2096, %v2097
    %v2099 = vadd.f32 %v1929, %v1999
    %v2100 = vxor.u32 %v2099, 2147483648
    %v2101 = vmul.f32 %v2100, 1.442695
    %v2102 = vpow.pop %v2101
    %v2103 = vadd.f32 %v2102, 1.0
    %v2104 = vrcp.pop %v2103
    %v2105 = vmul.f32 1.0, %v2104
    %v2106 = vadd.f32 %v1930, %v2001
    %v2107 = vxor.u32 %v2106, 2147483648
    %v2108 = vmul.f32 %v2107, 1.442695
    %v2109 = vpow.pop %v2108
    %v2110 = vadd.f32 %v2109, 1.0
    %v2111 = vrcp.pop %v2110
    %v2112 = vmul.f32 1.0, %v2111
    %v2113 = vadd.f32 %v2070, %v1277
    %v2114 = vmul.f32 %v2105, %v2113
    %v2115 = vadd.f32 %v1931, %v2114
    %v2116 = vtanh.pop %v2115
    %v2117 = vsub.f32 1.0, %v2112
    %v2118 = vmul.f32 %v2117, %v2116
    %v2119 = vmul.f32 %v2112, %v1702
    %v2120 = vadd.f32 %v2118, %v2119
    %s2121 = sadd.s32 %s685, 2
    %v2122 = vstv %s2121
    %vm2123 = vcmp.lt.s32.totalorder %v2122, %v684
    %v2124 = vsel %vm2123, 1, 0
    %v2125 = vcvt.s32.f32 %v2124
    %2127 = vset.pattern.permute.xlu0 0
    %2128 = vperm.xlu0 %2127, %v2125
    %v2129 = vpop.permute.xlu0 %2128
    %v2131 = vmul.f32 %v2120, %v2129
    %s2132 = scalar_lea.vmem [#allocation14], 16
    %2133 = vst [vmem:[%s2132] sm:$0xff] %v2131
    %2134 = vmatprep.subr.mxu0 %v538
    %2135 = vmatpush1.msra.mxu0 %v537
    %2136 = vmatprep.subr.mxu0 %v544
    %2137 = vmatpush1.msra.mxu0 %v543
    %2138 = vmatprep.subr.mxu0 %v550
    %2139 = vmatpush1.msra.mxu0 %v549
    %2140 = vmatprep.subr.mxu0 %v556
    %2141 = vmatpush1.msra.mxu0 %v555
    %2142 = vmatprep.subr.mxu0 %v562
    %2143 = vmatpush1.msra.mxu0 %v561
    %2144 = vmatprep.subr.mxu0 %v568
    %2145 = vmatpush1.msra.mxu0 %v567
    %2146 = vmatprep.subr.mxu0 %v574
    %2147 = vmatpush1.msra.mxu0 %v573
    %2148 = vmatprep.subr.mxu0 %v580
    %2149 = vmatpush1.msra.mxu0 %v579
    %2150 = vmatprep.subr.mxu0 %v586
    %2151 = vmatpush1.msra.mxu0 %v585
    %2152 = vmatprep.subr.mxu0 %v592
    %2153 = vmatpush1.msra.mxu0 %v591
    %2154 = vmatprep.subr.mxu0 %v598
    %2155 = vmatpush1.msra.mxu0 %v597
    %2156 = vmatprep.subr.mxu0 %v604
    %2157 = vmatpush1.msra.mxu0 %v603
    %2158 = vmatprep.subr.mxu0 %v610
    %2159 = vmatpush1.msra.mxu0 %v609
    %2160 = vmatprep.subr.mxu0 %v616
    %2161 = vmatpush1.msra.mxu0 %v615
    %2162 = vmatprep.subr.mxu0 %v622
    %2163 = vmatpush1.msra.mxu0 %v621
    %2164 = vmatprep.subr.mxu0 %v628
    %2165 = vmatpush1.msra.mxu0 %v627
    %2166 = vmatprep.subr.mxu0 0.0
    %2167 = vmatpush1.msra.mxu0 0.0
    %2168 = vmatprep.subr.mxu0 0.0
    %2169 = vmatpush1.msra.mxu0 0.0
    %2170 = vmatprep.subr.mxu0 0.0
    %2171 = vmatpush1.msra.mxu0 0.0
    %2172 = vmatprep.subr.mxu0 0.0
    %2173 = vmatpush1.msra.mxu0 0.0
    %2174 = vmatprep.subr.mxu0 0.0
    %2175 = vmatpush1.msra.mxu0 0.0
    %2176 = vmatprep.subr.mxu0 0.0
    %2177 = vmatpush1.msra.mxu0 0.0
    %2178 = vmatprep.subr.mxu0 0.0
    %2179 = vmatpush1.msra.mxu0 0.0
    %2180 = vmatprep.subr.mxu0 0.0
    %2181 = vmatpush1.msra.mxu0 0.0
    %2182 = vmatprep.subr.mxu0 0.0
    %2183 = vmatpush1.msra.mxu0 0.0
    %2184 = vmatprep.subr.mxu0 0.0
    %2185 = vmatpush1.msra.mxu0 0.0
    %2186 = vmatprep.subr.mxu0 0.0
    %2187 = vmatpush1.msra.mxu0 0.0
    %2188 = vmatprep.subr.mxu0 0.0
    %2189 = vmatpush1.msra.mxu0 0.0
    %2190 = vmatprep.subr.mxu0 0.0
    %2191 = vmatpush1.msra.mxu0 0.0
    %2192 = vmatprep.subr.mxu0 0.0
    %2193 = vmatpush1.msra.mxu0 0.0
    %2194 = vmatprep.subr.mxu0 0.0
    %2195 = vmatpush1.msra.mxu0 0.0
    %2196 = vmatprep.subr.mxu0 0.0
    %2197 = vmatpush1.msra.mxu0 0.0
    %2198 = vmatprep.mubr.f32.mxu0 0.0
    %2199 = vmatmul.mubr.f32.gmra.mrb[0].mxu0 %v2098
    %v2200 = vpop.f32.mrb[0].mxu0
    %v2201 = vadd.f32 0.0, %v2200
    %v2202 = vpop.f32.mrb[0].mxu0
    %v2203 = vadd.f32 0.0, %v2202
    %2204 = vdwg.mxu0
    %2205 = vmatprep.subr.mxu0 %v540
    %2206 = vmatpush1.msra.mxu0 %v539
    %2207 = vmatprep.subr.mxu0 %v546
    %2208 = vmatpush1.msra.mxu0 %v545
    %2209 = vmatprep.subr.mxu0 %v552
    %2210 = vmatpush1.msra.mxu0 %v551
    %2211 = vmatprep.subr.mxu0 %v558
    %2212 = vmatpush1.msra.mxu0 %v557
    %2213 = vmatprep.subr.mxu0 %v564
    %2214 = vmatpush1.msra.mxu0 %v563
    %2215 = vmatprep.subr.mxu0 %v570
    %2216 = vmatpush1.msra.mxu0 %v569
    %2217 = vmatprep.subr.mxu0 %v576
    %2218 = vmatpush1.msra.mxu0 %v575
    %2219 = vmatprep.subr.mxu0 %v582
    %2220 = vmatpush1.msra.mxu0 %v581
    %2221 = vmatprep.subr.mxu0 %v588
    %2222 = vmatpush1.msra.mxu0 %v587
    %2223 = vmatprep.subr.mxu0 %v594
    %2224 = vmatpush1.msra.mxu0 %v593
    %2225 = vmatprep.subr.mxu0 %v600
    %2226 = vmatpush1.msra.mxu0 %v599
    %2227 = vmatprep.subr.mxu0 %v606
    %2228 = vmatpush1.msra.mxu0 %v605
    %2229 = vmatprep.subr.mxu0 %v612
    %2230 = vmatpush1.msra.mxu0 %v611
    %2231 = vmatprep.subr.mxu0 %v618
    %2232 = vmatpush1.msra.mxu0 %v617
    %2233 = vmatprep.subr.mxu0 %v624
    %2234 = vmatpush1.msra.mxu0 %v623
    %2235 = vmatprep.subr.mxu0 %v630
    %2236 = vmatpush1.msra.mxu0 %v629
    %2237 = vmatprep.subr.mxu0 0.0
    %2238 = vmatpush1.msra.mxu0 0.0
    %2239 = vmatprep.subr.mxu0 0.0
    %2240 = vmatpush1.msra.mxu0 0.0
    %2241 = vmatprep.subr.mxu0 0.0
    %2242 = vmatpush1.msra.mxu0 0.0
    %2243 = vmatprep.subr.mxu0 0.0
    %2244 = vmatpush1.msra.mxu0 0.0
    %2245 = vmatprep.subr.mxu0 0.0
    %2246 = vmatpush1.msra.mxu0 0.0
    %2247 = vmatprep.subr.mxu0 0.0
    %2248 = vmatpush1.msra.mxu0 0.0
    %2249 = vmatprep.subr.mxu0 0.0
    %2250 = vmatpush1.msra.mxu0 0.0
    %2251 = vmatprep.subr.mxu0 0.0
    %2252 = vmatpush1.msra.mxu0 0.0
    %2253 = vmatprep.subr.mxu0 0.0
    %2254 = vmatpush1.msra.mxu0 0.0
    %2255 = vmatprep.subr.mxu0 0.0
    %2256 = vmatpush1.msra.mxu0 0.0
    %2257 = vmatprep.subr.mxu0 0.0
    %2258 = vmatpush1.msra.mxu0 0.0
    %2259 = vmatprep.subr.mxu0 0.0
    %2260 = vmatpush1.msra.mxu0 0.0
    %2261 = vmatprep.subr.mxu0 0.0
    %2262 = vmatpush1.msra.mxu0 0.0
    %2263 = vmatprep.subr.mxu0 0.0
    %2264 = vmatpush1.msra.mxu0 0.0
    %2265 = vmatprep.subr.mxu0 0.0
    %2266 = vmatpush1.msra.mxu0 0.0
    %2267 = vmatprep.subr.mxu0 0.0
    %2268 = vmatpush1.msra.mxu0 0.0
    %2269 = vmatprep.mubr.f32.mxu0 0.0
    %2270 = vmatmul.mubr.f32.gmra.mrb[0].mxu0 %v2098
    %v2271 = vpop.f32.mrb[0].mxu0
    %v2272 = vadd.f32 0.0, %v2271
    %v2273 = vpop.f32.mrb[0].mxu0
    %v2274 = vadd.f32 0.0, %v2273
    %2275 = vdwg.mxu0
    %2276 = vmatprep.subr.mxu0 %v542
    %2277 = vmatpush1.msra.mxu0 %v541
    %2278 = vmatprep.subr.mxu0 %v548
    %2279 = vmatpush1.msra.mxu0 %v547
    %2280 = vmatprep.subr.mxu0 %v554
    %2281 = vmatpush1.msra.mxu0 %v553
    %2282 = vmatprep.subr.mxu0 %v560
    %2283 = vmatpush1.msra.mxu0 %v559
    %2284 = vmatprep.subr.mxu0 %v566
    %2285 = vmatpush1.msra.mxu0 %v565
    %2286 = vmatprep.subr.mxu0 %v572
    %2287 = vmatpush1.msra.mxu0 %v571
    %2288 = vmatprep.subr.mxu0 %v578
    %2289 = vmatpush1.msra.mxu0 %v577
    %2290 = vmatprep.subr.mxu0 %v584
    %2291 = vmatpush1.msra.mxu0 %v583
    %2292 = vmatprep.subr.mxu0 %v590
    %2293 = vmatpush1.msra.mxu0 %v589
    %2294 = vmatprep.subr.mxu0 %v596
    %2295 = vmatpush1.msra.mxu0 %v595
    %2296 = vmatprep.subr.mxu0 %v602
    %2297 = vmatpush1.msra.mxu0 %v601
    %2298 = vmatprep.subr.mxu0 %v608
    %2299 = vmatpush1.msra.mxu0 %v607
    %2300 = vmatprep.subr.mxu0 %v614
    %2301 = vmatpush1.msra.mxu0 %v613
    %2302 = vmatprep.subr.mxu0 %v620
    %2303 = vmatpush1.msra.mxu0 %v619
    %2304 = vmatprep.subr.mxu0 %v626
    %2305 = vmatpush1.msra.mxu0 %v625
    %2306 = vmatprep.subr.mxu0 %v632
    %2307 = vmatpush1.msra.mxu0 %v631
    %2308 = vmatprep.subr.mxu0 0.0
    %2309 = vmatpush1.msra.mxu0 0.0
    %2310 = vmatprep.subr.mxu0 0.0
    %2311 = vmatpush1.msra.mxu0 0.0
    %2312 = vmatprep.subr.mxu0 0.0
    %2313 = vmatpush1.msra.mxu0 0.0
    %2314 = vmatprep.subr.mxu0 0.0
    %2315 = vmatpush1.msra.mxu0 0.0
    %2316 = vmatprep.subr.mxu0 0.0
    %2317 = vmatpush1.msra.mxu0 0.0
    %2318 = vmatprep.subr.mxu0 0.0
    %2319 = vmatpush1.msra.mxu0 0.0
    %2320 = vmatprep.subr.mxu0 0.0
    %2321 = vmatpush1.msra.mxu0 0.0
    %2322 = vmatprep.subr.mxu0 0.0
    %2323 = vmatpush1.msra.mxu0 0.0
    %2324 = vmatprep.subr.mxu0 0.0
    %2325 = vmatpush1.msra.mxu0 0.0
    %2326 = vmatprep.subr.mxu0 0.0
    %2327 = vmatpush1.msra.mxu0 0.0
    %2328 = vmatprep.subr.mxu0 0.0
    %2329 = vmatpush1.msra.mxu0 0.0
    %2330 = vmatprep.subr.mxu0 0.0
    %2331 = vmatpush1.msra.mxu0 0.0
    %2332 = vmatprep.subr.mxu0 0.0
    %2333 = vmatpush1.msra.mxu0 0.0
    %2334 = vmatprep.subr.mxu0 0.0
    %2335 = vmatpush1.msra.mxu0 0.0
    %2336 = vmatprep.subr.mxu0 0.0
    %2337 = vmatpush1.msra.mxu0 0.0
    %2338 = vmatprep.subr.mxu0 0.0
    %2339 = vmatpush1.msra.mxu0 0.0
    %2340 = vmatprep.mubr.f32.mxu0 0.0
    %2341 = vmatmul.mubr.f32.gmra.mrb[0].mxu0 %v2098
    %v2342 = vpop.f32.mrb[0].mxu0
    %v2343 = vadd.f32 0.0, %v2342
    %v2344 = vpop.f32.mrb[0].mxu0
    %v2345 = vadd.f32 0.0, %v2344
    %2346 = vdwg.mxu0
    %v2347 = vadd.f32 %v2274, %v1077
    %v2348 = vadd.f32 %v2343, %v1081
    %v2349 = vadd.f32 %v2345, %v1085
    %2350 = vmatprep.subr.mxu0 %v634
    %2351 = vmatpush1.msra.mxu0 %v633
    %2352 = vmatprep.subr.mxu0 %v637
    %2353 = vmatpush1.msra.mxu0 %v636
    %2354 = vmatprep.subr.mxu0 %v640
    %2355 = vmatpush1.msra.mxu0 %v639
    %2356 = vmatprep.subr.mxu0 %v643
    %2357 = vmatpush1.msra.mxu0 %v642
    %2358 = vmatprep.subr.mxu0 %v646
    %2359 = vmatpush1.msra.mxu0 %v645
    %2360 = vmatprep.subr.mxu0 %v649
    %2361 = vmatpush1.msra.mxu0 %v648
    %2362 = vmatprep.subr.mxu0 %v652
    %2363 = vmatpush1.msra.mxu0 %v651
    %2364 = vmatprep.subr.mxu0 %v655
    %2365 = vmatpush1.msra.mxu0 %v654
    %2366 = vmatprep.subr.mxu0 %v658
    %2367 = vmatpush1.msra.mxu0 %v657
    %2368 = vmatprep.subr.mxu0 %v661
    %2369 = vmatpush1.msra.mxu0 %v660
    %2370 = vmatprep.subr.mxu0 %v664
    %2371 = vmatpush1.msra.mxu0 %v663
    %2372 = vmatprep.subr.mxu0 %v667
    %2373 = vmatpush1.msra.mxu0 %v666
    %2374 = vmatprep.subr.mxu0 %v670
    %2375 = vmatpush1.msra.mxu0 %v669
    %2376 = vmatprep.subr.mxu0 %v673
    %2377 = vmatpush1.msra.mxu0 %v672
    %2378 = vmatprep.subr.mxu0 %v676
    %2379 = vmatpush1.msra.mxu0 %v675
    %2380 = vmatprep.subr.mxu0 %v679
    %2381 = vmatpush1.msra.mxu0 %v678
    %2382 = vmatprep.subr.mxu0 0.0
    %2383 = vmatpush1.msra.mxu0 0.0
    %2384 = vmatprep.subr.mxu0 0.0
    %2385 = vmatpush1.msra.mxu0 0.0
    %2386 = vmatprep.subr.mxu0 0.0
    %2387 = vmatpush1.msra.mxu0 0.0
    %2388 = vmatprep.subr.mxu0 0.0
    %2389 = vmatpush1.msra.mxu0 0.0
    %2390 = vmatprep.subr.mxu0 0.0
    %2391 = vmatpush1.msra.mxu0 0.0
    %2392 = vmatprep.subr.mxu0 0.0
    %2393 = vmatpush1.msra.mxu0 0.0
    %2394 = vmatprep.subr.mxu0 0.0
    %2395 = vmatpush1.msra.mxu0 0.0
    %2396 = vmatprep.subr.mxu0 0.0
    %2397 = vmatpush1.msra.mxu0 0.0
    %2398 = vmatprep.subr.mxu0 0.0
    %2399 = vmatpush1.msra.mxu0 0.0
    %2400 = vmatprep.subr.mxu0 0.0
    %2401 = vmatpush1.msra.mxu0 0.0
    %2402 = vmatprep.subr.mxu0 0.0
    %2403 = vmatpush1.msra.mxu0 0.0
    %2404 = vmatprep.subr.mxu0 0.0
    %2405 = vmatpush1.msra.mxu0 0.0
    %2406 = vmatprep.subr.mxu0 0.0
    %2407 = vmatpush1.msra.mxu0 0.0
    %2408 = vmatprep.subr.mxu0 0.0
    %2409 = vmatpush1.msra.mxu0 0.0
    %2410 = vmatprep.subr.mxu0 0.0
    %2411 = vmatpush1.msra.mxu0 0.0
    %2412 = vmatprep.subr.mxu0 0.0
    %2413 = vmatpush1.msra.mxu0 0.0
    %2414 = vmatprep.mubr.f32.mxu0 0.0
    %2415 = vmatmul.mubr.f32.gmra.mrb[0].mxu0 %v2120
    %v2416 = vpop.f32.mrb[0].mxu0
    %v2417 = vadd.f32 0.0, %v2416
    %v2418 = vpop.f32.mrb[0].mxu0
    %v2419 = vadd.f32 0.0, %v2418
    %2420 = vdwg.mxu0
    %2421 = vmatprep.subr.mxu0 0.0
    %2422 = vmatpush1.msra.mxu0 %v635
    %2423 = vmatprep.subr.mxu0 0.0
    %2424 = vmatpush1.msra.mxu0 %v638
    %2425 = vmatprep.subr.mxu0 0.0
    %2426 = vmatpush1.msra.mxu0 %v641
    %2427 = vmatprep.subr.mxu0 0.0
    %2428 = vmatpush1.msra.mxu0 %v644
    %2429 = vmatprep.subr.mxu0 0.0
    %2430 = vmatpush1.msra.mxu0 %v647
    %2431 = vmatprep.subr.mxu0 0.0
    %2432 = vmatpush1.msra.mxu0 %v650
    %2433 = vmatprep.subr.mxu0 0.0
    %2434 = vmatpush1.msra.mxu0 %v653
    %2435 = vmatprep.subr.mxu0 0.0
    %2436 = vmatpush1.msra.mxu0 %v656
    %2437 = vmatprep.subr.mxu0 0.0
    %2438 = vmatpush1.msra.mxu0 %v659
    %2439 = vmatprep.subr.mxu0 0.0
    %2440 = vmatpush1.msra.mxu0 %v662
    %2441 = vmatprep.subr.mxu0 0.0
    %2442 = vmatpush1.msra.mxu0 %v665
    %2443 = vmatprep.subr.mxu0 0.0
    %2444 = vmatpush1.msra.mxu0 %v668
    %2445 = vmatprep.subr.mxu0 0.0
    %2446 = vmatpush1.msra.mxu0 %v671
    %2447 = vmatprep.subr.mxu0 0.0
    %2448 = vmatpush1.msra.mxu0 %v674
    %2449 = vmatprep.subr.mxu0 0.0
    %2450 = vmatpush1.msra.mxu0 %v677
    %2451 = vmatprep.subr.mxu0 0.0
    %2452 = vmatpush1.msra.mxu0 %v680
    %2453 = vmatprep.subr.mxu0 0.0
    %2454 = vmatpush1.msra.mxu0 0.0
    %2455 = vmatprep.subr.mxu0 0.0
    %2456 = vmatpush1.msra.mxu0 0.0
    %2457 = vmatprep.subr.mxu0 0.0
    %2458 = vmatpush1.msra.mxu0 0.0
    %2459 = vmatprep.subr.mxu0 0.0
    %2460 = vmatpush1.msra.mxu0 0.0
    %2461 = vmatprep.subr.mxu0 0.0
    %2462 = vmatpush1.msra.mxu0 0.0
    %2463 = vmatprep.subr.mxu0 0.0
    %2464 = vmatpush1.msra.mxu0 0.0
    %2465 = vmatprep.subr.mxu0 0.0
    %2466 = vmatpush1.msra.mxu0 0.0
    %2467 = vmatprep.subr.mxu0 0.0
    %2468 = vmatpush1.msra.mxu0 0.0
    %2469 = vmatprep.subr.mxu0 0.0
    %2470 = vmatpush1.msra.mxu0 0.0
    %2471 = vmatprep.subr.mxu0 0.0
    %2472 = vmatpush1.msra.mxu0 0.0
    %2473 = vmatprep.subr.mxu0 0.0
    %2474 = vmatpush1.msra.mxu0 0.0
    %2475 = vmatprep.subr.mxu0 0.0
    %2476 = vmatpush1.msra.mxu0 0.0
    %2477 = vmatprep.subr.mxu0 0.0
    %2478 = vmatpush1.msra.mxu0 0.0
    %2479 = vmatprep.subr.mxu0 0.0
    %2480 = vmatpush1.msra.mxu0 0.0
    %2481 = vmatprep.subr.mxu0 0.0
    %2482 = vmatpush1.msra.mxu0 0.0
    %2483 = vmatprep.subr.mxu0 0.0
    %2484 = vmatpush1.msra.mxu0 0.0
    %2485 = vmatprep.mubr.f32.mxu0 0.0
    %2486 = vmatmul.mubr.f32.gmra.mrb[0].mxu0 %v2120
    %v2487 = vpop.f32.mrb[0].mxu0
    %v2488 = vadd.f32 0.0, %v2487
    %v2489 = vpop.f32.mrb[0].mxu0
    %2490 = vdwg.mxu0
    %s2491 = scalar_lea.vmem [#allocation4], 96
    %v2492 = vld [vmem:[%s2491] sm:$0xff]
    %v2493 = vld [vmem:[%s2491 + $0x8] sm:$0xff]
    %v2494 = vld [vmem:[%s2491 + $0x10] sm:$0xff]
    %v2495 = vadd.f32 %v2492, %v2201
    %v2496 = vxor.u32 %v2495, 2147483648
    %v2497 = vmul.f32 %v2496, 1.442695
    %v2498 = vpow.pop %v2497
    %v2499 = vadd.f32 %v2498, 1.0
    %v2500 = vrcp.pop %v2499
    %v2501 = vmul.f32 1.0, %v2500
    %v2502 = vadd.f32 %v2493, %v2203
    %v2503 = vxor.u32 %v2502, 2147483648
    %v2504 = vmul.f32 %v2503, 1.442695
    %v2505 = vpow.pop %v2504
    %v2506 = vadd.f32 %v2505, 1.0
    %v2507 = vrcp.pop %v2506
    %v2508 = vmul.f32 1.0, %v2507
    %v2509 = vadd.f32 %v2272, %v850
    %v2510 = vmul.f32 %v2501, %v2509
    %v2511 = vadd.f32 %v2494, %v2510
    %v2512 = vtanh.pop %v2511
    %v2513 = vsub.f32 1.0, %v2508
    %v2514 = vmul.f32 %v2513, %v2512
    %v2515 = vmul.f32 %v2508, %v2098
    %v2516 = vadd.f32 %v2514, %v2515
    %v2517 = vadd.f32 %v2347, %v2417
    %v2518 = vxor.u32 %v2517, 2147483648
    %v2519 = vmul.f32 %v2518, 1.442695
    %v2520 = vpow.pop %v2519
    %v2521 = vadd.f32 %v2520, 1.0
    %v2522 = vrcp.pop %v2521
    %v2523 = vmul.f32 1.0, %v2522
    %v2524 = vadd.f32 %v2348, %v2419
    %v2525 = vxor.u32 %v2524, 2147483648
    %v2526 = vmul.f32 %v2525, 1.442695
    %v2527 = vpow.pop %v2526
    %v2528 = vadd.f32 %v2527, 1.0
    %v2529 = vrcp.pop %v2528
    %v2530 = vmul.f32 1.0, %v2529
    %v2531 = vadd.f32 %v2488, %v1277
    %v2532 = vmul.f32 %v2523, %v2531
    %v2533 = vadd.f32 %v2349, %v2532
    %v2534 = vtanh.pop %v2533
    %v2535 = vsub.f32 1.0, %v2530
    %v2536 = vmul.f32 %v2535, %v2534
    %v2537 = vmul.f32 %v2530, %v2120
    %v2538 = vadd.f32 %v2536, %v2537
    %s2539 = sadd.s32 %s685, 3
    %v2540 = vstv %s2539
    %vm2541 = vcmp.lt.s32.totalorder %v2540, %v684
    %v2542 = vsel %vm2541, 1, 0
    %v2543 = vcvt.s32.f32 %v2542
    %2545 = vset.pattern.permute.xlu0 0
    %2546 = vperm.xlu0 %2545, %v2543
    %v2547 = vpop.permute.xlu0 %2546
    %v2549 = vmul.f32 %v2538, %v2547
    %s2550 = scalar_lea.vmem [#allocation14], 24
    %2551 = vst [vmem:[%s2550] sm:$0xff] %v2549
    %2552 = vmatprep.subr.mxu0 %v538
    %2553 = vmatpush1.msra.mxu0 %v537
    %2554 = vmatprep.subr.mxu0 %v544
    %2555 = vmatpush1.msra.mxu0 %v543
    %2556 = vmatprep.subr.mxu0 %v550
    %2557 = vmatpush1.msra.mxu0 %v549
    %2558 = vmatprep.subr.mxu0 %v556
    %2559 = vmatpush1.msra.mxu0 %v555
    %2560 = vmatprep.subr.mxu0 %v562
    %2561 = vmatpush1.msra.mxu0 %v561
    %2562 = vmatprep.subr.mxu0 %v568
    %2563 = vmatpush1.msra.mxu0 %v567
    %2564 = vmatprep.subr.mxu0 %v574
    %2565 = vmatpush1.msra.mxu0 %v573
    %2566 = vmatprep.subr.mxu0 %v580
    %2567 = vmatpush1.msra.mxu0 %v579
    %2568 = vmatprep.subr.mxu0 %v586
    %2569 = vmatpush1.msra.mxu0 %v585
    %2570 = vmatprep.subr.mxu0 %v592
    %2571 = vmatpush1.msra.mxu0 %v591
    %2572 = vmatprep.subr.mxu0 %v598
    %2573 = vmatpush1.msra.mxu0 %v597
    %2574 = vmatprep.subr.mxu0 %v604
    %2575 = vmatpush1.msra.mxu0 %v603
    %2576 = vmatprep.subr.mxu0 %v610
    %2577 = vmatpush1.msra.mxu0 %v609
    %2578 = vmatprep.subr.mxu0 %v616
    %2579 = vmatpush1.msra.mxu0 %v615
    %2580 = vmatprep.subr.mxu0 %v622
    %2581 = vmatpush1.msra.mxu0 %v621
    %2582 = vmatprep.subr.mxu0 %v628
    %2583 = vmatpush1.msra.mxu0 %v627
    %2584 = vmatprep.subr.mxu0 0.0
    %2585 = vmatpush1.msra.mxu0 0.0
    %2586 = vmatprep.subr.mxu0 0.0
    %2587 = vmatpush1.msra.mxu0 0.0
    %2588 = vmatprep.subr.mxu0 0.0
    %2589 = vmatpush1.msra.mxu0 0.0
    %2590 = vmatprep.subr.mxu0 0.0
    %2591 = vmatpush1.msra.mxu0 0.0
    %2592 = vmatprep.subr.mxu0 0.0
    %2593 = vmatpush1.msra.mxu0 0.0
    %2594 = vmatprep.subr.mxu0 0.0
    %2595 = vmatpush1.msra.mxu0 0.0
    %2596 = vmatprep.subr.mxu0 0.0
    %2597 = vmatpush1.msra.mxu0 0.0
    %2598 = vmatprep.subr.mxu0 0.0
    %2599 = vmatpush1.msra.mxu0 0.0
    %2600 = vmatprep.subr.mxu0 0.0
    %2601 = vmatpush1.msra.mxu0 0.0
    %2602 = vmatprep.subr.mxu0 0.0
    %2603 = vmatpush1.msra.mxu0 0.0
    %2604 = vmatprep.subr.mxu0 0.0
    %2605 = vmatpush1.msra.mxu0 0.0
    %2606 = vmatprep.subr.mxu0 0.0
    %2607 = vmatpush1.msra.mxu0 0.0
    %2608 = vmatprep.subr.mxu0 0.0
    %2609 = vmatpush1.msra.mxu0 0.0
    %2610 = vmatprep.subr.mxu0 0.0
    %2611 = vmatpush1.msra.mxu0 0.0
    %2612 = vmatprep.subr.mxu0 0.0
    %2613 = vmatpush1.msra.mxu0 0.0
    %2614 = vmatprep.subr.mxu0 0.0
    %2615 = vmatpush1.msra.mxu0 0.0
    %2616 = vmatprep.mubr.f32.mxu0 0.0
    %2617 = vmatmul.mubr.f32.gmra.mrb[0].mxu0 %v2516
    %v2618 = vpop.f32.mrb[0].mxu0
    %v2619 = vadd.f32 0.0, %v2618
    %v2620 = vpop.f32.mrb[0].mxu0
    %v2621 = vadd.f32 0.0, %v2620
    %2622 = vdwg.mxu0
    %2623 = vmatprep.subr.mxu0 %v540
    %2624 = vmatpush1.msra.mxu0 %v539
    %2625 = vmatprep.subr.mxu0 %v546
    %2626 = vmatpush1.msra.mxu0 %v545
    %2627 = vmatprep.subr.mxu0 %v552
    %2628 = vmatpush1.msra.mxu0 %v551
    %2629 = vmatprep.subr.mxu0 %v558
    %2630 = vmatpush1.msra.mxu0 %v557
    %2631 = vmatprep.subr.mxu0 %v564
    %2632 = vmatpush1.msra.mxu0 %v563
    %2633 = vmatprep.subr.mxu0 %v570
    %2634 = vmatpush1.msra.mxu0 %v569
    %2635 = vmatprep.subr.mxu0 %v576
    %2636 = vmatpush1.msra.mxu0 %v575
    %2637 = vmatprep.subr.mxu0 %v582
    %2638 = vmatpush1.msra.mxu0 %v581
    %2639 = vmatprep.subr.mxu0 %v588
    %2640 = vmatpush1.msra.mxu0 %v587
    %2641 = vmatprep.subr.mxu0 %v594
    %2642 = vmatpush1.msra.mxu0 %v593
    %2643 = vmatprep.subr.mxu0 %v600
    %2644 = vmatpush1.msra.mxu0 %v599
    %2645 = vmatprep.subr.mxu0 %v606
    %2646 = vmatpush1.msra.mxu0 %v605
    %2647 = vmatprep.subr.mxu0 %v612
    %2648 = vmatpush1.msra.mxu0 %v611
    %2649 = vmatprep.subr.mxu0 %v618
    %2650 = vmatpush1.msra.mxu0 %v617
    %2651 = vmatprep.subr.mxu0 %v624
    %2652 = vmatpush1.msra.mxu0 %v623
    %2653 = vmatprep.subr.mxu0 %v630
    %2654 = vmatpush1.msra.mxu0 %v629
    %2655 = vmatprep.subr.mxu0 0.0
    %2656 = vmatpush1.msra.mxu0 0.0
    %2657 = vmatprep.subr.mxu0 0.0
    %2658 = vmatpush1.msra.mxu0 0.0
    %2659 = vmatprep.subr.mxu0 0.0
    %2660 = vmatpush1.msra.mxu0 0.0
    %2661 = vmatprep.subr.mxu0 0.0
    %2662 = vmatpush1.msra.mxu0 0.0
    %2663 = vmatprep.subr.mxu0 0.0
    %2664 = vmatpush1.msra.mxu0 0.0
    %2665 = vmatprep.subr.mxu0 0.0
    %2666 = vmatpush1.msra.mxu0 0.0
    %2667 = vmatprep.subr.mxu0 0.0
    %2668 = vmatpush1.msra.mxu0 0.0
    %2669 = vmatprep.subr.mxu0 0.0
    %2670 = vmatpush1.msra.mxu0 0.0
    %2671 = vmatprep.subr.mxu0 0.0
    %2672 = vmatpush1.msra.mxu0 0.0
    %2673 = vmatprep.subr.mxu0 0.0
    %2674 = vmatpush1.msra.mxu0 0.0
    %2675 = vmatprep.subr.mxu0 0.0
    %2676 = vmatpush1.msra.mxu0 0.0
    %2677 = vmatprep.subr.mxu0 0.0
    %2678 = vmatpush1.msra.mxu0 0.0
    %2679 = vmatprep.subr.mxu0 0.0
    %2680 = vmatpush1.msra.mxu0 0.0
    %2681 = vmatprep.subr.mxu0 0.0
    %2682 = vmatpush1.msra.mxu0 0.0
    %2683 = vmatprep.subr.mxu0 0.0
    %2684 = vmatpush1.msra.mxu0 0.0
    %2685 = vmatprep.subr.mxu0 0.0
    %2686 = vmatpush1.msra.mxu0 0.0
    %2687 = vmatprep.mubr.f32.mxu0 0.0
    %2688 = vmatmul.mubr.f32.gmra.mrb[0].mxu0 %v2516
    %v2689 = vpop.f32.mrb[0].mxu0
    %v2690 = vadd.f32 0.0, %v2689
    %v2691 = vpop.f32.mrb[0].mxu0
    %v2692 = vadd.f32 0.0, %v2691
    %2693 = vdwg.mxu0
    %2694 = vmatprep.subr.mxu0 %v542
    %2695 = vmatpush1.msra.mxu0 %v541
    %2696 = vmatprep.subr.mxu0 %v548
    %2697 = vmatpush1.msra.mxu0 %v547
    %2698 = vmatprep.subr.mxu0 %v554
    %2699 = vmatpush1.msra.mxu0 %v553
    %2700 = vmatprep.subr.mxu0 %v560
    %2701 = vmatpush1.msra.mxu0 %v559
    %2702 = vmatprep.subr.mxu0 %v566
    %2703 = vmatpush1.msra.mxu0 %v565
    %2704 = vmatprep.subr.mxu0 %v572
    %2705 = vmatpush1.msra.mxu0 %v571
    %2706 = vmatprep.subr.mxu0 %v578
    %2707 = vmatpush1.msra.mxu0 %v577
    %2708 = vmatprep.subr.mxu0 %v584
    %2709 = vmatpush1.msra.mxu0 %v583
    %2710 = vmatprep.subr.mxu0 %v590
    %2711 = vmatpush1.msra.mxu0 %v589
    %2712 = vmatprep.subr.mxu0 %v596
    %2713 = vmatpush1.msra.mxu0 %v595
    %2714 = vmatprep.subr.mxu0 %v602
    %2715 = vmatpush1.msra.mxu0 %v601
    %2716 = vmatprep.subr.mxu0 %v608
    %2717 = vmatpush1.msra.mxu0 %v607
    %2718 = vmatprep.subr.mxu0 %v614
    %2719 = vmatpush1.msra.mxu0 %v613
    %2720 = vmatprep.subr.mxu0 %v620
    %2721 = vmatpush1.msra.mxu0 %v619
    %2722 = vmatprep.subr.mxu0 %v626
    %2723 = vmatpush1.msra.mxu0 %v625
    %2724 = vmatprep.subr.mxu0 %v632
    %2725 = vmatpush1.msra.mxu0 %v631
    %2726 = vmatprep.subr.mxu0 0.0
    %2727 = vmatpush1.msra.mxu0 0.0
    %2728 = vmatprep.subr.mxu0 0.0
    %2729 = vmatpush1.msra.mxu0 0.0
    %2730 = vmatprep.subr.mxu0 0.0
    %2731 = vmatpush1.msra.mxu0 0.0
    %2732 = vmatprep.subr.mxu0 0.0
    %2733 = vmatpush1.msra.mxu0 0.0
    %2734 = vmatprep.subr.mxu0 0.0
    %2735 = vmatpush1.msra.mxu0 0.0
    %2736 = vmatprep.subr.mxu0 0.0
    %2737 = vmatpush1.msra.mxu0 0.0
    %2738 = vmatprep.subr.mxu0 0.0
    %2739 = vmatpush1.msra.mxu0 0.0
    %2740 = vmatprep.subr.mxu0 0.0
    %2741 = vmatpush1.msra.mxu0 0.0
    %2742 = vmatprep.subr.mxu0 0.0
    %2743 = vmatpush1.msra.mxu0 0.0
    %2744 = vmatprep.subr.mxu0 0.0
    %2745 = vmatpush1.msra.mxu0 0.0
    %2746 = vmatprep.subr.mxu0 0.0
    %2747 = vmatpush1.msra.mxu0 0.0
    %2748 = vmatprep.subr.mxu0 0.0
    %2749 = vmatpush1.msra.mxu0 0.0
    %2750 = vmatprep.subr.mxu0 0.0
    %2751 = vmatpush1.msra.mxu0 0.0
    %2752 = vmatprep.subr.mxu0 0.0
    %2753 = vmatpush1.msra.mxu0 0.0
    %2754 = vmatprep.subr.mxu0 0.0
    %2755 = vmatpush1.msra.mxu0 0.0
    %2756 = vmatprep.subr.mxu0 0.0
    %2757 = vmatpush1.msra.mxu0 0.0
    %2758 = vmatprep.mubr.f32.mxu0 0.0
    %2759 = vmatmul.mubr.f32.gmra.mrb[0].mxu0 %v2516
    %v2760 = vpop.f32.mrb[0].mxu0
    %v2761 = vadd.f32 0.0, %v2760
    %v2762 = vpop.f32.mrb[0].mxu0
    %v2763 = vadd.f32 0.0, %v2762
    %2764 = vdwg.mxu0
    %v2765 = vadd.f32 %v2692, %v1077
    %v2766 = vadd.f32 %v2761, %v1081
    %v2767 = vadd.f32 %v2763, %v1085
    %2768 = vmatprep.subr.mxu0 %v634
    %2769 = vmatpush1.msra.mxu0 %v633
    %2770 = vmatprep.subr.mxu0 %v637
    %2771 = vmatpush1.msra.mxu0 %v636
    %2772 = vmatprep.subr.mxu0 %v640
    %2773 = vmatpush1.msra.mxu0 %v639
    %2774 = vmatprep.subr.mxu0 %v643
    %2775 = vmatpush1.msra.mxu0 %v642
    %2776 = vmatprep.subr.mxu0 %v646
    %2777 = vmatpush1.msra.mxu0 %v645
    %2778 = vmatprep.subr.mxu0 %v649
    %2779 = vmatpush1.msra.mxu0 %v648
    %2780 = vmatprep.subr.mxu0 %v652
    %2781 = vmatpush1.msra.mxu0 %v651
    %2782 = vmatprep.subr.mxu0 %v655
    %2783 = vmatpush1.msra.mxu0 %v654
    %2784 = vmatprep.subr.mxu0 %v658
    %2785 = vmatpush1.msra.mxu0 %v657
    %2786 = vmatprep.subr.mxu0 %v661
    %2787 = vmatpush1.msra.mxu0 %v660
    %2788 = vmatprep.subr.mxu0 %v664
    %2789 = vmatpush1.msra.mxu0 %v663
    %2790 = vmatprep.subr.mxu0 %v667
    %2791 = vmatpush1.msra.mxu0 %v666
    %2792 = vmatprep.subr.mxu0 %v670
    %2793 = vmatpush1.msra.mxu0 %v669
    %2794 = vmatprep.subr.mxu0 %v673
    %2795 = vmatpush1.msra.mxu0 %v672
    %2796 = vmatprep.subr.mxu0 %v676
    %2797 = vmatpush1.msra.mxu0 %v675
    %2798 = vmatprep.subr.mxu0 %v679
    %2799 = vmatpush1.msra.mxu0 %v678
    %2800 = vmatprep.subr.mxu0 0.0
    %2801 = vmatpush1.msra.mxu0 0.0
    %2802 = vmatprep.subr.mxu0 0.0
    %2803 = vmatpush1.msra.mxu0 0.0
    %2804 = vmatprep.subr.mxu0 0.0
    %2805 = vmatpush1.msra.mxu0 0.0
    %2806 = vmatprep.subr.mxu0 0.0
    %2807 = vmatpush1.msra.mxu0 0.0
    %2808 = vmatprep.subr.mxu0 0.0
    %2809 = vmatpush1.msra.mxu0 0.0
    %2810 = vmatprep.subr.mxu0 0.0
    %2811 = vmatpush1.msra.mxu0 0.0
    %2812 = vmatprep.subr.mxu0 0.0
    %2813 = vmatpush1.msra.mxu0 0.0
    %2814 = vmatprep.subr.mxu0 0.0
    %2815 = vmatpush1.msra.mxu0 0.0
    %2816 = vmatprep.subr.mxu0 0.0
    %2817 = vmatpush1.msra.mxu0 0.0
    %2818 = vmatprep.subr.mxu0 0.0
    %2819 = vmatpush1.msra.mxu0 0.0
    %2820 = vmatprep.subr.mxu0 0.0
    %2821 = vmatpush1.msra.mxu0 0.0
    %2822 = vmatprep.subr.mxu0 0.0
    %2823 = vmatpush1.msra.mxu0 0.0
    %2824 = vmatprep.subr.mxu0 0.0
    %2825 = vmatpush1.msra.mxu0 0.0
    %2826 = vmatprep.subr.mxu0 0.0
    %2827 = vmatpush1.msra.mxu0 0.0
    %2828 = vmatprep.subr.mxu0 0.0
    %2829 = vmatpush1.msra.mxu0 0.0
    %2830 = vmatprep.subr.mxu0 0.0
    %2831 = vmatpush1.msra.mxu0 0.0
    %2832 = vmatprep.mubr.f32.mxu0 0.0
    %2833 = vmatmul.mubr.f32.gmra.mrb[0].mxu0 %v2538
    %v2834 = vpop.f32.mrb[0].mxu0
    %v2835 = vadd.f32 0.0, %v2834
    %v2836 = vpop.f32.mrb[0].mxu0
    %v2837 = vadd.f32 0.0, %v2836
    %2838 = vdwg.mxu0
    %2839 = vmatprep.subr.mxu0 0.0
    %2840 = vmatpush1.msra.mxu0 %v635
    %2841 = vmatprep.subr.mxu0 0.0
    %2842 = vmatpush1.msra.mxu0 %v638
    %2843 = vmatprep.subr.mxu0 0.0
    %2844 = vmatpush1.msra.mxu0 %v641
    %2845 = vmatprep.subr.mxu0 0.0
    %2846 = vmatpush1.msra.mxu0 %v644
    %2847 = vmatprep.subr.mxu0 0.0
    %2848 = vmatpush1.msra.mxu0 %v647
    %2849 = vmatprep.subr.mxu0 0.0
    %2850 = vmatpush1.msra.mxu0 %v650
    %2851 = vmatprep.subr.mxu0 0.0
    %2852 = vmatpush1.msra.mxu0 %v653
    %2853 = vmatprep.subr.mxu0 0.0
    %2854 = vmatpush1.msra.mxu0 %v656
    %2855 = vmatprep.subr.mxu0 0.0
    %2856 = vmatpush1.msra.mxu0 %v659
    %2857 = vmatprep.subr.mxu0 0.0
    %2858 = vmatpush1.msra.mxu0 %v662
    %2859 = vmatprep.subr.mxu0 0.0
    %2860 = vmatpush1.msra.mxu0 %v665
    %2861 = vmatprep.subr.mxu0 0.0
    %2862 = vmatpush1.msra.mxu0 %v668
    %2863 = vmatprep.subr.mxu0 0.0
    %2864 = vmatpush1.msra.mxu0 %v671
    %2865 = vmatprep.subr.mxu0 0.0
    %2866 = vmatpush1.msra.mxu0 %v674
    %2867 = vmatprep.subr.mxu0 0.0
    %2868 = vmatpush1.msra.mxu0 %v677
    %2869 = vmatprep.subr.mxu0 0.0
    %2870 = vmatpush1.msra.mxu0 %v680
    %2871 = vmatprep.subr.mxu0 0.0
    %2872 = vmatpush1.msra.mxu0 0.0
    %2873 = vmatprep.subr.mxu0 0.0
    %2874 = vmatpush1.msra.mxu0 0.0
    %2875 = vmatprep.subr.mxu0 0.0
    %2876 = vmatpush1.msra.mxu0 0.0
    %2877 = vmatprep.subr.mxu0 0.0
    %2878 = vmatpush1.msra.mxu0 0.0
    %2879 = vmatprep.subr.mxu0 0.0
    %2880 = vmatpush1.msra.mxu0 0.0
    %2881 = vmatprep.subr.mxu0 0.0
    %2882 = vmatpush1.msra.mxu0 0.0
    %2883 = vmatprep.subr.mxu0 0.0
    %2884 = vmatpush1.msra.mxu0 0.0
    %2885 = vmatprep.subr.mxu0 0.0
    %2886 = vmatpush1.msra.mxu0 0.0
    %2887 = vmatprep.subr.mxu0 0.0
    %2888 = vmatpush1.msra.mxu0 0.0
    %2889 = vmatprep.subr.mxu0 0.0
    %2890 = vmatpush1.msra.mxu0 0.0
    %2891 = vmatprep.subr.mxu0 0.0
    %2892 = vmatpush1.msra.mxu0 0.0
    %2893 = vmatprep.subr.mxu0 0.0
    %2894 = vmatpush1.msra.mxu0 0.0
    %2895 = vmatprep.subr.mxu0 0.0
    %2896 = vmatpush1.msra.mxu0 0.0
    %2897 = vmatprep.subr.mxu0 0.0
    %2898 = vmatpush1.msra.mxu0 0.0
    %2899 = vmatprep.subr.mxu0 0.0
    %2900 = vmatpush1.msra.mxu0 0.0
    %2901 = vmatprep.subr.mxu0 0.0
    %2902 = vmatpush1.msra.mxu0 0.0
    %2903 = vmatprep.mubr.f32.mxu0 0.0
    %2904 = vmatmul.mubr.f32.gmra.mrb[0].mxu0 %v2538
    %v2905 = vpop.f32.mrb[0].mxu0
    %v2906 = vadd.f32 0.0, %v2905
    %v2907 = vpop.f32.mrb[0].mxu0
    %2908 = vdwg.mxu0
    %s2909 = scalar_lea.vmem [#allocation4], 120
    %v2910 = vld [vmem:[%s2909] sm:$0xff]
    %v2911 = vld [vmem:[%s2909 + $0x8] sm:$0xff]
    %v2912 = vld [vmem:[%s2909 + $0x10] sm:$0xff]
    %v2913 = vadd.f32 %v2910, %v2619
    %v2914 = vxor.u32 %v2913, 2147483648
    %v2915 = vmul.f32 %v2914, 1.442695
    %v2916 = vpow.pop %v2915
    %v2917 = vadd.f32 %v2916, 1.0
    %v2918 = vrcp.pop %v2917
    %v2919 = vmul.f32 1.0, %v2918
    %v2920 = vadd.f32 %v2911, %v2621
    %v2921 = vxor.u32 %v2920, 2147483648
    %v2922 = vmul.f32 %v2921, 1.442695
    %v2923 = vpow.pop %v2922
    %v2924 = vadd.f32 %v2923, 1.0
    %v2925 = vrcp.pop %v2924
    %v2926 = vmul.f32 1.0, %v2925
    %v2927 = vadd.f32 %v2690, %v850
    %v2928 = vmul.f32 %v2919, %v2927
    %v2929 = vadd.f32 %v2912, %v2928
    %v2930 = vtanh.pop %v2929
    %v2931 = vsub.f32 1.0, %v2926
    %v2932 = vmul.f32 %v2931, %v2930
    %v2933 = vmul.f32 %v2926, %v2516
    %v2934 = vadd.f32 %v2932, %v2933
    %v2935 = vadd.f32 %v2765, %v2835
    %v2936 = vxor.u32 %v2935, 2147483648
    %v2937 = vmul.f32 %v2936, 1.442695
    %v2938 = vpow.pop %v2937
    %v2939 = vadd.f32 %v2938, 1.0
    %v2940 = vrcp.pop %v2939
    %v2941 = vmul.f32 1.0, %v2940
    %v2942 = vadd.f32 %v2766, %v2837
    %v2943 = vxor.u32 %v2942, 2147483648
    %v2944 = vmul.f32 %v2943, 1.442695
    %v2945 = vpow.pop %v2944
    %v2946 = vadd.f32 %v2945, 1.0
    %v2947 = vrcp.pop %v2946
    %v2948 = vmul.f32 1.0, %v2947
    %v2949 = vadd.f32 %v2906, %v1277
    %v2950 = vmul.f32 %v2941, %v2949
    %v2951 = vadd.f32 %v2767, %v2950
    %v2952 = vtanh.pop %v2951
    %v2953 = vsub.f32 1.0, %v2948
    %v2954 = vmul.f32 %v2953, %v2952
    %v2955 = vmul.f32 %v2948, %v2538
    %v2956 = vadd.f32 %v2954, %v2955
    %s2957 = sadd.s32 %s685, 4
    %v2958 = vstv %s2957
    %vm2959 = vcmp.lt.s32.totalorder %v2958, %v684
    %v2960 = vsel %vm2959, 1, 0
    %v2961 = vcvt.s32.f32 %v2960
    %2963 = vset.pattern.permute.xlu0 0
    %2964 = vperm.xlu0 %2963, %v2961
    %v2965 = vpop.permute.xlu0 %2964
    %v2967 = vmul.f32 %v2956, %v2965
    %s2968 = scalar_lea.vmem [#allocation14], 32
    %2969 = vst [vmem:[%s2968] sm:$0xff] %v2967
    %2970 = vmatprep.subr.mxu0 %v538
    %2971 = vmatpush1.msra.mxu0 %v537
    %2972 = vmatprep.subr.mxu0 %v544
    %2973 = vmatpush1.msra.mxu0 %v543
    %2974 = vmatprep.subr.mxu0 %v550
    %2975 = vmatpush1.msra.mxu0 %v549
    %2976 = vmatprep.subr.mxu0 %v556
    %2977 = vmatpush1.msra.mxu0 %v555
    %2978 = vmatprep.subr.mxu0 %v562
    %2979 = vmatpush1.msra.mxu0 %v561
    %2980 = vmatprep.subr.mxu0 %v568
    %2981 = vmatpush1.msra.mxu0 %v567
    %2982 = vmatprep.subr.mxu0 %v574
    %2983 = vmatpush1.msra.mxu0 %v573
    %2984 = vmatprep.subr.mxu0 %v580
    %2985 = vmatpush1.msra.mxu0 %v579
    %2986 = vmatprep.subr.mxu0 %v586
    %2987 = vmatpush1.msra.mxu0 %v585
    %2988 = vmatprep.subr.mxu0 %v592
    %2989 = vmatpush1.msra.mxu0 %v591
    %2990 = vmatprep.subr.mxu0 %v598
    %2991 = vmatpush1.msra.mxu0 %v597
    %2992 = vmatprep.subr.mxu0 %v604
    %2993 = vmatpush1.msra.mxu0 %v603
    %2994 = vmatprep.subr.mxu0 %v610
    %2995 = vmatpush1.msra.mxu0 %v609
    %2996 = vmatprep.subr.mxu0 %v616
    %2997 = vmatpush1.msra.mxu0 %v615
    %2998 = vmatprep.subr.mxu0 %v622
    %2999 = vmatpush1.msra.mxu0 %v621
    %3000 = vmatprep.subr.mxu0 %v628
    %3001 = vmatpush1.msra.mxu0 %v627
    %3002 = vmatprep.subr.mxu0 0.0
    %3003 = vmatpush1.msra.mxu0 0.0
    %3004 = vmatprep.subr.mxu0 0.0
    %3005 = vmatpush1.msra.mxu0 0.0
    %3006 = vmatprep.subr.mxu0 0.0
    %3007 = vmatpush1.msra.mxu0 0.0
    %3008 = vmatprep.subr.mxu0 0.0
    %3009 = vmatpush1.msra.mxu0 0.0
    %3010 = vmatprep.subr.mxu0 0.0
    %3011 = vmatpush1.msra.mxu0 0.0
    %3012 = vmatprep.subr.mxu0 0.0
    %3013 = vmatpush1.msra.mxu0 0.0
    %3014 = vmatprep.subr.mxu0 0.0
    %3015 = vmatpush1.msra.mxu0 0.0
    %3016 = vmatprep.subr.mxu0 0.0
    %3017 = vmatpush1.msra.mxu0 0.0
    %3018 = vmatprep.subr.mxu0 0.0
    %3019 = vmatpush1.msra.mxu0 0.0
    %3020 = vmatprep.subr.mxu0 0.0
    %3021 = vmatpush1.msra.mxu0 0.0
    %3022 = vmatprep.subr.mxu0 0.0
    %3023 = vmatpush1.msra.mxu0 0.0
    %3024 = vmatprep.subr.mxu0 0.0
    %3025 = vmatpush1.msra.mxu0 0.0
    %3026 = vmatprep.subr.mxu0 0.0
    %3027 = vmatpush1.msra.mxu0 0.0
    %3028 = vmatprep.subr.mxu0 0.0
    %3029 = vmatpush1.msra.mxu0 0.0
    %3030 = vmatprep.subr.mxu0 0.0
    %3031 = vmatpush1.msra.mxu0 0.0
    %3032 = vmatprep.subr.mxu0 0.0
    %3033 = vmatpush1.msra.mxu0 0.0
    %3034 = vmatprep.mubr.f32.mxu0 0.0
    %3035 = vmatmul.mubr.f32.gmra.mrb[0].mxu0 %v2934
    %v3036 = vpop.f32.mrb[0].mxu0
    %v3037 = vadd.f32 0.0, %v3036
    %v3038 = vpop.f32.mrb[0].mxu0
    %v3039 = vadd.f32 0.0, %v3038
    %3040 = vdwg.mxu0
    %3041 = vmatprep.subr.mxu0 %v540
    %3042 = vmatpush1.msra.mxu0 %v539
    %3043 = vmatprep.subr.mxu0 %v546
    %3044 = vmatpush1.msra.mxu0 %v545
    %3045 = vmatprep.subr.mxu0 %v552
    %3046 = vmatpush1.msra.mxu0 %v551
    %3047 = vmatprep.subr.mxu0 %v558
    %3048 = vmatpush1.msra.mxu0 %v557
    %3049 = vmatprep.subr.mxu0 %v564
    %3050 = vmatpush1.msra.mxu0 %v563
    %3051 = vmatprep.subr.mxu0 %v570
    %3052 = vmatpush1.msra.mxu0 %v569
    %3053 = vmatprep.subr.mxu0 %v576
    %3054 = vmatpush1.msra.mxu0 %v575
    %3055 = vmatprep.subr.mxu0 %v582
    %3056 = vmatpush1.msra.mxu0 %v581
    %3057 = vmatprep.subr.mxu0 %v588
    %3058 = vmatpush1.msra.mxu0 %v587
    %3059 = vmatprep.subr.mxu0 %v594
    %3060 = vmatpush1.msra.mxu0 %v593
    %3061 = vmatprep.subr.mxu0 %v600
    %3062 = vmatpush1.msra.mxu0 %v599
    %3063 = vmatprep.subr.mxu0 %v606
    %3064 = vmatpush1.msra.mxu0 %v605
    %3065 = vmatprep.subr.mxu0 %v612
    %3066 = vmatpush1.msra.mxu0 %v611
    %3067 = vmatprep.subr.mxu0 %v618
    %3068 = vmatpush1.msra.mxu0 %v617
    %3069 = vmatprep.subr.mxu0 %v624
    %3070 = vmatpush1.msra.mxu0 %v623
    %3071 = vmatprep.subr.mxu0 %v630
    %3072 = vmatpush1.msra.mxu0 %v629
    %3073 = vmatprep.subr.mxu0 0.0
    %3074 = vmatpush1.msra.mxu0 0.0
    %3075 = vmatprep.subr.mxu0 0.0
    %3076 = vmatpush1.msra.mxu0 0.0
    %3077 = vmatprep.subr.mxu0 0.0
    %3078 = vmatpush1.msra.mxu0 0.0
    %3079 = vmatprep.subr.mxu0 0.0
    %3080 = vmatpush1.msra.mxu0 0.0
    %3081 = vmatprep.subr.mxu0 0.0
    %3082 = vmatpush1.msra.mxu0 0.0
    %3083 = vmatprep.subr.mxu0 0.0
    %3084 = vmatpush1.msra.mxu0 0.0
    %3085 = vmatprep.subr.mxu0 0.0
    %3086 = vmatpush1.msra.mxu0 0.0
    %3087 = vmatprep.subr.mxu0 0.0
    %3088 = vmatpush1.msra.mxu0 0.0
    %3089 = vmatprep.subr.mxu0 0.0
    %3090 = vmatpush1.msra.mxu0 0.0
    %3091 = vmatprep.subr.mxu0 0.0
    %3092 = vmatpush1.msra.mxu0 0.0
    %3093 = vmatprep.subr.mxu0 0.0
    %3094 = vmatpush1.msra.mxu0 0.0
    %3095 = vmatprep.subr.mxu0 0.0
    %3096 = vmatpush1.msra.mxu0 0.0
    %3097 = vmatprep.subr.mxu0 0.0
    %3098 = vmatpush1.msra.mxu0 0.0
    %3099 = vmatprep.subr.mxu0 0.0
    %3100 = vmatpush1.msra.mxu0 0.0
    %3101 = vmatprep.subr.mxu0 0.0
    %3102 = vmatpush1.msra.mxu0 0.0
    %3103 = vmatprep.subr.mxu0 0.0
    %3104 = vmatpush1.msra.mxu0 0.0
    %3105 = vmatprep.mubr.f32.mxu0 0.0
    %3106 = vmatmul.mubr.f32.gmra.mrb[0].mxu0 %v2934
    %v3107 = vpop.f32.mrb[0].mxu0
    %v3108 = vadd.f32 0.0, %v3107
    %v3109 = vpop.f32.mrb[0].mxu0
    %v3110 = vadd.f32 0.0, %v3109
    %3111 = vdwg.mxu0
    %3112 = vmatprep.subr.mxu0 %v542
    %3113 = vmatpush1.msra.mxu0 %v541
    %3114 = vmatprep.subr.mxu0 %v548
    %3115 = vmatpush1.msra.mxu0 %v547
    %3116 = vmatprep.subr.mxu0 %v554
    %3117 = vmatpush1.msra.mxu0 %v553
    %3118 = vmatprep.subr.mxu0 %v560
    %3119 = vmatpush1.msra.mxu0 %v559
    %3120 = vmatprep.subr.mxu0 %v566
    %3121 = vmatpush1.msra.mxu0 %v565
    %3122 = vmatprep.subr.mxu0 %v572
    %3123 = vmatpush1.msra.mxu0 %v571
    %3124 = vmatprep.subr.mxu0 %v578
    %3125 = vmatpush1.msra.mxu0 %v577
    %3126 = vmatprep.subr.mxu0 %v584
    %3127 = vmatpush1.msra.mxu0 %v583
    %3128 = vmatprep.subr.mxu0 %v590
    %3129 = vmatpush1.msra.mxu0 %v589
    %3130 = vmatprep.subr.mxu0 %v596
    %3131 = vmatpush1.msra.mxu0 %v595
    %3132 = vmatprep.subr.mxu0 %v602
    %3133 = vmatpush1.msra.mxu0 %v601
    %3134 = vmatprep.subr.mxu0 %v608
    %3135 = vmatpush1.msra.mxu0 %v607
    %3136 = vmatprep.subr.mxu0 %v614
    %3137 = vmatpush1.msra.mxu0 %v613
    %3138 = vmatprep.subr.mxu0 %v620
    %3139 = vmatpush1.msra.mxu0 %v619
    %3140 = vmatprep.subr.mxu0 %v626
    %3141 = vmatpush1.msra.mxu0 %v625
    %3142 = vmatprep.subr.mxu0 %v632
    %3143 = vmatpush1.msra.mxu0 %v631
    %3144 = vmatprep.subr.mxu0 0.0
    %3145 = vmatpush1.msra.mxu0 0.0
    %3146 = vmatprep.subr.mxu0 0.0
    %3147 = vmatpush1.msra.mxu0 0.0
    %3148 = vmatprep.subr.mxu0 0.0
    %3149 = vmatpush1.msra.mxu0 0.0
    %3150 = vmatprep.subr.mxu0 0.0
    %3151 = vmatpush1.msra.mxu0 0.0
    %3152 = vmatprep.subr.mxu0 0.0
    %3153 = vmatpush1.msra.mxu0 0.0
    %3154 = vmatprep.subr.mxu0 0.0
    %3155 = vmatpush1.msra.mxu0 0.0
    %3156 = vmatprep.subr.mxu0 0.0
    %3157 = vmatpush1.msra.mxu0 0.0
    %3158 = vmatprep.subr.mxu0 0.0
    %3159 = vmatpush1.msra.mxu0 0.0
    %3160 = vmatprep.subr.mxu0 0.0
    %3161 = vmatpush1.msra.mxu0 0.0
    %3162 = vmatprep.subr.mxu0 0.0
    %3163 = vmatpush1.msra.mxu0 0.0
    %3164 = vmatprep.subr.mxu0 0.0
    %3165 = vmatpush1.msra.mxu0 0.0
    %3166 = vmatprep.subr.mxu0 0.0
    %3167 = vmatpush1.msra.mxu0 0.0
    %3168 = vmatprep.subr.mxu0 0.0
    %3169 = vmatpush1.msra.mxu0 0.0
    %3170 = vmatprep.subr.mxu0 0.0
    %3171 = vmatpush1.msra.mxu0 0.0
    %3172 = vmatprep.subr.mxu0 0.0
    %3173 = vmatpush1.msra.mxu0 0.0
    %3174 = vmatprep.subr.mxu0 0.0
    %3175 = vmatpush1.msra.mxu0 0.0
    %3176 = vmatprep.mubr.f32.mxu0 0.0
    %3177 = vmatmul.mubr.f32.gmra.mrb[0].mxu0 %v2934
    %v3178 = vpop.f32.mrb[0].mxu0
    %v3179 = vadd.f32 0.0, %v3178
    %v3180 = vpop.f32.mrb[0].mxu0
    %v3181 = vadd.f32 0.0, %v3180
    %3182 = vdwg.mxu0
    %v3183 = vadd.f32 %v3110, %v1077
    %v3184 = vadd.f32 %v3179, %v1081
    %v3185 = vadd.f32 %v3181, %v1085
    %3186 = vmatprep.subr.mxu0 %v634
    %3187 = vmatpush1.msra.mxu0 %v633
    %3188 = vmatprep.subr.mxu0 %v637
    %3189 = vmatpush1.msra.mxu0 %v636
    %3190 = vmatprep.subr.mxu0 %v640
    %3191 = vmatpush1.msra.mxu0 %v639
    %3192 = vmatprep.subr.mxu0 %v643
    %3193 = vmatpush1.msra.mxu0 %v642
    %3194 = vmatprep.subr.mxu0 %v646
    %3195 = vmatpush1.msra.mxu0 %v645
    %3196 = vmatprep.subr.mxu0 %v649
    %3197 = vmatpush1.msra.mxu0 %v648
    %3198 = vmatprep.subr.mxu0 %v652
    %3199 = vmatpush1.msra.mxu0 %v651
    %3200 = vmatprep.subr.mxu0 %v655
    %3201 = vmatpush1.msra.mxu0 %v654
    %3202 = vmatprep.subr.mxu0 %v658
    %3203 = vmatpush1.msra.mxu0 %v657
    %3204 = vmatprep.subr.mxu0 %v661
    %3205 = vmatpush1.msra.mxu0 %v660
    %3206 = vmatprep.subr.mxu0 %v664
    %3207 = vmatpush1.msra.mxu0 %v663
    %3208 = vmatprep.subr.mxu0 %v667
    %3209 = vmatpush1.msra.mxu0 %v666
    %3210 = vmatprep.subr.mxu0 %v670
    %3211 = vmatpush1.msra.mxu0 %v669
    %3212 = vmatprep.subr.mxu0 %v673
    %3213 = vmatpush1.msra.mxu0 %v672
    %3214 = vmatprep.subr.mxu0 %v676
    %3215 = vmatpush1.msra.mxu0 %v675
    %3216 = vmatprep.subr.mxu0 %v679
    %3217 = vmatpush1.msra.mxu0 %v678
    %3218 = vmatprep.subr.mxu0 0.0
    %3219 = vmatpush1.msra.mxu0 0.0
    %3220 = vmatprep.subr.mxu0 0.0
    %3221 = vmatpush1.msra.mxu0 0.0
    %3222 = vmatprep.subr.mxu0 0.0
    %3223 = vmatpush1.msra.mxu0 0.0
    %3224 = vmatprep.subr.mxu0 0.0
    %3225 = vmatpush1.msra.mxu0 0.0
    %3226 = vmatprep.subr.mxu0 0.0
    %3227 = vmatpush1.msra.mxu0 0.0
    %3228 = vmatprep.subr.mxu0 0.0
    %3229 = vmatpush1.msra.mxu0 0.0
    %3230 = vmatprep.subr.mxu0 0.0
    %3231 = vmatpush1.msra.mxu0 0.0
    %3232 = vmatprep.subr.mxu0 0.0
    %3233 = vmatpush1.msra.mxu0 0.0
    %3234 = vmatprep.subr.mxu0 0.0
    %3235 = vmatpush1.msra.mxu0 0.0
    %3236 = vmatprep.subr.mxu0 0.0
    %3237 = vmatpush1.msra.mxu0 0.0
    %3238 = vmatprep.subr.mxu0 0.0
    %3239 = vmatpush1.msra.mxu0 0.0
    %3240 = vmatprep.subr.mxu0 0.0
    %3241 = vmatpush1.msra.mxu0 0.0
    %3242 = vmatprep.subr.mxu0 0.0
    %3243 = vmatpush1.msra.mxu0 0.0
    %3244 = vmatprep.subr.mxu0 0.0
    %3245 = vmatpush1.msra.mxu0 0.0
    %3246 = vmatprep.subr.mxu0 0.0
    %3247 = vmatpush1.msra.mxu0 0.0
    %3248 = vmatprep.subr.mxu0 0.0
    %3249 = vmatpush1.msra.mxu0 0.0
    %3250 = vmatprep.mubr.f32.mxu0 0.0
    %3251 = vmatmul.mubr.f32.gmra.mrb[0].mxu0 %v2956
    %v3252 = vpop.f32.mrb[0].mxu0
    %v3253 = vadd.f32 0.0, %v3252
    %v3254 = vpop.f32.mrb[0].mxu0
    %v3255 = vadd.f32 0.0, %v3254
    %3256 = vdwg.mxu0
    %3257 = vmatprep.subr.mxu0 0.0
    %3258 = vmatpush1.msra.mxu0 %v635
    %3259 = vmatprep.subr.mxu0 0.0
    %3260 = vmatpush1.msra.mxu0 %v638
    %3261 = vmatprep.subr.mxu0 0.0
    %3262 = vmatpush1.msra.mxu0 %v641
    %3263 = vmatprep.subr.mxu0 0.0
    %3264 = vmatpush1.msra.mxu0 %v644
    %3265 = vmatprep.subr.mxu0 0.0
    %3266 = vmatpush1.msra.mxu0 %v647
    %3267 = vmatprep.subr.mxu0 0.0
    %3268 = vmatpush1.msra.mxu0 %v650
    %3269 = vmatprep.subr.mxu0 0.0
    %3270 = vmatpush1.msra.mxu0 %v653
    %3271 = vmatprep.subr.mxu0 0.0
    %3272 = vmatpush1.msra.mxu0 %v656
    %3273 = vmatprep.subr.mxu0 0.0
    %3274 = vmatpush1.msra.mxu0 %v659
    %3275 = vmatprep.subr.mxu0 0.0
    %3276 = vmatpush1.msra.mxu0 %v662
    %3277 = vmatprep.subr.mxu0 0.0
    %3278 = vmatpush1.msra.mxu0 %v665
    %3279 = vmatprep.subr.mxu0 0.0
    %3280 = vmatpush1.msra.mxu0 %v668
    %3281 = vmatprep.subr.mxu0 0.0
    %3282 = vmatpush1.msra.mxu0 %v671
    %3283 = vmatprep.subr.mxu0 0.0
    %3284 = vmatpush1.msra.mxu0 %v674
    %3285 = vmatprep.subr.mxu0 0.0
    %3286 = vmatpush1.msra.mxu0 %v677
    %3287 = vmatprep.subr.mxu0 0.0
    %3288 = vmatpush1.msra.mxu0 %v680
    %3289 = vmatprep.subr.mxu0 0.0
    %3290 = vmatpush1.msra.mxu0 0.0
    %3291 = vmatprep.subr.mxu0 0.0
    %3292 = vmatpush1.msra.mxu0 0.0
    %3293 = vmatprep.subr.mxu0 0.0
    %3294 = vmatpush1.msra.mxu0 0.0
    %3295 = vmatprep.subr.mxu0 0.0
    %3296 = vmatpush1.msra.mxu0 0.0
    %3297 = vmatprep.subr.mxu0 0.0
    %3298 = vmatpush1.msra.mxu0 0.0
    %3299 = vmatprep.subr.mxu0 0.0
    %3300 = vmatpush1.msra.mxu0 0.0
    %3301 = vmatprep.subr.mxu0 0.0
    %3302 = vmatpush1.msra.mxu0 0.0
    %3303 = vmatprep.subr.mxu0 0.0
    %3304 = vmatpush1.msra.mxu0 0.0
    %3305 = vmatprep.subr.mxu0 0.0
    %3306 = vmatpush1.msra.mxu0 0.0
    %3307 = vmatprep.subr.mxu0 0.0
    %3308 = vmatpush1.msra.mxu0 0.0
    %3309 = vmatprep.subr.mxu0 0.0
    %3310 = vmatpush1.msra.mxu0 0.0
    %3311 = vmatprep.subr.mxu0 0.0
    %3312 = vmatpush1.msra.mxu0 0.0
    %3313 = vmatprep.subr.mxu0 0.0
    %3314 = vmatpush1.msra.mxu0 0.0
    %3315 = vmatprep.subr.mxu0 0.0
    %3316 = vmatpush1.msra.mxu0 0.0
    %3317 = vmatprep.subr.mxu0 0.0
    %3318 = vmatpush1.msra.mxu0 0.0
    %3319 = vmatprep.subr.mxu0 0.0
    %3320 = vmatpush1.msra.mxu0 0.0
    %3321 = vmatprep.mubr.f32.mxu0 0.0
    %3322 = vmatmul.mubr.f32.gmra.mrb[0].mxu0 %v2956
    %v3323 = vpop.f32.mrb[0].mxu0
    %v3324 = vadd.f32 0.0, %v3323
    %v3325 = vpop.f32.mrb[0].mxu0
    %3326 = vdwg.mxu0
    %s3327 = scalar_lea.vmem [#allocation4], 144
    %v3328 = vld [vmem:[%s3327] sm:$0xff]
    %v3329 = vld [vmem:[%s3327 + $0x8] sm:$0xff]
    %v3330 = vld [vmem:[%s3327 + $0x10] sm:$0xff]
    %v3331 = vadd.f32 %v3328, %v3037
    %v3332 = vxor.u32 %v3331, 2147483648
    %v3333 = vmul.f32 %v3332, 1.442695
    %v3334 = vpow.pop %v3333
    %v3335 = vadd.f32 %v3334, 1.0
    %v3336 = vrcp.pop %v3335
    %v3337 = vmul.f32 1.0, %v3336
    %v3338 = vadd.f32 %v3329, %v3039
    %v3339 = vxor.u32 %v3338, 2147483648
    %v3340 = vmul.f32 %v3339, 1.442695
    %v3341 = vpow.pop %v3340
    %v3342 = vadd.f32 %v3341, 1.0
    %v3343 = vrcp.pop %v3342
    %v3344 = vmul.f32 1.0, %v3343
    %v3345 = vadd.f32 %v3108, %v850
    %v3346 = vmul.f32 %v3337, %v3345
    %v3347 = vadd.f32 %v3330, %v3346
    %v3348 = vtanh.pop %v3347
    %v3349 = vsub.f32 1.0, %v3344
    %v3350 = vmul.f32 %v3349, %v3348
    %v3351 = vmul.f32 %v3344, %v2934
    %v3352 = vadd.f32 %v3350, %v3351
    %v3353 = vadd.f32 %v3183, %v3253
    %v3354 = vxor.u32 %v3353, 2147483648
    %v3355 = vmul.f32 %v3354, 1.442695
    %v3356 = vpow.pop %v3355
    %v3357 = vadd.f32 %v3356, 1.0
    %v3358 = vrcp.pop %v3357
    %v3359 = vmul.f32 1.0, %v3358
    %v3360 = vadd.f32 %v3184, %v3255
    %v3361 = vxor.u32 %v3360, 2147483648
    %v3362 = vmul.f32 %v3361, 1.442695
    %v3363 = vpow.pop %v3362
    %v3364 = vadd.f32 %v3363, 1.0
    %v3365 = vrcp.pop %v3364
    %v3366 = vmul.f32 1.0, %v3365
    %v3367 = vadd.f32 %v3324, %v1277
    %v3368 = vmul.f32 %v3359, %v3367
    %v3369 = vadd.f32 %v3185, %v3368
    %v3370 = vtanh.pop %v3369
    %v3371 = vsub.f32 1.0, %v3366
    %v3372 = vmul.f32 %v3371, %v3370
    %v3373 = vmul.f32 %v3366, %v2956
    %v3374 = vadd.f32 %v3372, %v3373
    %s3375 = sadd.s32 %s685, 5
    %v3376 = vstv %s3375
    %vm3377 = vcmp.lt.s32.totalorder %v3376, %v684
    %v3378 = vsel %vm3377, 1, 0
    %v3379 = vcvt.s32.f32 %v3378
    %3381 = vset.pattern.permute.xlu0 0
    %3382 = vperm.xlu0 %3381, %v3379
    %v3383 = vpop.permute.xlu0 %3382
    %v3385 = vmul.f32 %v3374, %v3383
    %s3386 = scalar_lea.vmem [#allocation14], 40
    %3387 = vst [vmem:[%s3386] sm:$0xff] %v3385
    %3388 = vmatprep.subr.mxu0 %v538
    %3389 = vmatpush1.msra.mxu0 %v537
    %3390 = vmatprep.subr.mxu0 %v544
    %3391 = vmatpush1.msra.mxu0 %v543
    %3392 = vmatprep.subr.mxu0 %v550
    %3393 = vmatpush1.msra.mxu0 %v549
    %3394 = vmatprep.subr.mxu0 %v556
    %3395 = vmatpush1.msra.mxu0 %v555
    %3396 = vmatprep.subr.mxu0 %v562
    %3397 = vmatpush1.msra.mxu0 %v561
    %3398 = vmatprep.subr.mxu0 %v568
    %3399 = vmatpush1.msra.mxu0 %v567
    %3400 = vmatprep.subr.mxu0 %v574
    %3401 = vmatpush1.msra.mxu0 %v573
    %3402 = vmatprep.subr.mxu0 %v580
    %3403 = vmatpush1.msra.mxu0 %v579
    %3404 = vmatprep.subr.mxu0 %v586
    %3405 = vmatpush1.msra.mxu0 %v585
    %3406 = vmatprep.subr.mxu0 %v592
    %3407 = vmatpush1.msra.mxu0 %v591
    %3408 = vmatprep.subr.mxu0 %v598
    %3409 = vmatpush1.msra.mxu0 %v597
    %3410 = vmatprep.subr.mxu0 %v604
    %3411 = vmatpush1.msra.mxu0 %v603
    %3412 = vmatprep.subr.mxu0 %v610
    %3413 = vmatpush1.msra.mxu0 %v609
    %3414 = vmatprep.subr.mxu0 %v616
    %3415 = vmatpush1.msra.mxu0 %v615
    %3416 = vmatprep.subr.mxu0 %v622
    %3417 = vmatpush1.msra.mxu0 %v621
    %3418 = vmatprep.subr.mxu0 %v628
    %3419 = vmatpush1.msra.mxu0 %v627
    %3420 = vmatprep.subr.mxu0 0.0
    %3421 = vmatpush1.msra.mxu0 0.0
    %3422 = vmatprep.subr.mxu0 0.0
    %3423 = vmatpush1.msra.mxu0 0.0
    %3424 = vmatprep.subr.mxu0 0.0
    %3425 = vmatpush1.msra.mxu0 0.0
    %3426 = vmatprep.subr.mxu0 0.0
    %3427 = vmatpush1.msra.mxu0 0.0
    %3428 = vmatprep.subr.mxu0 0.0
    %3429 = vmatpush1.msra.mxu0 0.0
    %3430 = vmatprep.subr.mxu0 0.0
    %3431 = vmatpush1.msra.mxu0 0.0
    %3432 = vmatprep.subr.mxu0 0.0
    %3433 = vmatpush1.msra.mxu0 0.0
    %3434 = vmatprep.subr.mxu0 0.0
    %3435 = vmatpush1.msra.mxu0 0.0
    %3436 = vmatprep.subr.mxu0 0.0
    %3437 = vmatpush1.msra.mxu0 0.0
    %3438 = vmatprep.subr.mxu0 0.0
    %3439 = vmatpush1.msra.mxu0 0.0
    %3440 = vmatprep.subr.mxu0 0.0
    %3441 = vmatpush1.msra.mxu0 0.0
    %3442 = vmatprep.subr.mxu0 0.0
    %3443 = vmatpush1.msra.mxu0 0.0
    %3444 = vmatprep.subr.mxu0 0.0
    %3445 = vmatpush1.msra.mxu0 0.0
    %3446 = vmatprep.subr.mxu0 0.0
    %3447 = vmatpush1.msra.mxu0 0.0
    %3448 = vmatprep.subr.mxu0 0.0
    %3449 = vmatpush1.msra.mxu0 0.0
    %3450 = vmatprep.subr.mxu0 0.0
    %3451 = vmatpush1.msra.mxu0 0.0
    %3452 = vmatprep.mubr.f32.mxu0 0.0
    %3453 = vmatmul.mubr.f32.gmra.mrb[0].mxu0 %v3352
    %v3454 = vpop.f32.mrb[0].mxu0
    %v3455 = vadd.f32 0.0, %v3454
    %v3456 = vpop.f32.mrb[0].mxu0
    %v3457 = vadd.f32 0.0, %v3456
    %3458 = vdwg.mxu0
    %3459 = vmatprep.subr.mxu0 %v540
    %3460 = vmatpush1.msra.mxu0 %v539
    %3461 = vmatprep.subr.mxu0 %v546
    %3462 = vmatpush1.msra.mxu0 %v545
    %3463 = vmatprep.subr.mxu0 %v552
    %3464 = vmatpush1.msra.mxu0 %v551
    %3465 = vmatprep.subr.mxu0 %v558
    %3466 = vmatpush1.msra.mxu0 %v557
    %3467 = vmatprep.subr.mxu0 %v564
    %3468 = vmatpush1.msra.mxu0 %v563
    %3469 = vmatprep.subr.mxu0 %v570
    %3470 = vmatpush1.msra.mxu0 %v569
    %3471 = vmatprep.subr.mxu0 %v576
    %3472 = vmatpush1.msra.mxu0 %v575
    %3473 = vmatprep.subr.mxu0 %v582
    %3474 = vmatpush1.msra.mxu0 %v581
    %3475 = vmatprep.subr.mxu0 %v588
    %3476 = vmatpush1.msra.mxu0 %v587
    %3477 = vmatprep.subr.mxu0 %v594
    %3478 = vmatpush1.msra.mxu0 %v593
    %3479 = vmatprep.subr.mxu0 %v600
    %3480 = vmatpush1.msra.mxu0 %v599
    %3481 = vmatprep.subr.mxu0 %v606
    %3482 = vmatpush1.msra.mxu0 %v605
    %3483 = vmatprep.subr.mxu0 %v612
    %3484 = vmatpush1.msra.mxu0 %v611
    %3485 = vmatprep.subr.mxu0 %v618
    %3486 = vmatpush1.msra.mxu0 %v617
    %3487 = vmatprep.subr.mxu0 %v624
    %3488 = vmatpush1.msra.mxu0 %v623
    %3489 = vmatprep.subr.mxu0 %v630
    %3490 = vmatpush1.msra.mxu0 %v629
    %3491 = vmatprep.subr.mxu0 0.0
    %3492 = vmatpush1.msra.mxu0 0.0
    %3493 = vmatprep.subr.mxu0 0.0
    %3494 = vmatpush1.msra.mxu0 0.0
    %3495 = vmatprep.subr.mxu0 0.0
    %3496 = vmatpush1.msra.mxu0 0.0
    %3497 = vmatprep.subr.mxu0 0.0
    %3498 = vmatpush1.msra.mxu0 0.0
    %3499 = vmatprep.subr.mxu0 0.0
    %3500 = vmatpush1.msra.mxu0 0.0
    %3501 = vmatprep.subr.mxu0 0.0
    %3502 = vmatpush1.msra.mxu0 0.0
    %3503 = vmatprep.subr.mxu0 0.0
    %3504 = vmatpush1.msra.mxu0 0.0
    %3505 = vmatprep.subr.mxu0 0.0
    %3506 = vmatpush1.msra.mxu0 0.0
    %3507 = vmatprep.subr.mxu0 0.0
    %3508 = vmatpush1.msra.mxu0 0.0
    %3509 = vmatprep.subr.mxu0 0.0
    %3510 = vmatpush1.msra.mxu0 0.0
    %3511 = vmatprep.subr.mxu0 0.0
    %3512 = vmatpush1.msra.mxu0 0.0
    %3513 = vmatprep.subr.mxu0 0.0
    %3514 = vmatpush1.msra.mxu0 0.0
    %3515 = vmatprep.subr.mxu0 0.0
    %3516 = vmatpush1.msra.mxu0 0.0
    %3517 = vmatprep.subr.mxu0 0.0
    %3518 = vmatpush1.msra.mxu0 0.0
    %3519 = vmatprep.subr.mxu0 0.0
    %3520 = vmatpush1.msra.mxu0 0.0
    %3521 = vmatprep.subr.mxu0 0.0
    %3522 = vmatpush1.msra.mxu0 0.0
    %3523 = vmatprep.mubr.f32.mxu0 0.0
    %3524 = vmatmul.mubr.f32.gmra.mrb[0].mxu0 %v3352
    %v3525 = vpop.f32.mrb[0].mxu0
    %v3526 = vadd.f32 0.0, %v3525
    %v3527 = vpop.f32.mrb[0].mxu0
    %v3528 = vadd.f32 0.0, %v3527
    %3529 = vdwg.mxu0
    %3530 = vmatprep.subr.mxu0 %v542
    %3531 = vmatpush1.msra.mxu0 %v541
    %3532 = vmatprep.subr.mxu0 %v548
    %3533 = vmatpush1.msra.mxu0 %v547
    %3534 = vmatprep.subr.mxu0 %v554
    %3535 = vmatpush1.msra.mxu0 %v553
    %3536 = vmatprep.subr.mxu0 %v560
    %3537 = vmatpush1.msra.mxu0 %v559
    %3538 = vmatprep.subr.mxu0 %v566
    %3539 = vmatpush1.msra.mxu0 %v565
    %3540 = vmatprep.subr.mxu0 %v572
    %3541 = vmatpush1.msra.mxu0 %v571
    %3542 = vmatprep.subr.mxu0 %v578
    %3543 = vmatpush1.msra.mxu0 %v577
    %3544 = vmatprep.subr.mxu0 %v584
    %3545 = vmatpush1.msra.mxu0 %v583
    %3546 = vmatprep.subr.mxu0 %v590
    %3547 = vmatpush1.msra.mxu0 %v589
    %3548 = vmatprep.subr.mxu0 %v596
    %3549 = vmatpush1.msra.mxu0 %v595
    %3550 = vmatprep.subr.mxu0 %v602
    %3551 = vmatpush1.msra.mxu0 %v601
    %3552 = vmatprep.subr.mxu0 %v608
    %3553 = vmatpush1.msra.mxu0 %v607
    %3554 = vmatprep.subr.mxu0 %v614
    %3555 = vmatpush1.msra.mxu0 %v613
    %3556 = vmatprep.subr.mxu0 %v620
    %3557 = vmatpush1.msra.mxu0 %v619
    %3558 = vmatprep.subr.mxu0 %v626
    %3559 = vmatpush1.msra.mxu0 %v625
    %3560 = vmatprep.subr.mxu0 %v632
    %3561 = vmatpush1.msra.mxu0 %v631
    %3562 = vmatprep.subr.mxu0 0.0
    %3563 = vmatpush1.msra.mxu0 0.0
    %3564 = vmatprep.subr.mxu0 0.0
    %3565 = vmatpush1.msra.mxu0 0.0
    %3566 = vmatprep.subr.mxu0 0.0
    %3567 = vmatpush1.msra.mxu0 0.0
    %3568 = vmatprep.subr.mxu0 0.0
    %3569 = vmatpush1.msra.mxu0 0.0
    %3570 = vmatprep.subr.mxu0 0.0
    %3571 = vmatpush1.msra.mxu0 0.0
    %3572 = vmatprep.subr.mxu0 0.0
    %3573 = vmatpush1.msra.mxu0 0.0
    %3574 = vmatprep.subr.mxu0 0.0
    %3575 = vmatpush1.msra.mxu0 0.0
    %3576 = vmatprep.subr.mxu0 0.0
    %3577 = vmatpush1.msra.mxu0 0.0
    %3578 = vmatprep.subr.mxu0 0.0
    %3579 = vmatpush1.msra.mxu0 0.0
    %3580 = vmatprep.subr.mxu0 0.0
    %3581 = vmatpush1.msra.mxu0 0.0
    %3582 = vmatprep.subr.mxu0 0.0
    %3583 = vmatpush1.msra.mxu0 0.0
    %3584 = vmatprep.subr.mxu0 0.0
    %3585 = vmatpush1.msra.mxu0 0.0
    %3586 = vmatprep.subr.mxu0 0.0
    %3587 = vmatpush1.msra.mxu0 0.0
    %3588 = vmatprep.subr.mxu0 0.0
    %3589 = vmatpush1.msra.mxu0 0.0
    %3590 = vmatprep.subr.mxu0 0.0
    %3591 = vmatpush1.msra.mxu0 0.0
    %3592 = vmatprep.subr.mxu0 0.0
    %3593 = vmatpush1.msra.mxu0 0.0
    %3594 = vmatprep.mubr.f32.mxu0 0.0
    %3595 = vmatmul.mubr.f32.gmra.mrb[0].mxu0 %v3352
    %v3596 = vpop.f32.mrb[0].mxu0
    %v3597 = vadd.f32 0.0, %v3596
    %v3598 = vpop.f32.mrb[0].mxu0
    %v3599 = vadd.f32 0.0, %v3598
    %3600 = vdwg.mxu0
    %v3601 = vadd.f32 %v3528, %v1077
    %v3602 = vadd.f32 %v3597, %v1081
    %v3603 = vadd.f32 %v3599, %v1085
    %3604 = vmatprep.subr.mxu0 %v634
    %3605 = vmatpush1.msra.mxu0 %v633
    %3606 = vmatprep.subr.mxu0 %v637
    %3607 = vmatpush1.msra.mxu0 %v636
    %3608 = vmatprep.subr.mxu0 %v640
    %3609 = vmatpush1.msra.mxu0 %v639
    %3610 = vmatprep.subr.mxu0 %v643
    %3611 = vmatpush1.msra.mxu0 %v642
    %3612 = vmatprep.subr.mxu0 %v646
    %3613 = vmatpush1.msra.mxu0 %v645
    %3614 = vmatprep.subr.mxu0 %v649
    %3615 = vmatpush1.msra.mxu0 %v648
    %3616 = vmatprep.subr.mxu0 %v652
    %3617 = vmatpush1.msra.mxu0 %v651
    %3618 = vmatprep.subr.mxu0 %v655
    %3619 = vmatpush1.msra.mxu0 %v654
    %3620 = vmatprep.subr.mxu0 %v658
    %3621 = vmatpush1.msra.mxu0 %v657
    %3622 = vmatprep.subr.mxu0 %v661
    %3623 = vmatpush1.msra.mxu0 %v660
    %3624 = vmatprep.subr.mxu0 %v664
    %3625 = vmatpush1.msra.mxu0 %v663
    %3626 = vmatprep.subr.mxu0 %v667
    %3627 = vmatpush1.msra.mxu0 %v666
    %3628 = vmatprep.subr.mxu0 %v670
    %3629 = vmatpush1.msra.mxu0 %v669
    %3630 = vmatprep.subr.mxu0 %v673
    %3631 = vmatpush1.msra.mxu0 %v672
    %3632 = vmatprep.subr.mxu0 %v676
    %3633 = vmatpush1.msra.mxu0 %v675
    %3634 = vmatprep.subr.mxu0 %v679
    %3635 = vmatpush1.msra.mxu0 %v678
    %3636 = vmatprep.subr.mxu0 0.0
    %3637 = vmatpush1.msra.mxu0 0.0
    %3638 = vmatprep.subr.mxu0 0.0
    %3639 = vmatpush1.msra.mxu0 0.0
    %3640 = vmatprep.subr.mxu0 0.0
    %3641 = vmatpush1.msra.mxu0 0.0
    %3642 = vmatprep.subr.mxu0 0.0
    %3643 = vmatpush1.msra.mxu0 0.0
    %3644 = vmatprep.subr.mxu0 0.0
    %3645 = vmatpush1.msra.mxu0 0.0
    %3646 = vmatprep.subr.mxu0 0.0
    %3647 = vmatpush1.msra.mxu0 0.0
    %3648 = vmatprep.subr.mxu0 0.0
    %3649 = vmatpush1.msra.mxu0 0.0
    %3650 = vmatprep.subr.mxu0 0.0
    %3651 = vmatpush1.msra.mxu0 0.0
    %3652 = vmatprep.subr.mxu0 0.0
    %3653 = vmatpush1.msra.mxu0 0.0
    %3654 = vmatprep.subr.mxu0 0.0
    %3655 = vmatpush1.msra.mxu0 0.0
    %3656 = vmatprep.subr.mxu0 0.0
    %3657 = vmatpush1.msra.mxu0 0.0
    %3658 = vmatprep.subr.mxu0 0.0
    %3659 = vmatpush1.msra.mxu0 0.0
    %3660 = vmatprep.subr.mxu0 0.0
    %3661 = vmatpush1.msra.mxu0 0.0
    %3662 = vmatprep.subr.mxu0 0.0
    %3663 = vmatpush1.msra.mxu0 0.0
    %3664 = vmatprep.subr.mxu0 0.0
    %3665 = vmatpush1.msra.mxu0 0.0
    %3666 = vmatprep.subr.mxu0 0.0
    %3667 = vmatpush1.msra.mxu0 0.0
    %3668 = vmatprep.mubr.f32.mxu0 0.0
    %3669 = vmatmul.mubr.f32.gmra.mrb[0].mxu0 %v3374
    %v3670 = vpop.f32.mrb[0].mxu0
    %v3671 = vadd.f32 0.0, %v3670
    %v3672 = vpop.f32.mrb[0].mxu0
    %v3673 = vadd.f32 0.0, %v3672
    %3674 = vdwg.mxu0
    %3675 = vmatprep.subr.mxu0 0.0
    %3676 = vmatpush1.msra.mxu0 %v635
    %3677 = vmatprep.subr.mxu0 0.0
    %3678 = vmatpush1.msra.mxu0 %v638
    %3679 = vmatprep.subr.mxu0 0.0
    %3680 = vmatpush1.msra.mxu0 %v641
    %3681 = vmatprep.subr.mxu0 0.0
    %3682 = vmatpush1.msra.mxu0 %v644
    %3683 = vmatprep.subr.mxu0 0.0
    %3684 = vmatpush1.msra.mxu0 %v647
    %3685 = vmatprep.subr.mxu0 0.0
    %3686 = vmatpush1.msra.mxu0 %v650
    %3687 = vmatprep.subr.mxu0 0.0
    %3688 = vmatpush1.msra.mxu0 %v653
    %3689 = vmatprep.subr.mxu0 0.0
    %3690 = vmatpush1.msra.mxu0 %v656
    %3691 = vmatprep.subr.mxu0 0.0
    %3692 = vmatpush1.msra.mxu0 %v659
    %3693 = vmatprep.subr.mxu0 0.0
    %3694 = vmatpush1.msra.mxu0 %v662
    %3695 = vmatprep.subr.mxu0 0.0
    %3696 = vmatpush1.msra.mxu0 %v665
    %3697 = vmatprep.subr.mxu0 0.0
    %3698 = vmatpush1.msra.mxu0 %v668
    %3699 = vmatprep.subr.mxu0 0.0
    %3700 = vmatpush1.msra.mxu0 %v671
    %3701 = vmatprep.subr.mxu0 0.0
    %3702 = vmatpush1.msra.mxu0 %v674
    %3703 = vmatprep.subr.mxu0 0.0
    %3704 = vmatpush1.msra.mxu0 %v677
    %3705 = vmatprep.subr.mxu0 0.0
    %3706 = vmatpush1.msra.mxu0 %v680
    %3707 = vmatprep.subr.mxu0 0.0
    %3708 = vmatpush1.msra.mxu0 0.0
    %3709 = vmatprep.subr.mxu0 0.0
    %3710 = vmatpush1.msra.mxu0 0.0
    %3711 = vmatprep.subr.mxu0 0.0
    %3712 = vmatpush1.msra.mxu0 0.0
    %3713 = vmatprep.subr.mxu0 0.0
    %3714 = vmatpush1.msra.mxu0 0.0
    %3715 = vmatprep.subr.mxu0 0.0
    %3716 = vmatpush1.msra.mxu0 0.0
    %3717 = vmatprep.subr.mxu0 0.0
    %3718 = vmatpush1.msra.mxu0 0.0
    %3719 = vmatprep.subr.mxu0 0.0
    %3720 = vmatpush1.msra.mxu0 0.0
    %3721 = vmatprep.subr.mxu0 0.0
    %3722 = vmatpush1.msra.mxu0 0.0
    %3723 = vmatprep.subr.mxu0 0.0
    %3724 = vmatpush1.msra.mxu0 0.0
    %3725 = vmatprep.subr.mxu0 0.0
    %3726 = vmatpush1.msra.mxu0 0.0
    %3727 = vmatprep.subr.mxu0 0.0
    %3728 = vmatpush1.msra.mxu0 0.0
    %3729 = vmatprep.subr.mxu0 0.0
    %3730 = vmatpush1.msra.mxu0 0.0
    %3731 = vmatprep.subr.mxu0 0.0
    %3732 = vmatpush1.msra.mxu0 0.0
    %3733 = vmatprep.subr.mxu0 0.0
    %3734 = vmatpush1.msra.mxu0 0.0
    %3735 = vmatprep.subr.mxu0 0.0
    %3736 = vmatpush1.msra.mxu0 0.0
    %3737 = vmatprep.subr.mxu0 0.0
    %3738 = vmatpush1.msra.mxu0 0.0
    %3739 = vmatprep.mubr.f32.mxu0 0.0
    %3740 = vmatmul.mubr.f32.gmra.mrb[0].mxu0 %v3374
    %v3741 = vpop.f32.mrb[0].mxu0
    %v3742 = vadd.f32 0.0, %v3741
    %v3743 = vpop.f32.mrb[0].mxu0
    %3744 = vdwg.mxu0
    %s3745 = scalar_lea.vmem [#allocation4], 168
    %v3746 = vld [vmem:[%s3745] sm:$0xff]
    %v3747 = vld [vmem:[%s3745 + $0x8] sm:$0xff]
    %v3748 = vld [vmem:[%s3745 + $0x10] sm:$0xff]
    %v3749 = vadd.f32 %v3746, %v3455
    %v3750 = vxor.u32 %v3749, 2147483648
    %v3751 = vmul.f32 %v3750, 1.442695
    %v3752 = vpow.pop %v3751
    %v3753 = vadd.f32 %v3752, 1.0
    %v3754 = vrcp.pop %v3753
    %v3755 = vmul.f32 1.0, %v3754
    %v3756 = vadd.f32 %v3747, %v3457
    %v3757 = vxor.u32 %v3756, 2147483648
    %v3758 = vmul.f32 %v3757, 1.442695
    %v3759 = vpow.pop %v3758
    %v3760 = vadd.f32 %v3759, 1.0
    %v3761 = vrcp.pop %v3760
    %v3762 = vmul.f32 1.0, %v3761
    %v3763 = vadd.f32 %v3526, %v850
    %v3764 = vmul.f32 %v3755, %v3763
    %v3765 = vadd.f32 %v3748, %v3764
    %v3766 = vtanh.pop %v3765
    %v3767 = vsub.f32 1.0, %v3762
    %v3768 = vmul.f32 %v3767, %v3766
    %v3769 = vmul.f32 %v3762, %v3352
    %v3770 = vadd.f32 %v3768, %v3769
    %v3771 = vadd.f32 %v3601, %v3671
    %v3772 = vxor.u32 %v3771, 2147483648
    %v3773 = vmul.f32 %v3772, 1.442695
    %v3774 = vpow.pop %v3773
    %v3775 = vadd.f32 %v3774, 1.0
    %v3776 = vrcp.pop %v3775
    %v3777 = vmul.f32 1.0, %v3776
    %v3778 = vadd.f32 %v3602, %v3673
    %v3779 = vxor.u32 %v3778, 2147483648
    %v3780 = vmul.f32 %v3779, 1.442695
    %v3781 = vpow.pop %v3780
    %v3782 = vadd.f32 %v3781, 1.0
    %v3783 = vrcp.pop %v3782
    %v3784 = vmul.f32 1.0, %v3783
    %v3785 = vadd.f32 %v3742, %v1277
    %v3786 = vmul.f32 %v3777, %v3785
    %v3787 = vadd.f32 %v3603, %v3786
    %v3788 = vtanh.pop %v3787
    %v3789 = vsub.f32 1.0, %v3784
    %v3790 = vmul.f32 %v3789, %v3788
    %v3791 = vmul.f32 %v3784, %v3374
    %v3792 = vadd.f32 %v3790, %v3791
    %s3793 = sadd.s32 %s685, 6
    %v3794 = vstv %s3793
    %vm3795 = vcmp.lt.s32.totalorder %v3794, %v684
    %v3796 = vsel %vm3795, 1, 0
    %v3797 = vcvt.s32.f32 %v3796
    %3799 = vset.pattern.permute.xlu0 0
    %3800 = vperm.xlu0 %3799, %v3797
    %v3801 = vpop.permute.xlu0 %3800
    %v3803 = vmul.f32 %v3792, %v3801
    %s3804 = scalar_lea.vmem [#allocation14], 48
    %3805 = vst [vmem:[%s3804] sm:$0xff] %v3803
    %3806 = vmatprep.subr.mxu0 %v540
    %3807 = vmatpush1.msra.mxu0 %v539
    %3808 = vmatprep.subr.mxu0 %v546
    %3809 = vmatpush1.msra.mxu0 %v545
    %3810 = vmatprep.subr.mxu0 %v552
    %3811 = vmatpush1.msra.mxu0 %v551
    %3812 = vmatprep.subr.mxu0 %v558
    %3813 = vmatpush1.msra.mxu0 %v557
    %3814 = vmatprep.subr.mxu0 %v564
    %3815 = vmatpush1.msra.mxu0 %v563
    %3816 = vmatprep.subr.mxu0 %v570
    %3817 = vmatpush1.msra.mxu0 %v569
    %3818 = vmatprep.subr.mxu0 %v576
    %3819 = vmatpush1.msra.mxu0 %v575
    %3820 = vmatprep.subr.mxu0 %v582
    %3821 = vmatpush1.msra.mxu0 %v581
    %3822 = vmatprep.subr.mxu0 %v588
    %3823 = vmatpush1.msra.mxu0 %v587
    %3824 = vmatprep.subr.mxu0 %v594
    %3825 = vmatpush1.msra.mxu0 %v593
    %3826 = vmatprep.subr.mxu0 %v600
    %3827 = vmatpush1.msra.mxu0 %v599
    %3828 = vmatprep.subr.mxu0 %v606
    %3829 = vmatpush1.msra.mxu0 %v605
    %3830 = vmatprep.subr.mxu0 %v612
    %3831 = vmatpush1.msra.mxu0 %v611
    %3832 = vmatprep.subr.mxu0 %v618
    %3833 = vmatpush1.msra.mxu0 %v617
    %3834 = vmatprep.subr.mxu0 %v624
    %3835 = vmatpush1.msra.mxu0 %v623
    %3836 = vmatprep.subr.mxu0 %v630
    %3837 = vmatpush1.msra.mxu0 %v629
    %3838 = vmatprep.subr.mxu0 0.0
    %3839 = vmatpush1.msra.mxu0 0.0
    %3840 = vmatprep.subr.mxu0 0.0
    %3841 = vmatpush1.msra.mxu0 0.0
    %3842 = vmatprep.subr.mxu0 0.0
    %3843 = vmatpush1.msra.mxu0 0.0
    %3844 = vmatprep.subr.mxu0 0.0
    %3845 = vmatpush1.msra.mxu0 0.0
    %3846 = vmatprep.subr.mxu0 0.0
    %3847 = vmatpush1.msra.mxu0 0.0
    %3848 = vmatprep.subr.mxu0 0.0
    %3849 = vmatpush1.msra.mxu0 0.0
    %3850 = vmatprep.subr.mxu0 0.0
    %3851 = vmatpush1.msra.mxu0 0.0
    %3852 = vmatprep.subr.mxu0 0.0
    %3853 = vmatpush1.msra.mxu0 0.0
    %3854 = vmatprep.subr.mxu0 0.0
    %3855 = vmatpush1.msra.mxu0 0.0
    %3856 = vmatprep.subr.mxu0 0.0
    %3857 = vmatpush1.msra.mxu0 0.0
    %3858 = vmatprep.subr.mxu0 0.0
    %3859 = vmatpush1.msra.mxu0 0.0
    %3860 = vmatprep.subr.mxu0 0.0
    %3861 = vmatpush1.msra.mxu0 0.0
    %3862 = vmatprep.subr.mxu0 0.0
    %3863 = vmatpush1.msra.mxu0 0.0
    %3864 = vmatprep.subr.mxu0 0.0
    %3865 = vmatpush1.msra.mxu0 0.0
    %3866 = vmatprep.subr.mxu0 0.0
    %3867 = vmatpush1.msra.mxu0 0.0
    %3868 = vmatprep.subr.mxu0 0.0
    %3869 = vmatpush1.msra.mxu0 0.0
    %3870 = vmatprep.mubr.f32.mxu0 0.0
    %3871 = vmatmul.mubr.f32.gmra.mrb[0].mxu0 %v3770
    %v3872 = vpop.f32.mrb[0].mxu0
    %v3873 = vpop.f32.mrb[0].mxu0
    %v3874 = vadd.f32 0.0, %v3873
    %3875 = vdwg.mxu0
    %3876 = vmatprep.subr.mxu0 %v542
    %3877 = vmatpush1.msra.mxu0 %v541
    %3878 = vmatprep.subr.mxu0 %v548
    %3879 = vmatpush1.msra.mxu0 %v547
    %3880 = vmatprep.subr.mxu0 %v554
    %3881 = vmatpush1.msra.mxu0 %v553
    %3882 = vmatprep.subr.mxu0 %v560
    %3883 = vmatpush1.msra.mxu0 %v559
    %3884 = vmatprep.subr.mxu0 %v566
    %3885 = vmatpush1.msra.mxu0 %v565
    %3886 = vmatprep.subr.mxu0 %v572
    %3887 = vmatpush1.msra.mxu0 %v571
    %3888 = vmatprep.subr.mxu0 %v578
    %3889 = vmatpush1.msra.mxu0 %v577
    %3890 = vmatprep.subr.mxu0 %v584
    %3891 = vmatpush1.msra.mxu0 %v583
    %3892 = vmatprep.subr.mxu0 %v590
    %3893 = vmatpush1.msra.mxu0 %v589
    %3894 = vmatprep.subr.mxu0 %v596
    %3895 = vmatpush1.msra.mxu0 %v595
    %3896 = vmatprep.subr.mxu0 %v602
    %3897 = vmatpush1.msra.mxu0 %v601
    %3898 = vmatprep.subr.mxu0 %v608
    %3899 = vmatpush1.msra.mxu0 %v607
    %3900 = vmatprep.subr.mxu0 %v614
    %3901 = vmatpush1.msra.mxu0 %v613
    %3902 = vmatprep.subr.mxu0 %v620
    %3903 = vmatpush1.msra.mxu0 %v619
    %3904 = vmatprep.subr.mxu0 %v626
    %3905 = vmatpush1.msra.mxu0 %v625
    %3906 = vmatprep.subr.mxu0 %v632
    %3907 = vmatpush1.msra.mxu0 %v631
    %3908 = vmatprep.subr.mxu0 0.0
    %3909 = vmatpush1.msra.mxu0 0.0
    %3910 = vmatprep.subr.mxu0 0.0
    %3911 = vmatpush1.msra.mxu0 0.0
    %3912 = vmatprep.subr.mxu0 0.0
    %3913 = vmatpush1.msra.mxu0 0.0
    %3914 = vmatprep.subr.mxu0 0.0
    %3915 = vmatpush1.msra.mxu0 0.0
    %3916 = vmatprep.subr.mxu0 0.0
    %3917 = vmatpush1.msra.mxu0 0.0
    %3918 = vmatprep.subr.mxu0 0.0
    %3919 = vmatpush1.msra.mxu0 0.0
    %3920 = vmatprep.subr.mxu0 0.0
    %3921 = vmatpush1.msra.mxu0 0.0
    %3922 = vmatprep.subr.mxu0 0.0
    %3923 = vmatpush1.msra.mxu0 0.0
    %3924 = vmatprep.subr.mxu0 0.0
    %3925 = vmatpush1.msra.mxu0 0.0
    %3926 = vmatprep.subr.mxu0 0.0
    %3927 = vmatpush1.msra.mxu0 0.0
    %3928 = vmatprep.subr.mxu0 0.0
    %3929 = vmatpush1.msra.mxu0 0.0
    %3930 = vmatprep.subr.mxu0 0.0
    %3931 = vmatpush1.msra.mxu0 0.0
    %3932 = vmatprep.subr.mxu0 0.0
    %3933 = vmatpush1.msra.mxu0 0.0
    %3934 = vmatprep.subr.mxu0 0.0
    %3935 = vmatpush1.msra.mxu0 0.0
    %3936 = vmatprep.subr.mxu0 0.0
    %3937 = vmatpush1.msra.mxu0 0.0
    %3938 = vmatprep.subr.mxu0 0.0
    %3939 = vmatpush1.msra.mxu0 0.0
    %3940 = vmatprep.mubr.f32.mxu0 0.0
    %3941 = vmatmul.mubr.f32.gmra.mrb[0].mxu0 %v3770
    %v3942 = vpop.f32.mrb[0].mxu0
    %v3943 = vadd.f32 0.0, %v3942
    %v3944 = vpop.f32.mrb[0].mxu0
    %v3945 = vadd.f32 0.0, %v3944
    %3946 = vdwg.mxu0
    %v3947 = vadd.f32 %v3874, %v1077
    %v3948 = vadd.f32 %v3943, %v1081
    %v3949 = vadd.f32 %v3945, %v1085
    %3950 = vmatprep.subr.mxu0 %v634
    %3951 = vmatpush1.msra.mxu0 %v633
    %3952 = vmatprep.subr.mxu0 %v637
    %3953 = vmatpush1.msra.mxu0 %v636
    %3954 = vmatprep.subr.mxu0 %v640
    %3955 = vmatpush1.msra.mxu0 %v639
    %3956 = vmatprep.subr.mxu0 %v643
    %3957 = vmatpush1.msra.mxu0 %v642
    %3958 = vmatprep.subr.mxu0 %v646
    %3959 = vmatpush1.msra.mxu0 %v645
    %3960 = vmatprep.subr.mxu0 %v649
    %3961 = vmatpush1.msra.mxu0 %v648
    %3962 = vmatprep.subr.mxu0 %v652
    %3963 = vmatpush1.msra.mxu0 %v651
    %3964 = vmatprep.subr.mxu0 %v655
    %3965 = vmatpush1.msra.mxu0 %v654
    %3966 = vmatprep.subr.mxu0 %v658
    %3967 = vmatpush1.msra.mxu0 %v657
    %3968 = vmatprep.subr.mxu0 %v661
    %3969 = vmatpush1.msra.mxu0 %v660
    %3970 = vmatprep.subr.mxu0 %v664
    %3971 = vmatpush1.msra.mxu0 %v663
    %3972 = vmatprep.subr.mxu0 %v667
    %3973 = vmatpush1.msra.mxu0 %v666
    %3974 = vmatprep.subr.mxu0 %v670
    %3975 = vmatpush1.msra.mxu0 %v669
    %3976 = vmatprep.subr.mxu0 %v673
    %3977 = vmatpush1.msra.mxu0 %v672
    %3978 = vmatprep.subr.mxu0 %v676
    %3979 = vmatpush1.msra.mxu0 %v675
    %3980 = vmatprep.subr.mxu0 %v679
    %3981 = vmatpush1.msra.mxu0 %v678
    %3982 = vmatprep.subr.mxu0 0.0
    %3983 = vmatpush1.msra.mxu0 0.0
    %3984 = vmatprep.subr.mxu0 0.0
    %3985 = vmatpush1.msra.mxu0 0.0
    %3986 = vmatprep.subr.mxu0 0.0
    %3987 = vmatpush1.msra.mxu0 0.0
    %3988 = vmatprep.subr.mxu0 0.0
    %3989 = vmatpush1.msra.mxu0 0.0
    %3990 = vmatprep.subr.mxu0 0.0
    %3991 = vmatpush1.msra.mxu0 0.0
    %3992 = vmatprep.subr.mxu0 0.0
    %3993 = vmatpush1.msra.mxu0 0.0
    %3994 = vmatprep.subr.mxu0 0.0
    %3995 = vmatpush1.msra.mxu0 0.0
    %3996 = vmatprep.subr.mxu0 0.0
    %3997 = vmatpush1.msra.mxu0 0.0
    %3998 = vmatprep.subr.mxu0 0.0
    %3999 = vmatpush1.msra.mxu0 0.0
    %4000 = vmatprep.subr.mxu0 0.0
    %4001 = vmatpush1.msra.mxu0 0.0
    %4002 = vmatprep.subr.mxu0 0.0
    %4003 = vmatpush1.msra.mxu0 0.0
    %4004 = vmatprep.subr.mxu0 0.0
    %4005 = vmatpush1.msra.mxu0 0.0
    %4006 = vmatprep.subr.mxu0 0.0
    %4007 = vmatpush1.msra.mxu0 0.0
    %4008 = vmatprep.subr.mxu0 0.0
    %4009 = vmatpush1.msra.mxu0 0.0
    %4010 = vmatprep.subr.mxu0 0.0
    %4011 = vmatpush1.msra.mxu0 0.0
    %4012 = vmatprep.subr.mxu0 0.0
    %4013 = vmatpush1.msra.mxu0 0.0
    %4014 = vmatprep.mubr.f32.mxu0 0.0
    %4015 = vmatmul.mubr.f32.gmra.mrb[0].mxu0 %v3792
    %v4016 = vpop.f32.mrb[0].mxu0
    %v4017 = vadd.f32 0.0, %v4016
    %v4018 = vpop.f32.mrb[0].mxu0
    %v4019 = vadd.f32 0.0, %v4018
    %4020 = vdwg.mxu0
    %4021 = vmatprep.subr.mxu0 0.0
    %4022 = vmatpush1.msra.mxu0 %v635
    %4023 = vmatprep.subr.mxu0 0.0
    %4024 = vmatpush1.msra.mxu0 %v638
    %4025 = vmatprep.subr.mxu0 0.0
    %4026 = vmatpush1.msra.mxu0 %v641
    %4027 = vmatprep.subr.mxu0 0.0
    %4028 = vmatpush1.msra.mxu0 %v644
    %4029 = vmatprep.subr.mxu0 0.0
    %4030 = vmatpush1.msra.mxu0 %v647
    %4031 = vmatprep.subr.mxu0 0.0
    %4032 = vmatpush1.msra.mxu0 %v650
    %4033 = vmatprep.subr.mxu0 0.0
    %4034 = vmatpush1.msra.mxu0 %v653
    %4035 = vmatprep.subr.mxu0 0.0
    %4036 = vmatpush1.msra.mxu0 %v656
    %4037 = vmatprep.subr.mxu0 0.0
    %4038 = vmatpush1.msra.mxu0 %v659
    %4039 = vmatprep.subr.mxu0 0.0
    %4040 = vmatpush1.msra.mxu0 %v662
    %4041 = vmatprep.subr.mxu0 0.0
    %4042 = vmatpush1.msra.mxu0 %v665
    %4043 = vmatprep.subr.mxu0 0.0
    %4044 = vmatpush1.msra.mxu0 %v668
    %4045 = vmatprep.subr.mxu0 0.0
    %4046 = vmatpush1.msra.mxu0 %v671
    %4047 = vmatprep.subr.mxu0 0.0
    %4048 = vmatpush1.msra.mxu0 %v674
    %4049 = vmatprep.subr.mxu0 0.0
    %4050 = vmatpush1.msra.mxu0 %v677
    %4051 = vmatprep.subr.mxu0 0.0
    %4052 = vmatpush1.msra.mxu0 %v680
    %4053 = vmatprep.subr.mxu0 0.0
    %4054 = vmatpush1.msra.mxu0 0.0
    %4055 = vmatprep.subr.mxu0 0.0
    %4056 = vmatpush1.msra.mxu0 0.0
    %4057 = vmatprep.subr.mxu0 0.0
    %4058 = vmatpush1.msra.mxu0 0.0
    %4059 = vmatprep.subr.mxu0 0.0
    %4060 = vmatpush1.msra.mxu0 0.0
    %4061 = vmatprep.subr.mxu0 0.0
    %4062 = vmatpush1.msra.mxu0 0.0
    %4063 = vmatprep.subr.mxu0 0.0
    %4064 = vmatpush1.msra.mxu0 0.0
    %4065 = vmatprep.subr.mxu0 0.0
    %4066 = vmatpush1.msra.mxu0 0.0
    %4067 = vmatprep.subr.mxu0 0.0
    %4068 = vmatpush1.msra.mxu0 0.0
    %4069 = vmatprep.subr.mxu0 0.0
    %4070 = vmatpush1.msra.mxu0 0.0
    %4071 = vmatprep.subr.mxu0 0.0
    %4072 = vmatpush1.msra.mxu0 0.0
    %4073 = vmatprep.subr.mxu0 0.0
    %4074 = vmatpush1.msra.mxu0 0.0
    %4075 = vmatprep.subr.mxu0 0.0
    %4076 = vmatpush1.msra.mxu0 0.0
    %4077 = vmatprep.subr.mxu0 0.0
    %4078 = vmatpush1.msra.mxu0 0.0
    %4079 = vmatprep.subr.mxu0 0.0
    %4080 = vmatpush1.msra.mxu0 0.0
    %4081 = vmatprep.subr.mxu0 0.0
    %4082 = vmatpush1.msra.mxu0 0.0
    %4083 = vmatprep.subr.mxu0 0.0
    %4084 = vmatpush1.msra.mxu0 0.0
    %4085 = vmatprep.mubr.f32.mxu0 0.0
    %4086 = vmatmul.mubr.f32.gmra.mrb[0].mxu0 %v3792
    %v4087 = vpop.f32.mrb[0].mxu0
    %v4088 = vadd.f32 0.0, %v4087
    %v4089 = vpop.f32.mrb[0].mxu0
    %4090 = vdwg.mxu0
    %v4091 = vadd.f32 %v3947, %v4017
    %v4092 = vxor.u32 %v4091, 2147483648
    %v4093 = vmul.f32 %v4092, 1.442695
    %v4094 = vpow.pop %v4093
    %v4095 = vadd.f32 %v4094, 1.0
    %v4096 = vrcp.pop %v4095
    %v4097 = vmul.f32 1.0, %v4096
    %v4098 = vadd.f32 %v3948, %v4019
    %v4099 = vxor.u32 %v4098, 2147483648
    %v4100 = vmul.f32 %v4099, 1.442695
    %v4101 = vpow.pop %v4100
    %v4102 = vadd.f32 %v4101, 1.0
    %v4103 = vrcp.pop %v4102
    %v4104 = vmul.f32 1.0, %v4103
    %v4105 = vadd.f32 %v4088, %v1277
    %v4106 = vmul.f32 %v4097, %v4105
    %v4107 = vadd.f32 %v3949, %v4106
    %v4108 = vtanh.pop %v4107
    %v4109 = vsub.f32 1.0, %v4104
    %v4110 = vmul.f32 %v4109, %v4108
    %v4111 = vmul.f32 %v4104, %v3792
    %v4112 = vadd.f32 %v4110, %v4111
    %s4113 = sadd.s32 %s685, 7
    %v4114 = vstv %s4113
    %vm4115 = vcmp.lt.s32.totalorder %v4114, %v684
    %v4116 = vsel %vm4115, 1, 0
    %v4117 = vcvt.s32.f32 %v4116
    %4119 = vset.pattern.permute.xlu0 0
    %4120 = vperm.xlu0 %4119, %v4117
    %v4121 = vpop.permute.xlu0 %4120
    %v4123 = vmul.f32 %v4112, %v4121
    %s4124 = scalar_lea.vmem [#allocation14], 56
    %4125 = vst [vmem:[%s4124] sm:$0xff] %v4123
    %4126 = vst [vmem:[#allocation2] sm:$0xff] %v3770
    %4127 = vst [vmem:[#allocation3] sm:$0xff] %v4112
    // Predicated region
    $region74: #{tpu_custom_call.1} parent=1 // pred_check
      _
    $region75: #{tpu_custom_call.1} parent=1 // pred_check_branch
      %4129 = sbr.rel (0) target = $region77
    $region76: #{tpu_custom_call.1} parent=1 // pred_region
      %s4131 = ssub.s32 1024, 1024
      %4132 = vsyncadd [#allocation7], %s4131
      %s4133 = sshll.u32 [#allocation14], 4
      %s4134 = int_to_ptr.vmem [resolvable:$true] %s4133
      %4139 = dma.vmem_to_hbm [thread:$0]  %s4134, 1024, %s12, [#allocation7], 128, 128, 8
    $region77: #{tpu_custom_call.1} parent=1 // pred_fallthru
      _
    // Predicated region
    $region78: #{tpu_custom_call.1} parent=1 // pred_check
      _
    $region79: #{tpu_custom_call.1} parent=1 // pred_check_branch
      %4141 = sbr.rel (0) target = $region81
    $region80: #{tpu_custom_call.1} parent=1 // pred_region
      %4142 = dma.done [#allocation7], 1024
    $region81: #{tpu_custom_call.1} parent=1 // pred_fallthru
      _
    %4143 = vsyncpa [#allocation6], 1
    %4144 = vsyncpa [#allocation9], 1
    %4145 = vsyncpa [#allocation12], 1
    %4146 = vsyncpa [#allocation7], 1

</llo_original>
